<compile_context>
chip_gen: v6e
topology: v6e:2x2x1
jax: 0.10.0
libtpu: 0.0.40
codegen_flags: <defaults>
</compile_context>

<pallas_src>
import functools
import numpy as np

import jax
import jax.numpy as jnp
from jax import lax
from jax.experimental import pallas as pl
from jax.experimental.pallas import tpu as pltpu


def _gelu_exact(x):
    # nn.GELU() default = exact erf formulation (computed in f32 on the VPU).
    return 0.5 * x * (1.0 + lax.erf(x * jnp.float32(0.7071067811865476)))


def _mlp_kernel(x_ref, w1_ref, b1_ref, w2_ref, b2_ref, o_ref, *, hidden_chunk):
    """fc1 -> GELU -> fc2 on one (TM, C_in) row tile; hidden dim chunked.

    Dropout(p=0.0) / eval mode is an identity, so it is omitted.
    """
    tm = x_ref.shape[0]
    hid = w1_ref.shape[1]
    c_out = w2_ref.shape[1]

    x = x_ref[...].astype(jnp.bfloat16)                 # (TM, C_in): single-pass MXU operand
    # f32 accumulator for fc2, seeded with its bias (broadcast hoisted out of the loop).
    acc = jnp.broadcast_to(b2_ref[...], (tm, c_out)).astype(jnp.float32)

    for j in range(hid // hidden_chunk):                # static trip count
        lo = j * hidden_chunk
        hi = lo + hidden_chunk
        h = jnp.dot(x, w1_ref[:, lo:hi],
                    preferred_element_type=jnp.float32) + b1_ref[:, lo:hi]
        h = _gelu_exact(h)                              # (TM, hidden_chunk) f32
        acc = acc + jnp.dot(h.astype(jnp.bfloat16), w2_ref[lo:hi, :],
                            preferred_element_type=jnp.float32)

    o_ref[...] = acc.astype(o_ref.dtype)                # (TM, C_out), lane-dense store


def _row_tile(m):
    """Row-tile size.

    * m <= 128: one block (block == full array, so any m is layout-legal).
    * single-TensorCore chips (v5e / v6e): one big block -> no per-grid-step overhead.
    * otherwise (v7x: 2 TCs/chip): 128-row tiles -> an even, parallel step count.
    """
    if m <= 128:
        return m
    try:
        kind = jax.devices()[0].device_kind.lower()
    except Exception:
        kind = ""
    single_tc = any(t in kind for t in ("v5e", "v5 lite", "v6e", "v6 lite"))
    if single_tc and m <= 1024:
        return m
    return 128


def mlp_pallas(x, params, *, block_rows=None, single_buffer_weights=True):
    """Applies the MLP over the last dim of x.  x: (..., in_features)."""
    # TODO(synk): training-mode dropout (p > 0) not modeled; p=0.0 / eval -> identity.
    w1_t, b1 = params["w1_t"], params["b1"]        # (C_in, H) bf16, (1, H) f32
    w2_t, b2 = params["w2_t"], params["b2"]        # (H, C_out) bf16, (1, C_out) f32
    c_in, hid = w1_t.shape
    c_out = w2_t.shape[1]

    lead = x.shape[:-1]
    x2 = x.reshape(-1, c_in)                       # fold all leading dims into rows
    m = x2.shape[0]

    tm = block_rows if block_rows is not None else _row_tile(m)
    grid = (pl.cdiv(m, tm),)                       # ragged tail handled by Pallas (no jnp.pad)

    # Hidden-dim chunk so the live (TM, chunk) f32 GELU intermediate stays small.
    if hid % 256 == 0:
        hidden_chunk = 256
    elif hid % 128 == 0:
        hidden_chunk = 128
    else:
        hidden_chunk = hid

    # Constant index_maps -> weights/biases are VMEM-resident; one buffer is enough.
    w_kwargs = dict(pipeline_mode=pl.Buffered(1)) if single_buffer_weights else {}

    out = pl.pallas_call(
        functools.partial(_mlp_kernel, hidden_chunk=hidden_chunk),
        out_shape=jax.ShapeDtypeStruct((m, c_out), x.dtype),
        grid=grid,
        in_specs=[
            pl.BlockSpec((tm, c_in), lambda i: (i, 0)),                # activation row tile
            pl.BlockSpec((c_in, hid), lambda i: (0, 0), **w_kwargs),   # fc1 weight (resident)
            pl.BlockSpec((1, hid), lambda i: (0, 0), **w_kwargs),      # fc1 bias
            pl.BlockSpec((hid, c_out), lambda i: (0, 0), **w_kwargs),  # fc2 weight (resident)
            pl.BlockSpec((1, c_out), lambda i: (0, 0), **w_kwargs),    # fc2 bias
        ],
        out_specs=pl.BlockSpec((tm, c_out), lambda i: (i, 0)),
        compiler_params=pltpu.CompilerParams(
            dimension_semantics=("parallel",),
            # NOTE: at real Swin widths (C=512-768, H=4C) also set vmem_limit_bytes here.
        ),
    )(x2, w1_t, b1, w2_t, b2)

    return out.reshape(*lead, c_out)


# ----------------------------- pure-JAX reference (matching precision) -----------------


def _mlp_ref(x, params):
    # bf16 operands, f32 accumulation — same numerics as the kernel.
    h = jnp.dot(x.astype(jnp.bfloat16), params["w1_t"],
                preferred_element_type=jnp.float32) + params["b1"][0]
    h = jax.nn.gelu(h, approximate=False)
    return jnp.dot(h.astype(jnp.bfloat16), params["w2_t"],
                   preferred_element_type=jnp.float32) + params["b2"][0]


# ----------------------------- main ---------------------------------------------------


if __name__ == "__main__":
    # MLP config: in_features=128, hidden_features=4*128=512, out_features=128.
    # Input tokens (B=4, L=64, C=128) -> 256 rows.
    B, L, C_in = 4, 64, 128
    hidden = 4 * C_in
    C_out = C_in

    root = jax.random.PRNGKey(0)
    kx, k1, k2, k3, k4 = jax.random.split(root, 5)
    x = jax.random.normal(kx, (B, L, C_in), jnp.float32)

    s = 0.02
    w1 = s * jax.random.normal(k1, (hidden, C_in), jnp.float32)   # torch layout (out, in)
    b1 = s * jax.random.normal(k2, (hidden,), jnp.float32)
    w2 = s * jax.random.normal(k3, (C_out, hidden), jnp.float32)
    b2 = s * jax.random.normal(k4, (C_out,), jnp.float32)

    params = {
        # pre-transposed for x @ W (lane-dense), weights in bf16, biases in f32
        "w1_t": w1.T.astype(jnp.bfloat16), "b1": b1.reshape(1, -1),
        "w2_t": w2.T.astype(jnp.bfloat16), "b2": b2.reshape(1, -1),
    }

    def run(single_buffer_weights):
        fwd = jax.jit(functools.partial(mlp_pallas, params=params,
                                        single_buffer_weights=single_buffer_weights))
        return jax.block_until_ready(fwd(x))

    try:
        out = run(True)      # pl.Buffered(1) on resident weights
    except Exception:
        out = run(False)     # fallback: default double-buffering if Buffered(1) is rejected

    ref = jax.block_until_ready(jax.jit(lambda xx: _mlp_ref(xx, params))(x))

    assert out.shape == (B, L, C_out)
    np.testing.assert_allclose(np.asarray(out), np.asarray(ref), rtol=2e-3, atol=2e-3)

    print("KERNEL_OK")
</pallas_src>

<mosaic_0001>
module attributes {stable_mosaic.version = 11 : i64} {
  func.func @_mlp_kernel(%arg0: i32, %arg1: memref<128x128xf32, #tpu.memory_space<vmem>>, %arg2: memref<128x512xbf16, #tpu.memory_space<vmem>>, %arg3: memref<1x512xf32, #tpu.memory_space<vmem>>, %arg4: memref<512x128xbf16, #tpu.memory_space<vmem>>, %arg5: memref<1x128xf32, #tpu.memory_space<vmem>>, %arg6: memref<128x128xf32, #tpu.memory_space<vmem>>) attributes {dimension_semantics = [#tpu.dimension_semantics<parallel>], iteration_bounds = array<i64: 2>, scalar_prefetch = 0 : i64, scratch_operands = 0 : i64, tpu.core_type = #tpu.core_type<tc>, window_params = [{transform_indices = @transform_0, window_bounds = array<i64: 128, 128>}, {pipeline_mode = #tpu.pipeline_mode<synchronous>, transform_indices = @transform_1, window_bounds = array<i64: 128, 512>}, {pipeline_mode = #tpu.pipeline_mode<synchronous>, transform_indices = @transform_2, window_bounds = array<i64: 1, 512>}, {pipeline_mode = #tpu.pipeline_mode<synchronous>, transform_indices = @transform_3, window_bounds = array<i64: 512, 128>}, {pipeline_mode = #tpu.pipeline_mode<synchronous>, transform_indices = @transform_4, window_bounds = array<i64: 1, 128>}, {transform_indices = @transform_5, window_bounds = array<i64: 128, 128>}]} {
    %c0 = arith.constant 0 : index
    %c0_0 = arith.constant 0 : index
    %0 = vector.load %arg1[%c0, %c0_0] : memref<128x128xf32, #tpu.memory_space<vmem>>, vector<128x128xf32>
    %1 = arith.truncf %0 : vector<128x128xf32> to vector<128x128xbf16>
    %c0_1 = arith.constant 0 : index
    %c0_2 = arith.constant 0 : index
    %2 = vector.load %arg5[%c0_1, %c0_2] : memref<1x128xf32, #tpu.memory_space<vmem>>, vector<1x128xf32>
    %3 = vector.shape_cast %2 : vector<1x128xf32> to vector<1x128xf32>
    %4 = vector.broadcast %3 : vector<1x128xf32> to vector<128x128xf32>
    %c0_3 = arith.constant 0 : index
    %c0_4 = arith.constant 0 : index
    %5 = vector.load %arg2[%c0_3, %c0_4] : memref<128x512xbf16, #tpu.memory_space<vmem>>, vector<128x256xbf16>
    %cst = arith.constant dense<0.000000e+00> : vector<128x256xf32>
    %6 = tpu.matmul %1, %5, %cst {dimension_numbers = #tpu.dot_dimension_numbers<[1], [0], [0], [1], [0, 0, 1, 1], [], []>} : vector<128x128xbf16>, vector<128x256xbf16>, vector<128x256xf32> -> vector<128x256xf32>
    %c0_5 = arith.constant 0 : index
    %c0_6 = arith.constant 0 : index
    %7 = vector.load %arg3[%c0_5, %c0_6] : memref<1x512xf32, #tpu.memory_space<vmem>>, vector<1x256xf32>
    %8 = vector.broadcast %7 : vector<1x256xf32> to vector<128x256xf32>
    %9 = arith.addf %6, %8 : vector<128x256xf32>
    %cst_7 = arith.constant 5.000000e-01 : f32
    %10 = vector.broadcast %cst_7 : f32 to vector<128x256xf32>
    %11 = arith.mulf %10, %9 : vector<128x256xf32>
    %cst_8 = arith.constant 0.707106769 : f32
    %12 = vector.broadcast %cst_8 : f32 to vector<128x256xf32>
    %13 = arith.mulf %9, %12 : vector<128x256xf32>
    %14 = math.erf %13 : vector<128x256xf32>
    %cst_9 = arith.constant 1.000000e+00 : f32
    %15 = vector.broadcast %cst_9 : f32 to vector<128x256xf32>
    %16 = arith.addf %15, %14 : vector<128x256xf32>
    %17 = arith.mulf %11, %16 : vector<128x256xf32>
    %18 = arith.truncf %17 : vector<128x256xf32> to vector<128x256xbf16>
    %c0_10 = arith.constant 0 : index
    %c0_11 = arith.constant 0 : index
    %19 = vector.load %arg4[%c0_10, %c0_11] : memref<512x128xbf16, #tpu.memory_space<vmem>>, vector<256x128xbf16>
    %cst_12 = arith.constant dense<0.000000e+00> : vector<128x128xf32>
    %20 = tpu.matmul %18, %19, %cst_12 {dimension_numbers = #tpu.dot_dimension_numbers<[1], [0], [0], [1], [0, 0, 1, 1], [], []>} : vector<128x256xbf16>, vector<256x128xbf16>, vector<128x128xf32> -> vector<128x128xf32>
    %21 = arith.addf %4, %20 : vector<128x128xf32>
    %c0_13 = arith.constant 0 : index
    %c256 = arith.constant 256 : index
    %22 = vector.load %arg2[%c0_13, %c256] : memref<128x512xbf16, #tpu.memory_space<vmem>>, vector<128x256xbf16>
    %cst_14 = arith.constant dense<0.000000e+00> : vector<128x256xf32>
    %23 = tpu.matmul %1, %22, %cst_14 {dimension_numbers = #tpu.dot_dimension_numbers<[1], [0], [0], [1], [0, 0, 1, 1], [], []>} : vector<128x128xbf16>, vector<128x256xbf16>, vector<128x256xf32> -> vector<128x256xf32>
    %c0_15 = arith.constant 0 : index
    %c256_16 = arith.constant 256 : index
    %24 = vector.load %arg3[%c0_15, %c256_16] : memref<1x512xf32, #tpu.memory_space<vmem>>, vector<1x256xf32>
    %25 = vector.broadcast %24 : vector<1x256xf32> to vector<128x256xf32>
    %26 = arith.addf %23, %25 : vector<128x256xf32>
    %cst_17 = arith.constant 5.000000e-01 : f32
    %27 = vector.broadcast %cst_17 : f32 to vector<128x256xf32>
    %28 = arith.mulf %27, %26 : vector<128x256xf32>
    %cst_18 = arith.constant 0.707106769 : f32
    %29 = vector.broadcast %cst_18 : f32 to vector<128x256xf32>
    %30 = arith.mulf %26, %29 : vector<128x256xf32>
    %31 = math.erf %30 : vector<128x256xf32>
    %cst_19 = arith.constant 1.000000e+00 : f32
    %32 = vector.broadcast %cst_19 : f32 to vector<128x256xf32>
    %33 = arith.addf %32, %31 : vector<128x256xf32>
    %34 = arith.mulf %28, %33 : vector<128x256xf32>
    %35 = arith.truncf %34 : vector<128x256xf32> to vector<128x256xbf16>
    %c256_20 = arith.constant 256 : index
    %c0_21 = arith.constant 0 : index
    %36 = vector.load %arg4[%c256_20, %c0_21] : memref<512x128xbf16, #tpu.memory_space<vmem>>, vector<256x128xbf16>
    %cst_22 = arith.constant dense<0.000000e+00> : vector<128x128xf32>
    %37 = tpu.matmul %35, %36, %cst_22 {dimension_numbers = #tpu.dot_dimension_numbers<[1], [0], [0], [1], [0, 0, 1, 1], [], []>} : vector<128x256xbf16>, vector<256x128xbf16>, vector<128x128xf32> -> vector<128x128xf32>
    %38 = arith.addf %21, %37 : vector<128x128xf32>
    %c0_23 = arith.constant 0 : index
    %c0_24 = arith.constant 0 : index
    %39 = vector.load %arg6[%c0_23, %c0_24] : memref<128x128xf32, #tpu.memory_space<vmem>>, vector<128x128xf32>
    tpu.vector_store %arg6[%c0_23, %c0_24], %38 {strides = array<i32>} : memref<128x128xf32, #tpu.memory_space<vmem>>, vector<128x128xf32>,
    return
  }
  func.func @transform_0(%arg0: i32) -> (i32, i32) {
    %c0_i32 = arith.constant 0 : i32
    %c0_i32_0 = arith.constant 0 : i32
    return %arg0, %c0_i32 : i32, i32
  }
  func.func @transform_1(%arg0: i32) -> (i32, i32) {
    %c0_i32 = arith.constant 0 : i32
    %c0_i32_0 = arith.constant 0 : i32
    %c0_i32_1 = arith.constant 0 : i32
    return %c0_i32, %c0_i32_0 : i32, i32
  }
  func.func @transform_2(%arg0: i32) -> (i32, i32) {
    %c0_i32 = arith.constant 0 : i32
    %c0_i32_0 = arith.constant 0 : i32
    %c0_i32_1 = arith.constant 0 : i32
    return %c0_i32, %c0_i32_0 : i32, i32
  }
  func.func @transform_3(%arg0: i32) -> (i32, i32) {
    %c0_i32 = arith.constant 0 : i32
    %c0_i32_0 = arith.constant 0 : i32
    %c0_i32_1 = arith.constant 0 : i32
    return %c0_i32, %c0_i32_0 : i32, i32
  }
  func.func @transform_4(%arg0: i32) -> (i32, i32) {
    %c0_i32 = arith.constant 0 : i32
    %c0_i32_0 = arith.constant 0 : i32
    %c0_i32_1 = arith.constant 0 : i32
    return %c0_i32, %c0_i32_0 : i32, i32
  }
  func.func @transform_5(%arg0: i32) -> (i32, i32) {
    %c0_i32 = arith.constant 0 : i32
    %c0_i32_0 = arith.constant 0 : i32
    return %arg0, %c0_i32 : i32, i32
  }
}

module attributes {stable_mosaic.version = 11 : i64} {
  func.func @_mlp_kernel(%arg0: i32, %arg1: memref<128x128xf32, #tpu.memory_space<vmem>>, %arg2: memref<128x512xbf16, #tpu.memory_space<vmem>>, %arg3: memref<1x512xf32, #tpu.memory_space<vmem>>, %arg4: memref<512x128xbf16, #tpu.memory_space<vmem>>, %arg5: memref<1x128xf32, #tpu.memory_space<vmem>>, %arg6: memref<128x128xf32, #tpu.memory_space<vmem>>) attributes {dimension_semantics = [#tpu.dimension_semantics<parallel>], iteration_bounds = array<i64: 2>, scalar_prefetch = 0 : i64, scratch_operands = 0 : i64, tpu.core_type = #tpu.core_type<tc>, window_params = [{transform_indices = @transform_0, window_bounds = array<i64: 128, 128>}, {pipeline_mode = #tpu.pipeline_mode<synchronous>, transform_indices = @transform_1, window_bounds = array<i64: 128, 512>}, {pipeline_mode = #tpu.pipeline_mode<synchronous>, transform_indices = @transform_2, window_bounds = array<i64: 1, 512>}, {pipeline_mode = #tpu.pipeline_mode<synchronous>, transform_indices = @transform_3, window_bounds = array<i64: 512, 128>}, {pipeline_mode = #tpu.pipeline_mode<synchronous>, transform_indices = @transform_4, window_bounds = array<i64: 1, 128>}, {transform_indices = @transform_5, window_bounds = array<i64: 128, 128>}]} {
    %c0 = arith.constant 0 : index
    %c0_0 = arith.constant 0 : index
    %0 = vector.load %arg1[%c0, %c0_0] : memref<128x128xf32, #tpu.memory_space<vmem>>, vector<128x128xf32>
    %1 = arith.truncf %0 : vector<128x128xf32> to vector<128x128xbf16>
    %c0_1 = arith.constant 0 : index
    %c0_2 = arith.constant 0 : index
    %2 = vector.load %arg5[%c0_1, %c0_2] : memref<1x128xf32, #tpu.memory_space<vmem>>, vector<1x128xf32>
    %3 = vector.shape_cast %2 : vector<1x128xf32> to vector<1x128xf32>
    %4 = vector.broadcast %3 : vector<1x128xf32> to vector<128x128xf32>
    %c0_3 = arith.constant 0 : index
    %c0_4 = arith.constant 0 : index
    %5 = vector.load %arg2[%c0_3, %c0_4] : memref<128x512xbf16, #tpu.memory_space<vmem>>, vector<128x256xbf16>
    %cst = arith.constant dense<0.000000e+00> : vector<128x256xf32>
    %6 = tpu.matmul %1, %5, %cst {dimension_numbers = #tpu.dot_dimension_numbers<[1], [0], [0], [1], [0, 0, 1, 1], [], []>} : vector<128x128xbf16>, vector<128x256xbf16>, vector<128x256xf32> -> vector<128x256xf32>
    %c0_5 = arith.constant 0 : index
    %c0_6 = arith.constant 0 : index
    %7 = vector.load %arg3[%c0_5, %c0_6] : memref<1x512xf32, #tpu.memory_space<vmem>>, vector<1x256xf32>
    %8 = vector.broadcast %7 : vector<1x256xf32> to vector<128x256xf32>
    %9 = arith.addf %6, %8 : vector<128x256xf32>
    %cst_7 = arith.constant 5.000000e-01 : f32
    %10 = vector.broadcast %cst_7 : f32 to vector<128x256xf32>
    %11 = arith.mulf %10, %9 : vector<128x256xf32>
    %cst_8 = arith.constant 0.707106769 : f32
    %12 = vector.broadcast %cst_8 : f32 to vector<128x256xf32>
    %13 = arith.mulf %9, %12 : vector<128x256xf32>
    %14 = math.erf %13 : vector<128x256xf32>
    %cst_9 = arith.constant 1.000000e+00 : f32
    %15 = vector.broadcast %cst_9 : f32 to vector<128x256xf32>
    %16 = arith.addf %15, %14 : vector<128x256xf32>
    %17 = arith.mulf %11, %16 : vector<128x256xf32>
    %18 = arith.truncf %17 : vector<128x256xf32> to vector<128x256xbf16>
    %c0_10 = arith.constant 0 : index
    %c0_11 = arith.constant 0 : index
    %19 = vector.load %arg4[%c0_10, %c0_11] : memref<512x128xbf16, #tpu.memory_space<vmem>>, vector<256x128xbf16>
    %cst_12 = arith.constant dense<0.000000e+00> : vector<128x128xf32>
    %20 = tpu.matmul %18, %19, %cst_12 {dimension_numbers = #tpu.dot_dimension_numbers<[1], [0], [0], [1], [0, 0, 1, 1], [], []>} : vector<128x256xbf16>, vector<256x128xbf16>, vector<128x128xf32> -> vector<128x128xf32>
    %21 = arith.addf %4, %20 : vector<128x128xf32>
    %c0_13 = arith.constant 0 : index
    %c256 = arith.constant 256 : index
    %22 = vector.load %arg2[%c0_13, %c256] : memref<128x512xbf16, #tpu.memory_space<vmem>>, vector<128x256xbf16>
    %cst_14 = arith.constant dense<0.000000e+00> : vector<128x256xf32>
    %23 = tpu.matmul %1, %22, %cst_14 {dimension_numbers = #tpu.dot_dimension_numbers<[1], [0], [0], [1], [0, 0, 1, 1], [], []>} : vector<128x128xbf16>, vector<128x256xbf16>, vector<128x256xf32> -> vector<128x256xf32>
    %c0_15 = arith.constant 0 : index
    %c256_16 = arith.constant 256 : index
    %24 = vector.load %arg3[%c0_15, %c256_16] : memref<1x512xf32, #tpu.memory_space<vmem>>, vector<1x256xf32>
    %25 = vector.broadcast %24 : vector<1x256xf32> to vector<128x256xf32>
    %26 = arith.addf %23, %25 : vector<128x256xf32>
    %cst_17 = arith.constant 5.000000e-01 : f32
    %27 = vector.broadcast %cst_17 : f32 to vector<128x256xf32>
    %28 = arith.mulf %27, %26 : vector<128x256xf32>
    %cst_18 = arith.constant 0.707106769 : f32
    %29 = vector.broadcast %cst_18 : f32 to vector<128x256xf32>
    %30 = arith.mulf %26, %29 : vector<128x256xf32>
    %31 = math.erf %30 : vector<128x256xf32>
    %cst_19 = arith.constant 1.000000e+00 : f32
    %32 = vector.broadcast %cst_19 : f32 to vector<128x256xf32>
    %33 = arith.addf %32, %31 : vector<128x256xf32>
    %34 = arith.mulf %28, %33 : vector<128x256xf32>
    %35 = arith.truncf %34 : vector<128x256xf32> to vector<128x256xbf16>
    %c256_20 = arith.constant 256 : index
    %c0_21 = arith.constant 0 : index
    %36 = vector.load %arg4[%c256_20, %c0_21] : memref<512x128xbf16, #tpu.memory_space<vmem>>, vector<256x128xbf16>
    %cst_22 = arith.constant dense<0.000000e+00> : vector<128x128xf32>
    %37 = tpu.matmul %35, %36, %cst_22 {dimension_numbers = #tpu.dot_dimension_numbers<[1], [0], [0], [1], [0, 0, 1, 1], [], []>} : vector<128x256xbf16>, vector<256x128xbf16>, vector<128x128xf32> -> vector<128x128xf32>
    %38 = arith.addf %21, %37 : vector<128x128xf32>
    %c0_23 = arith.constant 0 : index
    %c0_24 = arith.constant 0 : index
    %39 = vector.load %arg6[%c0_23, %c0_24] : memref<128x128xf32, #tpu.memory_space<vmem>>, vector<128x128xf32>
    tpu.vector_store %arg6[%c0_23, %c0_24], %38 {strides = array<i32>} : memref<128x128xf32, #tpu.memory_space<vmem>>, vector<128x128xf32>,
    return
  }
  func.func @transform_0(%arg0: i32) -> (i32, i32) {
    %c0_i32 = arith.constant 0 : i32
    %c0_i32_0 = arith.constant 0 : i32
    return %arg0, %c0_i32 : i32, i32
  }
  func.func @transform_1(%arg0: i32) -> (i32, i32) {
    %c0_i32 = arith.constant 0 : i32
    %c0_i32_0 = arith.constant 0 : i32
    %c0_i32_1 = arith.constant 0 : i32
    return %c0_i32, %c0_i32_0 : i32, i32
  }
  func.func @transform_2(%arg0: i32) -> (i32, i32) {
    %c0_i32 = arith.constant 0 : i32
    %c0_i32_0 = arith.constant 0 : i32
    %c0_i32_1 = arith.constant 0 : i32
    return %c0_i32, %c0_i32_0 : i32, i32
  }
  func.func @transform_3(%arg0: i32) -> (i32, i32) {
    %c0_i32 = arith.constant 0 : i32
    %c0_i32_0 = arith.constant 0 : i32
    %c0_i32_1 = arith.constant 0 : i32
    return %c0_i32, %c0_i32_0 : i32, i32
  }
  func.func @transform_4(%arg0: i32) -> (i32, i32) {
    %c0_i32 = arith.constant 0 : i32
    %c0_i32_0 = arith.constant 0 : i32
    %c0_i32_1 = arith.constant 0 : i32
    return %c0_i32, %c0_i32_0 : i32, i32
  }
  func.func @transform_5(%arg0: i32) -> (i32, i32) {
    %c0_i32 = arith.constant 0 : i32
    %c0_i32_0 = arith.constant 0 : i32
    return %arg0, %c0_i32 : i32, i32
  }
}

</mosaic_0001>

<llo_original>
// kernel: mlp_pallas.1
$region0: #{mlp_pallas.1}
  #allocation0 [shape = 'u32[]', space=smem, size = 0x4, offset = 0x4, fixed_abs, tag = 'smem constant byte address 0x4 - core index']
  #allocation1 [shape = 'u32[144,128]{1,0:T(1,128)}', space=vmem, size = 0x12000, scoped, tag = 'internal scratch']
  %s0 = inlined_call_operand.hbm [shape: f32[256,128], index: 0, kind: input, shape index: {}]
  %s1 = inlined_call_operand.hbm [shape: bf16[128,512], index: 1, kind: input, shape index: {}]
  %s2 = inlined_call_operand.vmem [shape: f32[1,512], index: 2, kind: input, shape index: {}]
  %s3 = inlined_call_operand.hbm [shape: bf16[512,128], index: 3, kind: input, shape index: {}]
  %s4 = inlined_call_operand.vmem [shape: f32[1,128], index: 4, kind: input, shape index: {}]
  %s5 = inlined_call_operand.hbm [shape: f32[256,128], index: 5, kind: output, shape index: {}]
  %s6 = sld [smem:[#allocation0]]
  $region65: #{mlp_pallas.1} parent=0
    _
  %s8 = ssub.s32 1, %s6
  %s9 = scalar_select 0, %s8, %s6
  $region1: #{mlp_pallas.1} parent=0
    #allocation2 [shape = 'u8[131072]{0}', space=vmem, size = 0x20000, scoped, tag = 'input window, operand 0']
    #allocation3 [shape = 's32[2]{0}', space=sflag, size = 0x8, scoped, tag = 'scoped memory for mlp_pallas.1']
    #allocation4 [shape = 's32[2]{0}', space=sflag, size = 0x8, scoped, tag = 'scoped memory for mlp_pallas.1']
    #allocation5 [shape = 'u8[131072]{0}', space=vmem, size = 0x20000, scoped, tag = 'input window, operand 1, single buffered']
    #allocation6 [shape = 's32[1]{0}', space=sflag, size = 0x4, scoped, tag = 'scoped memory for mlp_pallas.1']
    #allocation7 [shape = 'u8[131072]{0}', space=vmem, size = 0x20000, scoped, tag = 'input window, operand 3, single buffered']
    #allocation8 [shape = 'u8[131072]{0}', space=vmem, size = 0x20000, scoped, tag = 'output window, operand 0']
    %10 = vsyncpa [#allocation3], 0
    %s11 = scalar_lea.sflag [#allocation3], 1
    %12 = vsyncpa %s11, 0
    %13 = vsyncpa [#allocation6], 0
    %14 = vsyncpa [#allocation4], 0
    %s15 = scalar_lea.sflag [#allocation4], 1
    %16 = vsyncpa %s15, 0
    loop: start=0, step=1, limit=4
    $region2: #{mlp_pallas.1} parent=1 // loop_pre_header
      _
    $region3: #{mlp_pallas.1} parent=1 // loop_header
      %s18 = sphi 0, %s22
      %p19 = scmp.ge.s32.totalorder %s18, 4
      %s28 = sphi 0, %s30
      %s31 = sphi 0, %s28
      %s32 = sphi 0, %s31
      %s48 = sphi 0, %s32
      %s52 = sphi 0, %s52
      %s54 = sphi 0, %s52
      %s55 = sphi 0, %s54
      %s69 = sphi 0, %s55
      %s73 = sphi 0, %s73
      %s75 = sphi 0, %s73
      %s76 = sphi 0, %s75
      %s90 = sphi 0, %s76
      %s94 = sphi 0, %s94
      %s96 = sphi 0, %s94
      %s97 = sphi 0, %s96
      %s111 = sphi 0, %s97
      %s115 = sphi 0, %s115
      %s117 = sphi 0, %s115
      %s118 = sphi 0, %s117
      %s132 = sphi 0, %s118
      %s138 = sphi 0, %s140
      %s141 = sphi 0, %s138
      %s142 = sphi 0, %s141
      %s158 = sphi 0, %s142
    $region4: #{mlp_pallas.1} parent=1 // loop_header_branch
      %21 = sbr.rel (%p19) target = $region8
    $region5: #{mlp_pallas.1} parent=1 // loop_body
      %s23 = ssub.s32 %s18, 1
      %s24 = ssub.s32 %s18, 2
      %s25 = sadd.s32 %s18, 1
      %s26 = ssub.s32 %s18, %s25
      %p27 = scmp.eq.s32.totalorder %s26, 0
      %s29 = sadd.s32 %s28, 1
      %s30 = scalar_select %p27, %s28, %s29
      %p33 = pneg %p27
      %p34 = scmp.eq.s32.totalorder %s18, 1
      %p35 = por %p33, %p34
      %p36 = scmp.ne.s32.totalorder %s28, %s31
      %p37 = scmp.eq.s32.totalorder %s18, 0
      %p38 = por %p36, %p37
      %p39 = scmp.ne.s32.totalorder %s28, %s31
      %p40 = scmp.eq.s32.totalorder %s23, 1
      %p41 = por %p39, %p40
      %p42 = scmp.ne.s32.totalorder %s31, %s32
      %p43 = scmp.eq.s32.totalorder %s23, 0
      %p44 = por %p42, %p43
      %p45 = scmp.ne.s32.totalorder %s31, %s32
      %p46 = scmp.eq.s32.totalorder %s24, 1
      %p47 = por %p45, %p46
      %p49 = scmp.ne.s32.totalorder %s32, %s48
      %p50 = scmp.eq.s32.totalorder %s24, 0
      %p51 = por %p49, %p50
      %s53 = sadd.s32 %s52, 1
      %p56 = scmp.eq.s32.totalorder %s18, 1
      %p57 = scmp.ne.s32.totalorder %s52, %s54
      %p58 = scmp.eq.s32.totalorder %s18, 0
      %p59 = por %p57, %p58
      %p60 = scmp.ne.s32.totalorder %s52, %s54
      %p61 = scmp.eq.s32.totalorder %s23, 1
      %p62 = por %p60, %p61
      %p63 = scmp.ne.s32.totalorder %s54, %s55
      %p64 = scmp.eq.s32.totalorder %s23, 0
      %p65 = por %p63, %p64
      %p66 = scmp.ne.s32.totalorder %s54, %s55
      %p67 = scmp.eq.s32.totalorder %s24, 1
      %p68 = por %p66, %p67
      %p70 = scmp.ne.s32.totalorder %s55, %s69
      %p71 = scmp.eq.s32.totalorder %s24, 0
      %p72 = por %p70, %p71
      %s74 = sadd.s32 %s73, 1
      %p77 = scmp.eq.s32.totalorder %s18, 1
      %p78 = scmp.ne.s32.totalorder %s73, %s75
      %p79 = scmp.eq.s32.totalorder %s18, 0
      %p80 = por %p78, %p79
      %p81 = scmp.ne.s32.totalorder %s73, %s75
      %p82 = scmp.eq.s32.totalorder %s23, 1
      %p83 = por %p81, %p82
      %p84 = scmp.ne.s32.totalorder %s75, %s76
      %p85 = scmp.eq.s32.totalorder %s23, 0
      %p86 = por %p84, %p85
      %p87 = scmp.ne.s32.totalorder %s75, %s76
      %p88 = scmp.eq.s32.totalorder %s24, 1
      %p89 = por %p87, %p88
      %p91 = scmp.ne.s32.totalorder %s76, %s90
      %p92 = scmp.eq.s32.totalorder %s24, 0
      %p93 = por %p91, %p92
      %s95 = sadd.s32 %s94, 1
      %p98 = scmp.eq.s32.totalorder %s18, 1
      %p99 = scmp.ne.s32.totalorder %s94, %s96
      %p100 = scmp.eq.s32.totalorder %s18, 0
      %p101 = por %p99, %p100
      %p102 = scmp.ne.s32.totalorder %s94, %s96
      %p103 = scmp.eq.s32.totalorder %s23, 1
      %p104 = por %p102, %p103
      %p105 = scmp.ne.s32.totalorder %s96, %s97
      %p106 = scmp.eq.s32.totalorder %s23, 0
      %p107 = por %p105, %p106
      %p108 = scmp.ne.s32.totalorder %s96, %s97
      %p109 = scmp.eq.s32.totalorder %s24, 1
      %p110 = por %p108, %p109
      %p112 = scmp.ne.s32.totalorder %s97, %s111
      %p113 = scmp.eq.s32.totalorder %s24, 0
      %p114 = por %p112, %p113
      %s116 = sadd.s32 %s115, 1
      %p119 = scmp.eq.s32.totalorder %s18, 1
      %p120 = scmp.ne.s32.totalorder %s115, %s117
      %p121 = scmp.eq.s32.totalorder %s18, 0
      %p122 = por %p120, %p121
      %p123 = scmp.ne.s32.totalorder %s115, %s117
      %p124 = scmp.eq.s32.totalorder %s23, 1
      %p125 = por %p123, %p124
      %p126 = scmp.ne.s32.totalorder %s117, %s118
      %p127 = scmp.eq.s32.totalorder %s23, 0
      %p128 = por %p126, %p127
      %p129 = scmp.ne.s32.totalorder %s117, %s118
      %p130 = scmp.eq.s32.totalorder %s24, 1
      %p131 = por %p129, %p130
      %p133 = scmp.ne.s32.totalorder %s118, %s132
      %p134 = scmp.eq.s32.totalorder %s24, 0
      %p135 = por %p133, %p134
      %s136 = ssub.s32 %s18, %s25
      %p137 = scmp.eq.s32.totalorder %s136, 0
      %s139 = sadd.s32 %s138, 1
      %s140 = scalar_select %p137, %s138, %s139
      %p143 = pneg %p137
      %p144 = scmp.eq.s32.totalorder %s18, 1
      %p145 = por %p143, %p144
      %p146 = scmp.ne.s32.totalorder %s138, %s141
      %p147 = scmp.eq.s32.totalorder %s18, 0
      %p148 = por %p146, %p147
      %p149 = scmp.ne.s32.totalorder %s138, %s141
      %p150 = scmp.eq.s32.totalorder %s23, 1
      %p151 = por %p149, %p150
      %p152 = scmp.ne.s32.totalorder %s141, %s142
      %p153 = scmp.eq.s32.totalorder %s23, 0
      %p154 = por %p152, %p153
      %p155 = scmp.ne.s32.totalorder %s141, %s142
      %p156 = scmp.eq.s32.totalorder %s24, 1
      %p157 = por %p155, %p156
      %p159 = scmp.ne.s32.totalorder %s142, %s158
      %p160 = scmp.eq.s32.totalorder %s24, 0
      %p161 = por %p159, %p160
      %p162 = scmp.le.s32.totalorder 1, %s18
      %p163 = scmp.lt.s32.totalorder %s18, 3
      %p164 = pnand %p162, %p163
      %p165 = pneg %p164
      // Predicated region
      $region9: #{mlp_pallas.1} parent=5 // pred_check
        _
      $region10: #{mlp_pallas.1} parent=5 // pred_check_branch
        %167 = sbr.rel (%p164) target = $region12
      $region11: #{mlp_pallas.1} parent=5 // pred_region
        %s168 = ssub.s32 %s18, 1
        // Predicated region
        $region13: #{mlp_pallas.1} parent=11 // pred_check
          %p169 = pneg %p65
        $region14: #{mlp_pallas.1} parent=11 // pred_check_branch
          %171 = sbr.rel (%p169) target = $region16
        $region15: #{mlp_pallas.1} parent=11 // pred_region
          %s173 = ssub.s32 4096, 4096
          %174 = vsyncadd [#allocation6], %s173
          %s175 = sshll.u32 [#allocation5], 4
          %s176 = int_to_ptr.vmem [resolvable:$true] %s175
          %181 = dma.hbm_to_vmem [thread:$0]  %s1, 4096, %s176, [#allocation6], 256, 256, 16
        $region16: #{mlp_pallas.1} parent=11 // pred_fallthru
          _
        // Predicated region
        $region17: #{mlp_pallas.1} parent=11 // pred_check
          %p182 = pneg %p86
        $region18: #{mlp_pallas.1} parent=11 // pred_check_branch
          %184 = sbr.rel (%p182) target = $region20
        $region19: #{mlp_pallas.1} parent=11 // pred_region
          _
        $region20: #{mlp_pallas.1} parent=11 // pred_fallthru
          _
        // Predicated region
        $region21: #{mlp_pallas.1} parent=11 // pred_check
          %p185 = pneg %p107
        $region22: #{mlp_pallas.1} parent=11 // pred_check_branch
          %187 = sbr.rel (%p185) target = $region24
        $region23: #{mlp_pallas.1} parent=11 // pred_region
          %s189 = ssub.s32 4096, 4096
          %190 = vsyncadd [#allocation6], %s189
          %s191 = sshll.u32 [#allocation7], 4
          %s192 = int_to_ptr.vmem [resolvable:$true] %s191
          %197 = dma.hbm_to_vmem [thread:$0]  %s3, 4096, %s192, [#allocation6], 64, 64, 4
        $region24: #{mlp_pallas.1} parent=11 // pred_fallthru
          _
        // Predicated region
        $region25: #{mlp_pallas.1} parent=11 // pred_check
          %p198 = pneg %p128
        $region26: #{mlp_pallas.1} parent=11 // pred_check_branch
          %200 = sbr.rel (%p198) target = $region28
        $region27: #{mlp_pallas.1} parent=11 // pred_region
          _
        $region28: #{mlp_pallas.1} parent=11 // pred_fallthru
          _
      $region12: #{mlp_pallas.1} parent=5 // pred_fallthru
        _
      %p201 = scmp.lt.s32.totalorder %s18, 2
      // Predicated region
      $region29: #{mlp_pallas.1} parent=5 // pred_check
        %p202 = pneg %p201
      $region30: #{mlp_pallas.1} parent=5 // pred_check_branch
        %204 = sbr.rel (%p202) target = $region32
      $region31: #{mlp_pallas.1} parent=5 // pred_region
        // Predicated region
        $region33: #{mlp_pallas.1} parent=31 // pred_check
          %p205 = pneg %p38
        $region34: #{mlp_pallas.1} parent=31 // pred_check_branch
          %207 = sbr.rel (%p205) target = $region36
        $region35: #{mlp_pallas.1} parent=31 // pred_region
          %s208 = sand.u32 %s28, 1
          %s209 = scalar_lea.sflag [#allocation3], %s208
          %s210 = sand.u32 %s28, 1
          %s211 = smul.addr %s210, 128
          %s212 = scalar_lea.vmem [#allocation2], %s211
          %s213 = smul.u32 16, %s18
          %s215 = ssub.s32 2048, 2048
          %216 = vsyncadd %s209, %s215
          %s217 = smul.addr %s213, 128
          %s218 = scalar_lea.hbm %s0, %s217
          %s219 = sshll.u32 %s212, 4
          %s220 = int_to_ptr.vmem [resolvable:$true] %s219
          %225 = dma.hbm_to_vmem [thread:$0]  %s218, 2048, %s220, %s209, 128, 128, 8
        $region36: #{mlp_pallas.1} parent=31 // pred_fallthru
          _
      $region32: #{mlp_pallas.1} parent=5 // pred_fallthru
        _
      %p226 = scmp.le.s32.totalorder 1, %s18
      %p227 = scmp.lt.s32.totalorder %s18, 3
      %p228 = pnand %p226, %p227
      %p229 = pneg %p228
      // Predicated region
      $region37: #{mlp_pallas.1} parent=5 // pred_check
        _
      $region38: #{mlp_pallas.1} parent=5 // pred_check_branch
        %231 = sbr.rel (%p228) target = $region40
      $region39: #{mlp_pallas.1} parent=5 // pred_region
        %s232 = ssub.s32 %s18, 1
        %s233 = sand.u32 %s31, 1
        %s234 = scalar_lea.sflag [#allocation3], %s233
        %s235 = sand.u32 %s31, 1
        %s236 = smul.addr %s235, 128
        %s237 = scalar_lea.vmem [#allocation2], %s236
        // Predicated region
        $region41: #{mlp_pallas.1} parent=39 // pred_check
          %p238 = pneg %p44
        $region42: #{mlp_pallas.1} parent=39 // pred_check_branch
          %240 = sbr.rel (%p238) target = $region44
        $region43: #{mlp_pallas.1} parent=39 // pred_region
          %241 = dma.done %s234, 2048
        $region44: #{mlp_pallas.1} parent=39 // pred_fallthru
          _
        // Predicated region
        $region45: #{mlp_pallas.1} parent=39 // pred_check
          %p242 = pneg %p65
        $region46: #{mlp_pallas.1} parent=39 // pred_check_branch
          %244 = sbr.rel (%p242) target = $region48
        $region47: #{mlp_pallas.1} parent=39 // pred_region
          %245 = dma.done [#allocation6], 4096
        $region48: #{mlp_pallas.1} parent=39 // pred_fallthru
          _
        // Predicated region
        $region49: #{mlp_pallas.1} parent=39 // pred_check
          %p246 = pneg %p107
        $region50: #{mlp_pallas.1} parent=39 // pred_check_branch
          %248 = sbr.rel (%p246) target = $region52
        $region51: #{mlp_pallas.1} parent=39 // pred_region
          %249 = dma.done [#allocation6], 4096
        $region52: #{mlp_pallas.1} parent=39 // pred_fallthru
          _
        %s250 = sand.u32 %s31, 1
        %s251 = scalar_lea.sflag [#allocation3], %s250
        %s252 = sand.u32 %s31, 1
        %s253 = smul.addr %s252, 128
        %s254 = scalar_lea.vmem [#allocation2], %s253
        %p255 = pneg %p44
        %p256 = pneg %p41
        %p257 = pneg %p65
        %p258 = pneg %p62
        %p259 = pneg %p86
        %p260 = pneg %p83
        %p261 = pneg %p107
        %p262 = pneg %p104
        %p263 = pneg %p128
        %p264 = pneg %p125
        %p265 = pneg %p154
        %p266 = pneg %p151
        %s267 = sand.u32 %s141, 1
        %s268 = scalar_lea.sflag [#allocation4], %s267
        %s269 = sand.u32 %s141, 1
        %s270 = smul.addr %s269, 128
        %s271 = scalar_lea.vmem [#allocation8], %s270
        %s272 = smul.u32 16, %s23
        %s273 = smul.u32 16, %s23
        %v275 = vld [vmem:[%s237] sm:$0xff]
        %v276 = vld [vmem:[%s237 + $0x8] sm:$0xff]
        %v277 = vld [vmem:[%s237 + $0x10] sm:$0xff]
        %v278 = vld [vmem:[%s237 + $0x18] sm:$0xff]
        %v279 = vld [vmem:[%s237 + $0x20] sm:$0xff]
        %v280 = vld [vmem:[%s237 + $0x28] sm:$0xff]
        %v281 = vld [vmem:[%s237 + $0x30] sm:$0xff]
        %v282 = vld [vmem:[%s237 + $0x38] sm:$0xff]
        %v283 = vld [vmem:[%s237 + $0x40] sm:$0xff]
        %v284 = vld [vmem:[%s237 + $0x48] sm:$0xff]
        %v285 = vld [vmem:[%s237 + $0x50] sm:$0xff]
        %v286 = vld [vmem:[%s237 + $0x58] sm:$0xff]
        %v287 = vld [vmem:[%s237 + $0x60] sm:$0xff]
        %v288 = vld [vmem:[%s237 + $0x68] sm:$0xff]
        %v289 = vld [vmem:[%s237 + $0x70] sm:$0xff]
        %v290 = vld [vmem:[%s237 + $0x78] sm:$0xff]
        %v291 = vpack.c.bf16 %v276, %v275
        %v292 = vpack.c.bf16 %v278, %v277
        %v293 = vpack.c.bf16 %v280, %v279
        %v294 = vpack.c.bf16 %v282, %v281
        %v295 = vpack.c.bf16 %v284, %v283
        %v296 = vpack.c.bf16 %v286, %v285
        %v297 = vpack.c.bf16 %v288, %v287
        %v298 = vpack.c.bf16 %v290, %v289
        %v299 = vld [vmem:[%s4] sm:$0x1]
        %v301 = vlaneseq
        %v302 = vshrl.u32 %v301, 7
        %v303 = vsub.s32 0, %v302
        %v304 = vrot.slane %v299, %v303
        %v306 = vld [vmem:[#allocation5] sm:$0xff]
        %v307 = vld [vmem:[#allocation5 + $0x10] sm:$0xff]
        %v308 = vld [vmem:[#allocation5 + $0x20] sm:$0xff]
        %v309 = vld [vmem:[#allocation5 + $0x30] sm:$0xff]
        %v310 = vld [vmem:[#allocation5 + $0x40] sm:$0xff]
        %v311 = vld [vmem:[#allocation5 + $0x50] sm:$0xff]
        %v312 = vld [vmem:[#allocation5 + $0x60] sm:$0xff]
        %v313 = vld [vmem:[#allocation5 + $0x70] sm:$0xff]
        %v314 = vld [vmem:[#allocation5 + $0x80] sm:$0xff]
        %v315 = vld [vmem:[#allocation5 + $0x90] sm:$0xff]
        %v316 = vld [vmem:[#allocation5 + $0xa0] sm:$0xff]
        %v317 = vld [vmem:[#allocation5 + $0xb0] sm:$0xff]
        %v318 = vld [vmem:[#allocation5 + $0xc0] sm:$0xff]
        %v319 = vld [vmem:[#allocation5 + $0xd0] sm:$0xff]
        %v320 = vld [vmem:[#allocation5 + $0xe0] sm:$0xff]
        %v321 = vld [vmem:[#allocation5 + $0xf0] sm:$0xff]
        %v322 = vld [vmem:[%s2] sm:$0x3]
        %v324 = vlaneseq
        %v325 = vshrl.u32 %v324, 7
        %v326 = vsub.s32 0, %v325
        %v327 = vrot.slane %v322, %v326
        %v328 = vlaneseq
        %v329 = vshrl.u32 %v328, 7
        %v330 = vsub.s32 1, %v329
        %v331 = vrot.slane %v322, %v330
        %v350 = vunpack.c.l.b16 %v306
        %v351 = vunpack.c.h.b16 %v306
        %v352 = vunpack.c.l.b16 %v307
        %v353 = vunpack.c.h.b16 %v307
        %v354 = vunpack.c.l.b16 %v308
        %v355 = vunpack.c.h.b16 %v308
        %v356 = vunpack.c.l.b16 %v309
        %v357 = vunpack.c.h.b16 %v309
        %v358 = vunpack.c.l.b16 %v310
        %v359 = vunpack.c.h.b16 %v310
        %v360 = vunpack.c.l.b16 %v311
        %v361 = vunpack.c.h.b16 %v311
        %v362 = vunpack.c.l.b16 %v312
        %v363 = vunpack.c.h.b16 %v312
        %v364 = vunpack.c.l.b16 %v313
        %v365 = vunpack.c.h.b16 %v313
        %v366 = vunpack.c.l.b16 %v314
        %v367 = vunpack.c.h.b16 %v314
        %v368 = vunpack.c.l.b16 %v315
        %v369 = vunpack.c.h.b16 %v315
        %v370 = vunpack.c.l.b16 %v316
        %v371 = vunpack.c.h.b16 %v316
        %v372 = vunpack.c.l.b16 %v317
        %v373 = vunpack.c.h.b16 %v317
        %v374 = vunpack.c.l.b16 %v318
        %v375 = vunpack.c.h.b16 %v318
        %v376 = vunpack.c.l.b16 %v319
        %v377 = vunpack.c.h.b16 %v319
        %v378 = vunpack.c.l.b16 %v320
        %v379 = vunpack.c.h.b16 %v320
        %v380 = vunpack.c.l.b16 %v321
        %v381 = vunpack.c.h.b16 %v321
        %v382 = vpack.c.b16 %v352, %v350
        %v383 = vpack.c.b16 %v353, %v351
        %v384 = vpack.c.b16 %v356, %v354
        %v385 = vpack.c.b16 %v357, %v355
        %v386 = vpack.c.b16 %v360, %v358
        %v387 = vpack.c.b16 %v361, %v359
        %v388 = vpack.c.b16 %v364, %v362
        %v389 = vpack.c.b16 %v365, %v363
        %v390 = vpack.c.b16 %v368, %v366
        %v391 = vpack.c.b16 %v369, %v367
        %v392 = vpack.c.b16 %v372, %v370
        %v393 = vpack.c.b16 %v373, %v371
        %v394 = vpack.c.b16 %v376, %v374
        %v395 = vpack.c.b16 %v377, %v375
        %v396 = vpack.c.b16 %v380, %v378
        %v397 = vpack.c.b16 %v381, %v379
        %414 = vmatprep.subr.bf16.mxu0 %v397
        %415 = vmatpush1.bf16.msra.mxu0 %v396
        %416 = vmatprep.subr.bf16.mxu0 %v395
        %417 = vmatpush1.bf16.msra.mxu0 %v394
        %418 = vmatprep.subr.bf16.mxu0 %v393
        %419 = vmatpush1.bf16.msra.mxu0 %v392
        %420 = vmatprep.subr.bf16.mxu0 %v391
        %421 = vmatpush1.bf16.msra.mxu0 %v390
        %422 = vmatprep.subr.bf16.mxu0 %v389
        %423 = vmatpush1.bf16.msra.mxu0 %v388
        %424 = vmatprep.subr.bf16.mxu0 %v387
        %425 = vmatpush1.bf16.msra.mxu0 %v386
        %426 = vmatprep.subr.bf16.mxu0 %v385
        %427 = vmatpush1.bf16.msra.mxu0 %v384
        %428 = vmatprep.subr.bf16.mxu0 %v383
        %429 = vmatpush1.bf16.msra.mxu0 %v382
        %430 = vmatprep.subr.bf16.mxu0 0
        %431 = vmatpush2.bf16.msra.mxu0 0
        %432 = vmatprep.subr.bf16.mxu0 0
        %433 = vmatpush2.bf16.msra.mxu0 0
        %434 = vmatprep.subr.bf16.mxu0 0
        %435 = vmatpush2.bf16.msra.mxu0 0
        %436 = vmatprep.subr.bf16.mxu0 0
        %437 = vmatpush2.bf16.msra.mxu0 0
        %438 = vmatprep.subr.bf16.mxu0 0
        %439 = vmatpush2.bf16.msra.mxu0 0
        %440 = vmatprep.subr.bf16.mxu0 0
        %441 = vmatpush2.bf16.msra.mxu0 0
        %442 = vmatprep.subr.bf16.mxu0 0
        %443 = vmatpush2.bf16.msra.mxu0 0
        %444 = vmatprep.subr.bf16.mxu0 0
        %445 = vmatpush2.bf16.msra.mxu0 0
        %446 = vmatprep.mubr.bf16.mxu0 0
        %447 = vmatmul.mubr.bf16.gmra.mxu0 %v291
        %v448 = vpop.f32.mrf.mxu0
        %v449 = vadd.f32 %v327, %v448
        %v450 = vpop.f32.mrf.mxu0
        %v451 = vadd.f32 %v331, %v450
        %v452 = vpop.f32.mrf.mxu0
        %v453 = vadd.f32 %v327, %v452
        %v454 = vpop.f32.mrf.mxu0
        %v455 = vadd.f32 %v331, %v454
        %456 = vmatprep.mubr.bf16.mxu0 0
        %457 = vmatmul.mubr.bf16.gmra.mxu0 %v292
        %v458 = vpop.f32.mrf.mxu0
        %v459 = vadd.f32 %v327, %v458
        %v460 = vpop.f32.mrf.mxu0
        %v461 = vadd.f32 %v331, %v460
        %v462 = vpop.f32.mrf.mxu0
        %v463 = vadd.f32 %v327, %v462
        %v464 = vpop.f32.mrf.mxu0
        %v465 = vadd.f32 %v331, %v464
        %466 = vmatprep.mubr.bf16.mxu0 0
        %467 = vmatmul.mubr.bf16.gmra.mxu0 %v293
        %v468 = vpop.f32.mrf.mxu0
        %v469 = vadd.f32 %v327, %v468
        %v470 = vpop.f32.mrf.mxu0
        %v471 = vadd.f32 %v331, %v470
        %v472 = vpop.f32.mrf.mxu0
        %v473 = vadd.f32 %v327, %v472
        %v474 = vpop.f32.mrf.mxu0
        %v475 = vadd.f32 %v331, %v474
        %476 = vmatprep.mubr.bf16.mxu0 0
        %477 = vmatmul.mubr.bf16.gmra.mxu0 %v294
        %v478 = vpop.f32.mrf.mxu0
        %v479 = vadd.f32 %v327, %v478
        %v480 = vpop.f32.mrf.mxu0
        %v481 = vadd.f32 %v331, %v480
        %v482 = vpop.f32.mrf.mxu0
        %v483 = vadd.f32 %v327, %v482
        %v484 = vpop.f32.mrf.mxu0
        %v485 = vadd.f32 %v331, %v484
        %486 = vmatprep.mubr.bf16.mxu0 0
        %487 = vmatmul.mubr.bf16.gmra.mxu0 %v295
        %v488 = vpop.f32.mrf.mxu0
        %v489 = vadd.f32 %v327, %v488
        %v490 = vpop.f32.mrf.mxu0
        %v491 = vadd.f32 %v331, %v490
        %v492 = vpop.f32.mrf.mxu0
        %v493 = vadd.f32 %v327, %v492
        %v494 = vpop.f32.mrf.mxu0
        %v495 = vadd.f32 %v331, %v494
        %496 = vmatprep.mubr.bf16.mxu0 0
        %497 = vmatmul.mubr.bf16.gmra.mxu0 %v296
        %v498 = vpop.f32.mrf.mxu0
        %v499 = vadd.f32 %v327, %v498
        %v500 = vpop.f32.mrf.mxu0
        %v501 = vadd.f32 %v331, %v500
        %v502 = vpop.f32.mrf.mxu0
        %v503 = vadd.f32 %v327, %v502
        %v504 = vpop.f32.mrf.mxu0
        %v505 = vadd.f32 %v331, %v504
        %506 = vmatprep.mubr.bf16.mxu0 0
        %507 = vmatmul.mubr.bf16.gmra.mxu0 %v297
        %v508 = vpop.f32.mrf.mxu0
        %v509 = vadd.f32 %v327, %v508
        %v510 = vpop.f32.mrf.mxu0
        %v511 = vadd.f32 %v331, %v510
        %v512 = vpop.f32.mrf.mxu0
        %v513 = vadd.f32 %v327, %v512
        %v514 = vpop.f32.mrf.mxu0
        %v515 = vadd.f32 %v331, %v514
        %516 = vmatprep.mubr.bf16.mxu0 0
        %517 = vmatmul.mubr.bf16.gmra.mxu0 %v298
        %v518 = vpop.f32.mrf.mxu0
        %v519 = vadd.f32 %v327, %v518
        %v520 = vpop.f32.mrf.mxu0
        %v521 = vadd.f32 %v331, %v520
        %v522 = vpop.f32.mrf.mxu0
        %v523 = vadd.f32 %v327, %v522
        %v524 = vpop.f32.mrf.mxu0
        %v525 = vadd.f32 %v331, %v524
        %526 = vdwg.mxu0
        %v527 = vmul.f32 %v449, 0.5
        %v528 = vmul.f32 %v451, 0.5
        %v529 = vmul.f32 %v453, 0.5
        %v530 = vmul.f32 %v455, 0.5
        %v531 = vmul.f32 %v459, 0.5
        %v532 = vmul.f32 %v461, 0.5
        %v533 = vmul.f32 %v463, 0.5
        %v534 = vmul.f32 %v465, 0.5
        %v535 = vmul.f32 %v469, 0.5
        %v536 = vmul.f32 %v471, 0.5
        %v537 = vmul.f32 %v473, 0.5
        %v538 = vmul.f32 %v475, 0.5
        %v539 = vmul.f32 %v479, 0.5
        %v540 = vmul.f32 %v481, 0.5
        %v541 = vmul.f32 %v483, 0.5
        %v542 = vmul.f32 %v485, 0.5
        %v543 = vmul.f32 %v489, 0.5
        %v544 = vmul.f32 %v491, 0.5
        %v545 = vmul.f32 %v493, 0.5
        %v546 = vmul.f32 %v495, 0.5
        %v547 = vmul.f32 %v499, 0.5
        %v548 = vmul.f32 %v501, 0.5
        %v549 = vmul.f32 %v503, 0.5
        %v550 = vmul.f32 %v505, 0.5
        %v551 = vmul.f32 %v509, 0.5
        %v552 = vmul.f32 %v511, 0.5
        %v553 = vmul.f32 %v513, 0.5
        %v554 = vmul.f32 %v515, 0.5
        %v555 = vmul.f32 %v519, 0.5
        %v556 = vmul.f32 %v521, 0.5
        %v557 = vmul.f32 %v523, 0.5
        %v558 = vmul.f32 %v525, 0.5
        %v559 = vmul.f32 %v449, 0.70710677
        %v560 = vmul.f32 %v451, 0.70710677
        %v561 = vmul.f32 %v453, 0.70710677
        %v562 = vmul.f32 %v455, 0.70710677
        %v563 = vmul.f32 %v459, 0.70710677
        %v564 = vmul.f32 %v461, 0.70710677
        %v565 = vmul.f32 %v463, 0.70710677
        %v566 = vmul.f32 %v465, 0.70710677
        %v567 = vmul.f32 %v469, 0.70710677
        %v568 = vmul.f32 %v471, 0.70710677
        %v569 = vmul.f32 %v473, 0.70710677
        %v570 = vmul.f32 %v475, 0.70710677
        %v571 = vmul.f32 %v479, 0.70710677
        %v572 = vmul.f32 %v481, 0.70710677
        %v573 = vmul.f32 %v483, 0.70710677
        %v574 = vmul.f32 %v485, 0.70710677
        %v575 = vmul.f32 %v489, 0.70710677
        %v576 = vmul.f32 %v491, 0.70710677
        %v577 = vmul.f32 %v493, 0.70710677
        %v578 = vmul.f32 %v495, 0.70710677
        %v579 = vmul.f32 %v499, 0.70710677
        %v580 = vmul.f32 %v501, 0.70710677
        %v581 = vmul.f32 %v503, 0.70710677
        %v582 = vmul.f32 %v505, 0.70710677
        %v583 = vmul.f32 %v509, 0.70710677
        %v584 = vmul.f32 %v511, 0.70710677
        %v585 = vmul.f32 %v513, 0.70710677
        %v586 = vmul.f32 %v515, 0.70710677
        %v587 = vmul.f32 %v519, 0.70710677
        %v588 = vmul.f32 %v521, 0.70710677
        %v589 = vmul.f32 %v523, 0.70710677
        %v590 = vmul.f32 %v525, 0.70710677
        %v591 = verf.f32.pop %v559
        %v592 = verf.f32.pop %v560
        %v593 = verf.f32.pop %v561
        %v594 = verf.f32.pop %v562
        %v595 = verf.f32.pop %v563
        %v596 = verf.f32.pop %v564
        %v597 = verf.f32.pop %v565
        %v598 = verf.f32.pop %v566
        %v599 = verf.f32.pop %v567
        %v600 = verf.f32.pop %v568
        %v601 = verf.f32.pop %v569
        %v602 = verf.f32.pop %v570
        %v603 = verf.f32.pop %v571
        %v604 = verf.f32.pop %v572
        %v605 = verf.f32.pop %v573
        %v606 = verf.f32.pop %v574
        %v607 = verf.f32.pop %v575
        %v608 = verf.f32.pop %v576
        %v609 = verf.f32.pop %v577
        %v610 = verf.f32.pop %v578
        %v611 = verf.f32.pop %v579
        %v612 = verf.f32.pop %v580
        %v613 = verf.f32.pop %v581
        %v614 = verf.f32.pop %v582
        %v615 = verf.f32.pop %v583
        %v616 = verf.f32.pop %v584
        %v617 = verf.f32.pop %v585
        %v618 = verf.f32.pop %v586
        %v619 = verf.f32.pop %v587
        %v620 = verf.f32.pop %v588
        %v621 = verf.f32.pop %v589
        %v622 = verf.f32.pop %v590
        %v623 = vadd.f32 %v591, 1.0
        %v624 = vadd.f32 %v592, 1.0
        %v625 = vadd.f32 %v593, 1.0
        %v626 = vadd.f32 %v594, 1.0
        %v627 = vadd.f32 %v595, 1.0
        %v628 = vadd.f32 %v596, 1.0
        %v629 = vadd.f32 %v597, 1.0
        %v630 = vadd.f32 %v598, 1.0
        %v631 = vadd.f32 %v599, 1.0
        %v632 = vadd.f32 %v600, 1.0
        %v633 = vadd.f32 %v601, 1.0
        %v634 = vadd.f32 %v602, 1.0
        %v635 = vadd.f32 %v603, 1.0
        %v636 = vadd.f32 %v604, 1.0
        %v637 = vadd.f32 %v605, 1.0
        %v638 = vadd.f32 %v606, 1.0
        %v639 = vadd.f32 %v607, 1.0
        %v640 = vadd.f32 %v608, 1.0
        %v641 = vadd.f32 %v609, 1.0
        %v642 = vadd.f32 %v610, 1.0
        %v643 = vadd.f32 %v611, 1.0
        %v644 = vadd.f32 %v612, 1.0
        %v645 = vadd.f32 %v613, 1.0
        %v646 = vadd.f32 %v614, 1.0
        %v647 = vadd.f32 %v615, 1.0
        %v648 = vadd.f32 %v616, 1.0
        %v649 = vadd.f32 %v617, 1.0
        %v650 = vadd.f32 %v618, 1.0
        %v651 = vadd.f32 %v619, 1.0
        %v652 = vadd.f32 %v620, 1.0
        %v653 = vadd.f32 %v621, 1.0
        %v654 = vadd.f32 %v622, 1.0
        %v655 = vmul.f32 %v527, %v623
        %v656 = vmul.f32 %v528, %v624
        %v657 = vmul.f32 %v529, %v625
        %v658 = vmul.f32 %v530, %v626
        %v659 = vmul.f32 %v531, %v627
        %v660 = vmul.f32 %v532, %v628
        %v661 = vmul.f32 %v533, %v629
        %v662 = vmul.f32 %v534, %v630
        %v663 = vmul.f32 %v535, %v631
        %v664 = vmul.f32 %v536, %v632
        %v665 = vmul.f32 %v537, %v633
        %v666 = vmul.f32 %v538, %v634
        %v667 = vmul.f32 %v539, %v635
        %v668 = vmul.f32 %v540, %v636
        %v669 = vmul.f32 %v541, %v637
        %v670 = vmul.f32 %v542, %v638
        %v671 = vmul.f32 %v543, %v639
        %v672 = vmul.f32 %v544, %v640
        %v673 = vmul.f32 %v545, %v641
        %v674 = vmul.f32 %v546, %v642
        %v675 = vmul.f32 %v547, %v643
        %v676 = vmul.f32 %v548, %v644
        %v677 = vmul.f32 %v549, %v645
        %v678 = vmul.f32 %v550, %v646
        %v679 = vmul.f32 %v551, %v647
        %v680 = vmul.f32 %v552, %v648
        %v681 = vmul.f32 %v553, %v649
        %v682 = vmul.f32 %v554, %v650
        %v683 = vmul.f32 %v555, %v651
        %v684 = vmul.f32 %v556, %v652
        %v685 = vmul.f32 %v557, %v653
        %v686 = vmul.f32 %v558, %v654
        %v687 = vpack.c.bf16 %v657, %v655
        %v688 = vpack.c.bf16 %v658, %v656
        %v689 = vpack.c.bf16 %v661, %v659
        %v690 = vpack.c.bf16 %v662, %v660
        %v691 = vpack.c.bf16 %v665, %v663
        %v692 = vpack.c.bf16 %v666, %v664
        %v693 = vpack.c.bf16 %v669, %v667
        %v694 = vpack.c.bf16 %v670, %v668
        %v695 = vpack.c.bf16 %v673, %v671
        %v696 = vpack.c.bf16 %v674, %v672
        %v697 = vpack.c.bf16 %v677, %v675
        %v698 = vpack.c.bf16 %v678, %v676
        %v699 = vpack.c.bf16 %v681, %v679
        %v700 = vpack.c.bf16 %v682, %v680
        %v701 = vpack.c.bf16 %v685, %v683
        %v702 = vpack.c.bf16 %v686, %v684
        %v703 = vld [vmem:[#allocation7] sm:$0xf]
        %v704 = vld [vmem:[#allocation7 + $0x4] sm:$0xf]
        %v705 = vld [vmem:[#allocation7 + $0x8] sm:$0xf]
        %v706 = vld [vmem:[#allocation7 + $0xc] sm:$0xf]
        %v707 = vld [vmem:[#allocation7 + $0x10] sm:$0xf]
        %v708 = vld [vmem:[#allocation7 + $0x14] sm:$0xf]
        %v709 = vld [vmem:[#allocation7 + $0x18] sm:$0xf]
        %v710 = vld [vmem:[#allocation7 + $0x1c] sm:$0xf]
        %v711 = vld [vmem:[#allocation7 + $0x20] sm:$0xf]
        %v712 = vld [vmem:[#allocation7 + $0x24] sm:$0xf]
        %v713 = vld [vmem:[#allocation7 + $0x28] sm:$0xf]
        %v714 = vld [vmem:[#allocation7 + $0x2c] sm:$0xf]
        %v715 = vld [vmem:[#allocation7 + $0x30] sm:$0xf]
        %v716 = vld [vmem:[#allocation7 + $0x34] sm:$0xf]
        %v717 = vld [vmem:[#allocation7 + $0x38] sm:$0xf]
        %v718 = vld [vmem:[#allocation7 + $0x3c] sm:$0xf]
        %v719 = vld [vmem:[#allocation7 + $0x40] sm:$0xf]
        %v720 = vld [vmem:[#allocation7 + $0x44] sm:$0xf]
        %v721 = vld [vmem:[#allocation7 + $0x48] sm:$0xf]
        %v722 = vld [vmem:[#allocation7 + $0x4c] sm:$0xf]
        %v723 = vld [vmem:[#allocation7 + $0x50] sm:$0xf]
        %v724 = vld [vmem:[#allocation7 + $0x54] sm:$0xf]
        %v725 = vld [vmem:[#allocation7 + $0x58] sm:$0xf]
        %v726 = vld [vmem:[#allocation7 + $0x5c] sm:$0xf]
        %v727 = vld [vmem:[#allocation7 + $0x60] sm:$0xf]
        %v728 = vld [vmem:[#allocation7 + $0x64] sm:$0xf]
        %v729 = vld [vmem:[#allocation7 + $0x68] sm:$0xf]
        %v730 = vld [vmem:[#allocation7 + $0x6c] sm:$0xf]
        %v731 = vld [vmem:[#allocation7 + $0x70] sm:$0xf]
        %v732 = vld [vmem:[#allocation7 + $0x74] sm:$0xf]
        %v733 = vld [vmem:[#allocation7 + $0x78] sm:$0xf]
        %v734 = vld [vmem:[#allocation7 + $0x7c] sm:$0xf]
        %v767 = vunpack.c.l.b16 %v703
        %v768 = vunpack.c.l.b16 %v704
        %v769 = vunpack.c.l.b16 %v705
        %v770 = vunpack.c.l.b16 %v706
        %v771 = vunpack.c.l.b16 %v707
        %v772 = vunpack.c.l.b16 %v708
        %v773 = vunpack.c.l.b16 %v709
        %v774 = vunpack.c.l.b16 %v710
        %v775 = vunpack.c.l.b16 %v711
        %v776 = vunpack.c.l.b16 %v712
        %v777 = vunpack.c.l.b16 %v713
        %v778 = vunpack.c.l.b16 %v714
        %v779 = vunpack.c.l.b16 %v715
        %v780 = vunpack.c.l.b16 %v716
        %v781 = vunpack.c.l.b16 %v717
        %v782 = vunpack.c.l.b16 %v718
        %v783 = vunpack.c.l.b16 %v719
        %v784 = vunpack.c.l.b16 %v720
        %v785 = vunpack.c.l.b16 %v721
        %v786 = vunpack.c.l.b16 %v722
        %v787 = vunpack.c.l.b16 %v723
        %v788 = vunpack.c.l.b16 %v724
        %v789 = vunpack.c.l.b16 %v725
        %v790 = vunpack.c.l.b16 %v726
        %v791 = vunpack.c.l.b16 %v727
        %v792 = vunpack.c.l.b16 %v728
        %v793 = vunpack.c.l.b16 %v729
        %v794 = vunpack.c.l.b16 %v730
        %v795 = vunpack.c.l.b16 %v731
        %v796 = vunpack.c.l.b16 %v732
        %v797 = vunpack.c.l.b16 %v733
        %v798 = vunpack.c.l.b16 %v734
        %v799 = vpack.c.b16 %v768, %v767
        %v800 = vpack.c.b16 %v770, %v769
        %v801 = vpack.c.b16 %v772, %v771
        %v802 = vpack.c.b16 %v774, %v773
        %v803 = vpack.c.b16 %v776, %v775
        %v804 = vpack.c.b16 %v778, %v777
        %v805 = vpack.c.b16 %v780, %v779
        %v806 = vpack.c.b16 %v782, %v781
        %v807 = vpack.c.b16 %v784, %v783
        %v808 = vpack.c.b16 %v786, %v785
        %v809 = vpack.c.b16 %v788, %v787
        %v810 = vpack.c.b16 %v790, %v789
        %v811 = vpack.c.b16 %v792, %v791
        %v812 = vpack.c.b16 %v794, %v793
        %v813 = vpack.c.b16 %v796, %v795
        %v814 = vpack.c.b16 %v798, %v797
        %831 = vmatprep.subr.bf16.mxu0 0
        %832 = vmatpush1.bf16.msra.mxu0 %v806
        %833 = vmatprep.subr.bf16.mxu0 0
        %834 = vmatpush1.bf16.msra.mxu0 %v805
        %835 = vmatprep.subr.bf16.mxu0 0
        %836 = vmatpush1.bf16.msra.mxu0 %v804
        %837 = vmatprep.subr.bf16.mxu0 0
        %838 = vmatpush1.bf16.msra.mxu0 %v803
        %839 = vmatprep.subr.bf16.mxu0 0
        %840 = vmatpush1.bf16.msra.mxu0 %v802
        %841 = vmatprep.subr.bf16.mxu0 0
        %842 = vmatpush1.bf16.msra.mxu0 %v801
        %843 = vmatprep.subr.bf16.mxu0 0
        %844 = vmatpush1.bf16.msra.mxu0 %v800
        %845 = vmatprep.subr.bf16.mxu0 0
        %846 = vmatpush1.bf16.msra.mxu0 %v799
        %847 = vmatprep.subr.bf16.mxu0 0
        %848 = vmatpush2.bf16.msra.mxu0 %v814
        %849 = vmatprep.subr.bf16.mxu0 0
        %850 = vmatpush2.bf16.msra.mxu0 %v813
        %851 = vmatprep.subr.bf16.mxu0 0
        %852 = vmatpush2.bf16.msra.mxu0 %v812
        %853 = vmatprep.subr.bf16.mxu0 0
        %854 = vmatpush2.bf16.msra.mxu0 %v811
        %855 = vmatprep.subr.bf16.mxu0 0
        %856 = vmatpush2.bf16.msra.mxu0 %v810
        %857 = vmatprep.subr.bf16.mxu0 0
        %858 = vmatpush2.bf16.msra.mxu0 %v809
        %859 = vmatprep.subr.bf16.mxu0 0
        %860 = vmatpush2.bf16.msra.mxu0 %v808
        %861 = vmatprep.subr.bf16.mxu0 0
        %862 = vmatpush2.bf16.msra.mxu0 %v807
        %863 = vmatprep.mubr.bf16.mxu0 %v688
        %864 = vmatmul.mubr.bf16.gmra.mxu0 %v687
        %v865 = vpop.f32.mrf.mxu0
        %v866 = vadd.f32 0.0, %v865
        %v867 = vpop.f32.mrf.mxu0
        %v868 = vpop.f32.mrf.mxu0
        %v869 = vadd.f32 0.0, %v868
        %v870 = vpop.f32.mrf.mxu0
        %871 = vmatprep.mubr.bf16.mxu0 %v690
        %872 = vmatmul.mubr.bf16.gmra.mxu0 %v689
        %v873 = vpop.f32.mrf.mxu0
        %v874 = vadd.f32 0.0, %v873
        %v875 = vpop.f32.mrf.mxu0
        %v876 = vpop.f32.mrf.mxu0
        %v877 = vadd.f32 0.0, %v876
        %v878 = vpop.f32.mrf.mxu0
        %879 = vmatprep.mubr.bf16.mxu0 %v692
        %880 = vmatmul.mubr.bf16.gmra.mxu0 %v691
        %v881 = vpop.f32.mrf.mxu0
        %v882 = vadd.f32 0.0, %v881
        %v883 = vpop.f32.mrf.mxu0
        %v884 = vpop.f32.mrf.mxu0
        %v885 = vadd.f32 0.0, %v884
        %v886 = vpop.f32.mrf.mxu0
        %887 = vmatprep.mubr.bf16.mxu0 %v694
        %888 = vmatmul.mubr.bf16.gmra.mxu0 %v693
        %v889 = vpop.f32.mrf.mxu0
        %v890 = vadd.f32 0.0, %v889
        %v891 = vpop.f32.mrf.mxu0
        %v892 = vpop.f32.mrf.mxu0
        %v893 = vadd.f32 0.0, %v892
        %v894 = vpop.f32.mrf.mxu0
        %895 = vmatprep.mubr.bf16.mxu0 %v696
        %896 = vmatmul.mubr.bf16.gmra.mxu0 %v695
        %v897 = vpop.f32.mrf.mxu0
        %v898 = vadd.f32 0.0, %v897
        %v899 = vpop.f32.mrf.mxu0
        %v900 = vpop.f32.mrf.mxu0
        %v901 = vadd.f32 0.0, %v900
        %v902 = vpop.f32.mrf.mxu0
        %903 = vmatprep.mubr.bf16.mxu0 %v698
        %904 = vmatmul.mubr.bf16.gmra.mxu0 %v697
        %v905 = vpop.f32.mrf.mxu0
        %v906 = vadd.f32 0.0, %v905
        %v907 = vpop.f32.mrf.mxu0
        %v908 = vpop.f32.mrf.mxu0
        %v909 = vadd.f32 0.0, %v908
        %v910 = vpop.f32.mrf.mxu0
        %911 = vmatprep.mubr.bf16.mxu0 %v700
        %912 = vmatmul.mubr.bf16.gmra.mxu0 %v699
        %v913 = vpop.f32.mrf.mxu0
        %v914 = vadd.f32 0.0, %v913
        %v915 = vpop.f32.mrf.mxu0
        %v916 = vpop.f32.mrf.mxu0
        %v917 = vadd.f32 0.0, %v916
        %v918 = vpop.f32.mrf.mxu0
        %919 = vmatprep.mubr.bf16.mxu0 %v702
        %920 = vmatmul.mubr.bf16.gmra.mxu0 %v701
        %v921 = vpop.f32.mrf.mxu0
        %v922 = vadd.f32 0.0, %v921
        %v923 = vpop.f32.mrf.mxu0
        %v924 = vpop.f32.mrf.mxu0
        %v925 = vadd.f32 0.0, %v924
        %v926 = vpop.f32.mrf.mxu0
        %927 = vdwg.mxu0
        %v928 = vadd.f32 %v304, %v866
        %v929 = vadd.f32 %v304, %v869
        %v930 = vadd.f32 %v304, %v874
        %v931 = vadd.f32 %v304, %v877
        %v932 = vadd.f32 %v304, %v882
        %v933 = vadd.f32 %v304, %v885
        %v934 = vadd.f32 %v304, %v890
        %v935 = vadd.f32 %v304, %v893
        %v936 = vadd.f32 %v304, %v898
        %v937 = vadd.f32 %v304, %v901
        %v938 = vadd.f32 %v304, %v906
        %v939 = vadd.f32 %v304, %v909
        %v940 = vadd.f32 %v304, %v914
        %v941 = vadd.f32 %v304, %v917
        %v942 = vadd.f32 %v304, %v922
        %v943 = vadd.f32 %v304, %v925
        %v944 = vld [vmem:[#allocation5 + $0x8] sm:$0xff]
        %v945 = vld [vmem:[#allocation5 + $0x18] sm:$0xff]
        %v946 = vld [vmem:[#allocation5 + $0x28] sm:$0xff]
        %v947 = vld [vmem:[#allocation5 + $0x38] sm:$0xff]
        %v948 = vld [vmem:[#allocation5 + $0x48] sm:$0xff]
        %v949 = vld [vmem:[#allocation5 + $0x58] sm:$0xff]
        %v950 = vld [vmem:[#allocation5 + $0x68] sm:$0xff]
        %v951 = vld [vmem:[#allocation5 + $0x78] sm:$0xff]
        %v952 = vld [vmem:[#allocation5 + $0x88] sm:$0xff]
        %v953 = vld [vmem:[#allocation5 + $0x98] sm:$0xff]
        %v954 = vld [vmem:[#allocation5 + $0xa8] sm:$0xff]
        %v955 = vld [vmem:[#allocation5 + $0xb8] sm:$0xff]
        %v956 = vld [vmem:[#allocation5 + $0xc8] sm:$0xff]
        %v957 = vld [vmem:[#allocation5 + $0xd8] sm:$0xff]
        %v958 = vld [vmem:[#allocation5 + $0xe8] sm:$0xff]
        %v959 = vld [vmem:[#allocation5 + $0xf8] sm:$0xff]
        %v960 = vld [vmem:[%s2 + $0x2] sm:$0x3]
        %v962 = vlaneseq
        %v963 = vshrl.u32 %v962, 7
        %v964 = vsub.s32 0, %v963
        %v965 = vrot.slane %v960, %v964
        %v966 = vlaneseq
        %v967 = vshrl.u32 %v966, 7
        %v968 = vsub.s32 1, %v967
        %v969 = vrot.slane %v960, %v968
        %v988 = vunpack.c.l.b16 %v944
        %v989 = vunpack.c.h.b16 %v944
        %v990 = vunpack.c.l.b16 %v945
        %v991 = vunpack.c.h.b16 %v945
        %v992 = vunpack.c.l.b16 %v946
        %v993 = vunpack.c.h.b16 %v946
        %v994 = vunpack.c.l.b16 %v947
        %v995 = vunpack.c.h.b16 %v947
        %v996 = vunpack.c.l.b16 %v948
        %v997 = vunpack.c.h.b16 %v948
        %v998 = vunpack.c.l.b16 %v949
        %v999 = vunpack.c.h.b16 %v949
        %v1000 = vunpack.c.l.b16 %v950
        %v1001 = vunpack.c.h.b16 %v950
        %v1002 = vunpack.c.l.b16 %v951
        %v1003 = vunpack.c.h.b16 %v951
        %v1004 = vunpack.c.l.b16 %v952
        %v1005 = vunpack.c.h.b16 %v952
        %v1006 = vunpack.c.l.b16 %v953
        %v1007 = vunpack.c.h.b16 %v953
        %v1008 = vunpack.c.l.b16 %v954
        %v1009 = vunpack.c.h.b16 %v954
        %v1010 = vunpack.c.l.b16 %v955
        %v1011 = vunpack.c.h.b16 %v955
        %v1012 = vunpack.c.l.b16 %v956
        %v1013 = vunpack.c.h.b16 %v956
        %v1014 = vunpack.c.l.b16 %v957
        %v1015 = vunpack.c.h.b16 %v957
        %v1016 = vunpack.c.l.b16 %v958
        %v1017 = vunpack.c.h.b16 %v958
        %v1018 = vunpack.c.l.b16 %v959
        %v1019 = vunpack.c.h.b16 %v959
        %v1020 = vpack.c.b16 %v990, %v988
        %v1021 = vpack.c.b16 %v991, %v989
        %v1022 = vpack.c.b16 %v994, %v992
        %v1023 = vpack.c.b16 %v995, %v993
        %v1024 = vpack.c.b16 %v998, %v996
        %v1025 = vpack.c.b16 %v999, %v997
        %v1026 = vpack.c.b16 %v1002, %v1000
        %v1027 = vpack.c.b16 %v1003, %v1001
        %v1028 = vpack.c.b16 %v1006, %v1004
        %v1029 = vpack.c.b16 %v1007, %v1005
        %v1030 = vpack.c.b16 %v1010, %v1008
        %v1031 = vpack.c.b16 %v1011, %v1009
        %v1032 = vpack.c.b16 %v1014, %v1012
        %v1033 = vpack.c.b16 %v1015, %v1013
        %v1034 = vpack.c.b16 %v1018, %v1016
        %v1035 = vpack.c.b16 %v1019, %v1017
        %1052 = vmatprep.subr.bf16.mxu0 %v1035
        %1053 = vmatpush1.bf16.msra.mxu0 %v1034
        %1054 = vmatprep.subr.bf16.mxu0 %v1033
        %1055 = vmatpush1.bf16.msra.mxu0 %v1032
        %1056 = vmatprep.subr.bf16.mxu0 %v1031
        %1057 = vmatpush1.bf16.msra.mxu0 %v1030
        %1058 = vmatprep.subr.bf16.mxu0 %v1029
        %1059 = vmatpush1.bf16.msra.mxu0 %v1028
        %1060 = vmatprep.subr.bf16.mxu0 %v1027
        %1061 = vmatpush1.bf16.msra.mxu0 %v1026
        %1062 = vmatprep.subr.bf16.mxu0 %v1025
        %1063 = vmatpush1.bf16.msra.mxu0 %v1024
        %1064 = vmatprep.subr.bf16.mxu0 %v1023
        %1065 = vmatpush1.bf16.msra.mxu0 %v1022
        %1066 = vmatprep.subr.bf16.mxu0 %v1021
        %1067 = vmatpush1.bf16.msra.mxu0 %v1020
        %1068 = vmatprep.subr.bf16.mxu0 0
        %1069 = vmatpush2.bf16.msra.mxu0 0
        %1070 = vmatprep.subr.bf16.mxu0 0
        %1071 = vmatpush2.bf16.msra.mxu0 0
        %1072 = vmatprep.subr.bf16.mxu0 0
        %1073 = vmatpush2.bf16.msra.mxu0 0
        %1074 = vmatprep.subr.bf16.mxu0 0
        %1075 = vmatpush2.bf16.msra.mxu0 0
        %1076 = vmatprep.subr.bf16.mxu0 0
        %1077 = vmatpush2.bf16.msra.mxu0 0
        %1078 = vmatprep.subr.bf16.mxu0 0
        %1079 = vmatpush2.bf16.msra.mxu0 0
        %1080 = vmatprep.subr.bf16.mxu0 0
        %1081 = vmatpush2.bf16.msra.mxu0 0
        %1082 = vmatprep.subr.bf16.mxu0 0
        %1083 = vmatpush2.bf16.msra.mxu0 0
        %1084 = vmatprep.mubr.bf16.mxu0 0
        %1085 = vmatmul.mubr.bf16.gmra.mxu0 %v291
        %v1086 = vpop.f32.mrf.mxu0
        %v1087 = vadd.f32 %v965, %v1086
        %v1088 = vpop.f32.mrf.mxu0
        %v1089 = vadd.f32 %v969, %v1088
        %v1090 = vpop.f32.mrf.mxu0
        %v1091 = vadd.f32 %v965, %v1090
        %v1092 = vpop.f32.mrf.mxu0
        %v1093 = vadd.f32 %v969, %v1092
        %1094 = vmatprep.mubr.bf16.mxu0 0
        %1095 = vmatmul.mubr.bf16.gmra.mxu0 %v292
        %v1096 = vpop.f32.mrf.mxu0
        %v1097 = vadd.f32 %v965, %v1096
        %v1098 = vpop.f32.mrf.mxu0
        %v1099 = vadd.f32 %v969, %v1098
        %v1100 = vpop.f32.mrf.mxu0
        %v1101 = vadd.f32 %v965, %v1100
        %v1102 = vpop.f32.mrf.mxu0
        %v1103 = vadd.f32 %v969, %v1102
        %1104 = vmatprep.mubr.bf16.mxu0 0
        %1105 = vmatmul.mubr.bf16.gmra.mxu0 %v293
        %v1106 = vpop.f32.mrf.mxu0
        %v1107 = vadd.f32 %v965, %v1106
        %v1108 = vpop.f32.mrf.mxu0
        %v1109 = vadd.f32 %v969, %v1108
        %v1110 = vpop.f32.mrf.mxu0
        %v1111 = vadd.f32 %v965, %v1110
        %v1112 = vpop.f32.mrf.mxu0
        %v1113 = vadd.f32 %v969, %v1112
        %1114 = vmatprep.mubr.bf16.mxu0 0
        %1115 = vmatmul.mubr.bf16.gmra.mxu0 %v294
        %v1116 = vpop.f32.mrf.mxu0
        %v1117 = vadd.f32 %v965, %v1116
        %v1118 = vpop.f32.mrf.mxu0
        %v1119 = vadd.f32 %v969, %v1118
        %v1120 = vpop.f32.mrf.mxu0
        %v1121 = vadd.f32 %v965, %v1120
        %v1122 = vpop.f32.mrf.mxu0
        %v1123 = vadd.f32 %v969, %v1122
        %1124 = vmatprep.mubr.bf16.mxu0 0
        %1125 = vmatmul.mubr.bf16.gmra.mxu0 %v295
        %v1126 = vpop.f32.mrf.mxu0
        %v1127 = vadd.f32 %v965, %v1126
        %v1128 = vpop.f32.mrf.mxu0
        %v1129 = vadd.f32 %v969, %v1128
        %v1130 = vpop.f32.mrf.mxu0
        %v1131 = vadd.f32 %v965, %v1130
        %v1132 = vpop.f32.mrf.mxu0
        %v1133 = vadd.f32 %v969, %v1132
        %1134 = vmatprep.mubr.bf16.mxu0 0
        %1135 = vmatmul.mubr.bf16.gmra.mxu0 %v296
        %v1136 = vpop.f32.mrf.mxu0
        %v1137 = vadd.f32 %v965, %v1136
        %v1138 = vpop.f32.mrf.mxu0
        %v1139 = vadd.f32 %v969, %v1138
        %v1140 = vpop.f32.mrf.mxu0
        %v1141 = vadd.f32 %v965, %v1140
        %v1142 = vpop.f32.mrf.mxu0
        %v1143 = vadd.f32 %v969, %v1142
        %1144 = vmatprep.mubr.bf16.mxu0 0
        %1145 = vmatmul.mubr.bf16.gmra.mxu0 %v297
        %v1146 = vpop.f32.mrf.mxu0
        %v1147 = vadd.f32 %v965, %v1146
        %v1148 = vpop.f32.mrf.mxu0
        %v1149 = vadd.f32 %v969, %v1148
        %v1150 = vpop.f32.mrf.mxu0
        %v1151 = vadd.f32 %v965, %v1150
        %v1152 = vpop.f32.mrf.mxu0
        %v1153 = vadd.f32 %v969, %v1152
        %1154 = vmatprep.mubr.bf16.mxu0 0
        %1155 = vmatmul.mubr.bf16.gmra.mxu0 %v298
        %v1156 = vpop.f32.mrf.mxu0
        %v1157 = vadd.f32 %v965, %v1156
        %v1158 = vpop.f32.mrf.mxu0
        %v1159 = vadd.f32 %v969, %v1158
        %v1160 = vpop.f32.mrf.mxu0
        %v1161 = vadd.f32 %v965, %v1160
        %v1162 = vpop.f32.mrf.mxu0
        %v1163 = vadd.f32 %v969, %v1162
        %1164 = vdwg.mxu0
        %v1165 = vmul.f32 %v1087, 0.5
        %v1166 = vmul.f32 %v1089, 0.5
        %v1167 = vmul.f32 %v1091, 0.5
        %v1168 = vmul.f32 %v1093, 0.5
        %v1169 = vmul.f32 %v1097, 0.5
        %v1170 = vmul.f32 %v1099, 0.5
        %v1171 = vmul.f32 %v1101, 0.5
        %v1172 = vmul.f32 %v1103, 0.5
        %v1173 = vmul.f32 %v1107, 0.5
        %v1174 = vmul.f32 %v1109, 0.5
        %v1175 = vmul.f32 %v1111, 0.5
        %v1176 = vmul.f32 %v1113, 0.5
        %v1177 = vmul.f32 %v1117, 0.5
        %v1178 = vmul.f32 %v1119, 0.5
        %v1179 = vmul.f32 %v1121, 0.5
        %v1180 = vmul.f32 %v1123, 0.5
        %v1181 = vmul.f32 %v1127, 0.5
        %v1182 = vmul.f32 %v1129, 0.5
        %v1183 = vmul.f32 %v1131, 0.5
        %v1184 = vmul.f32 %v1133, 0.5
        %v1185 = vmul.f32 %v1137, 0.5
        %v1186 = vmul.f32 %v1139, 0.5
        %v1187 = vmul.f32 %v1141, 0.5
        %v1188 = vmul.f32 %v1143, 0.5
        %v1189 = vmul.f32 %v1147, 0.5
        %v1190 = vmul.f32 %v1149, 0.5
        %v1191 = vmul.f32 %v1151, 0.5
        %v1192 = vmul.f32 %v1153, 0.5
        %v1193 = vmul.f32 %v1157, 0.5
        %v1194 = vmul.f32 %v1159, 0.5
        %v1195 = vmul.f32 %v1161, 0.5
        %v1196 = vmul.f32 %v1163, 0.5
        %v1197 = vmul.f32 %v1087, 0.70710677
        %v1198 = vmul.f32 %v1089, 0.70710677
        %v1199 = vmul.f32 %v1091, 0.70710677
        %v1200 = vmul.f32 %v1093, 0.70710677
        %v1201 = vmul.f32 %v1097, 0.70710677
        %v1202 = vmul.f32 %v1099, 0.70710677
        %v1203 = vmul.f32 %v1101, 0.70710677
        %v1204 = vmul.f32 %v1103, 0.70710677
        %v1205 = vmul.f32 %v1107, 0.70710677
        %v1206 = vmul.f32 %v1109, 0.70710677
        %v1207 = vmul.f32 %v1111, 0.70710677
        %v1208 = vmul.f32 %v1113, 0.70710677
        %v1209 = vmul.f32 %v1117, 0.70710677
        %v1210 = vmul.f32 %v1119, 0.70710677
        %v1211 = vmul.f32 %v1121, 0.70710677
        %v1212 = vmul.f32 %v1123, 0.70710677
        %v1213 = vmul.f32 %v1127, 0.70710677
        %v1214 = vmul.f32 %v1129, 0.70710677
        %v1215 = vmul.f32 %v1131, 0.70710677
        %v1216 = vmul.f32 %v1133, 0.70710677
        %v1217 = vmul.f32 %v1137, 0.70710677
        %v1218 = vmul.f32 %v1139, 0.70710677
        %v1219 = vmul.f32 %v1141, 0.70710677
        %v1220 = vmul.f32 %v1143, 0.70710677
        %v1221 = vmul.f32 %v1147, 0.70710677
        %v1222 = vmul.f32 %v1149, 0.70710677
        %v1223 = vmul.f32 %v1151, 0.70710677
        %v1224 = vmul.f32 %v1153, 0.70710677
        %v1225 = vmul.f32 %v1157, 0.70710677
        %v1226 = vmul.f32 %v1159, 0.70710677
        %v1227 = vmul.f32 %v1161, 0.70710677
        %v1228 = vmul.f32 %v1163, 0.70710677
        %v1229 = verf.f32.pop %v1197
        %v1230 = verf.f32.pop %v1198
        %v1231 = verf.f32.pop %v1199
        %v1232 = verf.f32.pop %v1200
        %v1233 = verf.f32.pop %v1201
        %v1234 = verf.f32.pop %v1202
        %v1235 = verf.f32.pop %v1203
        %v1236 = verf.f32.pop %v1204
        %v1237 = verf.f32.pop %v1205
        %v1238 = verf.f32.pop %v1206
        %v1239 = verf.f32.pop %v1207
        %v1240 = verf.f32.pop %v1208
        %v1241 = verf.f32.pop %v1209
        %v1242 = verf.f32.pop %v1210
        %v1243 = verf.f32.pop %v1211
        %v1244 = verf.f32.pop %v1212
        %v1245 = verf.f32.pop %v1213
        %v1246 = verf.f32.pop %v1214
        %v1247 = verf.f32.pop %v1215
        %v1248 = verf.f32.pop %v1216
        %v1249 = verf.f32.pop %v1217
        %v1250 = verf.f32.pop %v1218
        %v1251 = verf.f32.pop %v1219
        %v1252 = verf.f32.pop %v1220
        %v1253 = verf.f32.pop %v1221
        %v1254 = verf.f32.pop %v1222
        %v1255 = verf.f32.pop %v1223
        %v1256 = verf.f32.pop %v1224
        %v1257 = verf.f32.pop %v1225
        %v1258 = verf.f32.pop %v1226
        %v1259 = verf.f32.pop %v1227
        %v1260 = verf.f32.pop %v1228
        %v1261 = vadd.f32 %v1229, 1.0
        %v1262 = vadd.f32 %v1230, 1.0
        %v1263 = vadd.f32 %v1231, 1.0
        %v1264 = vadd.f32 %v1232, 1.0
        %v1265 = vadd.f32 %v1233, 1.0
        %v1266 = vadd.f32 %v1234, 1.0
        %v1267 = vadd.f32 %v1235, 1.0
        %v1268 = vadd.f32 %v1236, 1.0
        %v1269 = vadd.f32 %v1237, 1.0
        %v1270 = vadd.f32 %v1238, 1.0
        %v1271 = vadd.f32 %v1239, 1.0
        %v1272 = vadd.f32 %v1240, 1.0
        %v1273 = vadd.f32 %v1241, 1.0
        %v1274 = vadd.f32 %v1242, 1.0
        %v1275 = vadd.f32 %v1243, 1.0
        %v1276 = vadd.f32 %v1244, 1.0
        %v1277 = vadd.f32 %v1245, 1.0
        %v1278 = vadd.f32 %v1246, 1.0
        %v1279 = vadd.f32 %v1247, 1.0
        %v1280 = vadd.f32 %v1248, 1.0
        %v1281 = vadd.f32 %v1249, 1.0
        %v1282 = vadd.f32 %v1250, 1.0
        %v1283 = vadd.f32 %v1251, 1.0
        %v1284 = vadd.f32 %v1252, 1.0
        %v1285 = vadd.f32 %v1253, 1.0
        %v1286 = vadd.f32 %v1254, 1.0
        %v1287 = vadd.f32 %v1255, 1.0
        %v1288 = vadd.f32 %v1256, 1.0
        %v1289 = vadd.f32 %v1257, 1.0
        %v1290 = vadd.f32 %v1258, 1.0
        %v1291 = vadd.f32 %v1259, 1.0
        %v1292 = vadd.f32 %v1260, 1.0
        %v1293 = vmul.f32 %v1165, %v1261
        %v1294 = vmul.f32 %v1166, %v1262
        %v1295 = vmul.f32 %v1167, %v1263
        %v1296 = vmul.f32 %v1168, %v1264
        %v1297 = vmul.f32 %v1169, %v1265
        %v1298 = vmul.f32 %v1170, %v1266
        %v1299 = vmul.f32 %v1171, %v1267
        %v1300 = vmul.f32 %v1172, %v1268
        %v1301 = vmul.f32 %v1173, %v1269
        %v1302 = vmul.f32 %v1174, %v1270
        %v1303 = vmul.f32 %v1175, %v1271
        %v1304 = vmul.f32 %v1176, %v1272
        %v1305 = vmul.f32 %v1177, %v1273
        %v1306 = vmul.f32 %v1178, %v1274
        %v1307 = vmul.f32 %v1179, %v1275
        %v1308 = vmul.f32 %v1180, %v1276
        %v1309 = vmul.f32 %v1181, %v1277
        %v1310 = vmul.f32 %v1182, %v1278
        %v1311 = vmul.f32 %v1183, %v1279
        %v1312 = vmul.f32 %v1184, %v1280
        %v1313 = vmul.f32 %v1185, %v1281
        %v1314 = vmul.f32 %v1186, %v1282
        %v1315 = vmul.f32 %v1187, %v1283
        %v1316 = vmul.f32 %v1188, %v1284
        %v1317 = vmul.f32 %v1189, %v1285
        %v1318 = vmul.f32 %v1190, %v1286
        %v1319 = vmul.f32 %v1191, %v1287
        %v1320 = vmul.f32 %v1192, %v1288
        %v1321 = vmul.f32 %v1193, %v1289
        %v1322 = vmul.f32 %v1194, %v1290
        %v1323 = vmul.f32 %v1195, %v1291
        %v1324 = vmul.f32 %v1196, %v1292
        %v1325 = vpack.c.bf16 %v1295, %v1293
        %v1326 = vpack.c.bf16 %v1296, %v1294
        %v1327 = vpack.c.bf16 %v1299, %v1297
        %v1328 = vpack.c.bf16 %v1300, %v1298
        %v1329 = vpack.c.bf16 %v1303, %v1301
        %v1330 = vpack.c.bf16 %v1304, %v1302
        %v1331 = vpack.c.bf16 %v1307, %v1305
        %v1332 = vpack.c.bf16 %v1308, %v1306
        %v1333 = vpack.c.bf16 %v1311, %v1309
        %v1334 = vpack.c.bf16 %v1312, %v1310
        %v1335 = vpack.c.bf16 %v1315, %v1313
        %v1336 = vpack.c.bf16 %v1316, %v1314
        %v1337 = vpack.c.bf16 %v1319, %v1317
        %v1338 = vpack.c.bf16 %v1320, %v1318
        %v1339 = vpack.c.bf16 %v1323, %v1321
        %v1340 = vpack.c.bf16 %v1324, %v1322
        %v1341 = vld [vmem:[#allocation7 + $0x80] sm:$0xf]
        %v1342 = vld [vmem:[#allocation7 + $0x84] sm:$0xf]
        %v1343 = vld [vmem:[#allocation7 + $0x88] sm:$0xf]
        %v1344 = vld [vmem:[#allocation7 + $0x8c] sm:$0xf]
        %v1345 = vld [vmem:[#allocation7 + $0x90] sm:$0xf]
        %v1346 = vld [vmem:[#allocation7 + $0x94] sm:$0xf]
        %v1347 = vld [vmem:[#allocation7 + $0x98] sm:$0xf]
        %v1348 = vld [vmem:[#allocation7 + $0x9c] sm:$0xf]
        %v1349 = vld [vmem:[#allocation7 + $0xa0] sm:$0xf]
        %v1350 = vld [vmem:[#allocation7 + $0xa4] sm:$0xf]
        %v1351 = vld [vmem:[#allocation7 + $0xa8] sm:$0xf]
        %v1352 = vld [vmem:[#allocation7 + $0xac] sm:$0xf]
        %v1353 = vld [vmem:[#allocation7 + $0xb0] sm:$0xf]
        %v1354 = vld [vmem:[#allocation7 + $0xb4] sm:$0xf]
        %v1355 = vld [vmem:[#allocation7 + $0xb8] sm:$0xf]
        %v1356 = vld [vmem:[#allocation7 + $0xbc] sm:$0xf]
        %v1357 = vld [vmem:[#allocation7 + $0xc0] sm:$0xf]
        %v1358 = vld [vmem:[#allocation7 + $0xc4] sm:$0xf]
        %v1359 = vld [vmem:[#allocation7 + $0xc8] sm:$0xf]
        %v1360 = vld [vmem:[#allocation7 + $0xcc] sm:$0xf]
        %v1361 = vld [vmem:[#allocation7 + $0xd0] sm:$0xf]
        %v1362 = vld [vmem:[#allocation7 + $0xd4] sm:$0xf]
        %v1363 = vld [vmem:[#allocation7 + $0xd8] sm:$0xf]
        %v1364 = vld [vmem:[#allocation7 + $0xdc] sm:$0xf]
        %v1365 = vld [vmem:[#allocation7 + $0xe0] sm:$0xf]
        %v1366 = vld [vmem:[#allocation7 + $0xe4] sm:$0xf]
        %v1367 = vld [vmem:[#allocation7 + $0xe8] sm:$0xf]
        %v1368 = vld [vmem:[#allocation7 + $0xec] sm:$0xf]
        %v1369 = vld [vmem:[#allocation7 + $0xf0] sm:$0xf]
        %v1370 = vld [vmem:[#allocation7 + $0xf4] sm:$0xf]
        %v1371 = vld [vmem:[#allocation7 + $0xf8] sm:$0xf]
        %v1372 = vld [vmem:[#allocation7 + $0xfc] sm:$0xf]
        %v1405 = vunpack.c.l.b16 %v1341
        %v1406 = vunpack.c.l.b16 %v1342
        %v1407 = vunpack.c.l.b16 %v1343
        %v1408 = vunpack.c.l.b16 %v1344
        %v1409 = vunpack.c.l.b16 %v1345
        %v1410 = vunpack.c.l.b16 %v1346
        %v1411 = vunpack.c.l.b16 %v1347
        %v1412 = vunpack.c.l.b16 %v1348
        %v1413 = vunpack.c.l.b16 %v1349
        %v1414 = vunpack.c.l.b16 %v1350
        %v1415 = vunpack.c.l.b16 %v1351
        %v1416 = vunpack.c.l.b16 %v1352
        %v1417 = vunpack.c.l.b16 %v1353
        %v1418 = vunpack.c.l.b16 %v1354
        %v1419 = vunpack.c.l.b16 %v1355
        %v1420 = vunpack.c.l.b16 %v1356
        %v1421 = vunpack.c.l.b16 %v1357
        %v1422 = vunpack.c.l.b16 %v1358
        %v1423 = vunpack.c.l.b16 %v1359
        %v1424 = vunpack.c.l.b16 %v1360
        %v1425 = vunpack.c.l.b16 %v1361
        %v1426 = vunpack.c.l.b16 %v1362
        %v1427 = vunpack.c.l.b16 %v1363
        %v1428 = vunpack.c.l.b16 %v1364
        %v1429 = vunpack.c.l.b16 %v1365
        %v1430 = vunpack.c.l.b16 %v1366
        %v1431 = vunpack.c.l.b16 %v1367
        %v1432 = vunpack.c.l.b16 %v1368
        %v1433 = vunpack.c.l.b16 %v1369
        %v1434 = vunpack.c.l.b16 %v1370
        %v1435 = vunpack.c.l.b16 %v1371
        %v1436 = vunpack.c.l.b16 %v1372
        %v1437 = vpack.c.b16 %v1406, %v1405
        %v1438 = vpack.c.b16 %v1408, %v1407
        %v1439 = vpack.c.b16 %v1410, %v1409
        %v1440 = vpack.c.b16 %v1412, %v1411
        %v1441 = vpack.c.b16 %v1414, %v1413
        %v1442 = vpack.c.b16 %v1416, %v1415
        %v1443 = vpack.c.b16 %v1418, %v1417
        %v1444 = vpack.c.b16 %v1420, %v1419
        %v1445 = vpack.c.b16 %v1422, %v1421
        %v1446 = vpack.c.b16 %v1424, %v1423
        %v1447 = vpack.c.b16 %v1426, %v1425
        %v1448 = vpack.c.b16 %v1428, %v1427
        %v1449 = vpack.c.b16 %v1430, %v1429
        %v1450 = vpack.c.b16 %v1432, %v1431
        %v1451 = vpack.c.b16 %v1434, %v1433
        %v1452 = vpack.c.b16 %v1436, %v1435
        %1469 = vmatprep.subr.bf16.mxu0 0
        %1470 = vmatpush1.bf16.msra.mxu0 %v1444
        %1471 = vmatprep.subr.bf16.mxu0 0
        %1472 = vmatpush1.bf16.msra.mxu0 %v1443
        %1473 = vmatprep.subr.bf16.mxu0 0
        %1474 = vmatpush1.bf16.msra.mxu0 %v1442
        %1475 = vmatprep.subr.bf16.mxu0 0
        %1476 = vmatpush1.bf16.msra.mxu0 %v1441
        %1477 = vmatprep.subr.bf16.mxu0 0
        %1478 = vmatpush1.bf16.msra.mxu0 %v1440
        %1479 = vmatprep.subr.bf16.mxu0 0
        %1480 = vmatpush1.bf16.msra.mxu0 %v1439
        %1481 = vmatprep.subr.bf16.mxu0 0
        %1482 = vmatpush1.bf16.msra.mxu0 %v1438
        %1483 = vmatprep.subr.bf16.mxu0 0
        %1484 = vmatpush1.bf16.msra.mxu0 %v1437
        %1485 = vmatprep.subr.bf16.mxu0 0
        %1486 = vmatpush2.bf16.msra.mxu0 %v1452
        %1487 = vmatprep.subr.bf16.mxu0 0
        %1488 = vmatpush2.bf16.msra.mxu0 %v1451
        %1489 = vmatprep.subr.bf16.mxu0 0
        %1490 = vmatpush2.bf16.msra.mxu0 %v1450
        %1491 = vmatprep.subr.bf16.mxu0 0
        %1492 = vmatpush2.bf16.msra.mxu0 %v1449
        %1493 = vmatprep.subr.bf16.mxu0 0
        %1494 = vmatpush2.bf16.msra.mxu0 %v1448
        %1495 = vmatprep.subr.bf16.mxu0 0
        %1496 = vmatpush2.bf16.msra.mxu0 %v1447
        %1497 = vmatprep.subr.bf16.mxu0 0
        %1498 = vmatpush2.bf16.msra.mxu0 %v1446
        %1499 = vmatprep.subr.bf16.mxu0 0
        %1500 = vmatpush2.bf16.msra.mxu0 %v1445
        %1501 = vmatprep.mubr.bf16.mxu0 %v1326
        %1502 = vmatmul.mubr.bf16.gmra.mxu0 %v1325
        %v1503 = vpop.f32.mrf.mxu0
        %v1504 = vadd.f32 0.0, %v1503
        %v1505 = vpop.f32.mrf.mxu0
        %v1506 = vpop.f32.mrf.mxu0
        %v1507 = vadd.f32 0.0, %v1506
        %v1508 = vpop.f32.mrf.mxu0
        %1509 = vmatprep.mubr.bf16.mxu0 %v1328
        %1510 = vmatmul.mubr.bf16.gmra.mxu0 %v1327
        %v1511 = vpop.f32.mrf.mxu0
        %v1512 = vadd.f32 0.0, %v1511
        %v1513 = vpop.f32.mrf.mxu0
        %v1514 = vpop.f32.mrf.mxu0
        %v1515 = vadd.f32 0.0, %v1514
        %v1516 = vpop.f32.mrf.mxu0
        %1517 = vmatprep.mubr.bf16.mxu0 %v1330
        %1518 = vmatmul.mubr.bf16.gmra.mxu0 %v1329
        %v1519 = vpop.f32.mrf.mxu0
        %v1520 = vadd.f32 0.0, %v1519
        %v1521 = vpop.f32.mrf.mxu0
        %v1522 = vpop.f32.mrf.mxu0
        %v1523 = vadd.f32 0.0, %v1522
        %v1524 = vpop.f32.mrf.mxu0
        %1525 = vmatprep.mubr.bf16.mxu0 %v1332
        %1526 = vmatmul.mubr.bf16.gmra.mxu0 %v1331
        %v1527 = vpop.f32.mrf.mxu0
        %v1528 = vadd.f32 0.0, %v1527
        %v1529 = vpop.f32.mrf.mxu0
        %v1530 = vpop.f32.mrf.mxu0
        %v1531 = vadd.f32 0.0, %v1530
        %v1532 = vpop.f32.mrf.mxu0
        %1533 = vmatprep.mubr.bf16.mxu0 %v1334
        %1534 = vmatmul.mubr.bf16.gmra.mxu0 %v1333
        %v1535 = vpop.f32.mrf.mxu0
        %v1536 = vadd.f32 0.0, %v1535
        %v1537 = vpop.f32.mrf.mxu0
        %v1538 = vpop.f32.mrf.mxu0
        %v1539 = vadd.f32 0.0, %v1538
        %v1540 = vpop.f32.mrf.mxu0
        %1541 = vmatprep.mubr.bf16.mxu0 %v1336
        %1542 = vmatmul.mubr.bf16.gmra.mxu0 %v1335
        %v1543 = vpop.f32.mrf.mxu0
        %v1544 = vadd.f32 0.0, %v1543
        %v1545 = vpop.f32.mrf.mxu0
        %v1546 = vpop.f32.mrf.mxu0
        %v1547 = vadd.f32 0.0, %v1546
        %v1548 = vpop.f32.mrf.mxu0
        %1549 = vmatprep.mubr.bf16.mxu0 %v1338
        %1550 = vmatmul.mubr.bf16.gmra.mxu0 %v1337
        %v1551 = vpop.f32.mrf.mxu0
        %v1552 = vadd.f32 0.0, %v1551
        %v1553 = vpop.f32.mrf.mxu0
        %v1554 = vpop.f32.mrf.mxu0
        %v1555 = vadd.f32 0.0, %v1554
        %v1556 = vpop.f32.mrf.mxu0
        %1557 = vmatprep.mubr.bf16.mxu0 %v1340
        %1558 = vmatmul.mubr.bf16.gmra.mxu0 %v1339
        %v1559 = vpop.f32.mrf.mxu0
        %v1560 = vadd.f32 0.0, %v1559
        %v1561 = vpop.f32.mrf.mxu0
        %v1562 = vpop.f32.mrf.mxu0
        %v1563 = vadd.f32 0.0, %v1562
        %v1564 = vpop.f32.mrf.mxu0
        %1565 = vdwg.mxu0
        %v1566 = vadd.f32 %v928, %v1504
        %v1567 = vadd.f32 %v929, %v1507
        %v1568 = vadd.f32 %v930, %v1512
        %v1569 = vadd.f32 %v931, %v1515
        %v1570 = vadd.f32 %v932, %v1520
        %v1571 = vadd.f32 %v933, %v1523
        %v1572 = vadd.f32 %v934, %v1528
        %v1573 = vadd.f32 %v935, %v1531
        %v1574 = vadd.f32 %v936, %v1536
        %v1575 = vadd.f32 %v937, %v1539
        %v1576 = vadd.f32 %v938, %v1544
        %v1577 = vadd.f32 %v939, %v1547
        %v1578 = vadd.f32 %v940, %v1552
        %v1579 = vadd.f32 %v941, %v1555
        %v1580 = vadd.f32 %v942, %v1560
        %v1581 = vadd.f32 %v943, %v1563
        %1582 = vst [vmem:[%s271] sm:$0xff] %v1566
        %1583 = vst [vmem:[%s271 + $0x8] sm:$0xff] %v1567
        %1584 = vst [vmem:[%s271 + $0x10] sm:$0xff] %v1568
        %1585 = vst [vmem:[%s271 + $0x18] sm:$0xff] %v1569
        %1586 = vst [vmem:[%s271 + $0x20] sm:$0xff] %v1570
        %1587 = vst [vmem:[%s271 + $0x28] sm:$0xff] %v1571
        %1588 = vst [vmem:[%s271 + $0x30] sm:$0xff] %v1572
        %1589 = vst [vmem:[%s271 + $0x38] sm:$0xff] %v1573
        %1590 = vst [vmem:[%s271 + $0x40] sm:$0xff] %v1574
        %1591 = vst [vmem:[%s271 + $0x48] sm:$0xff] %v1575
        %1592 = vst [vmem:[%s271 + $0x50] sm:$0xff] %v1576
        %1593 = vst [vmem:[%s271 + $0x58] sm:$0xff] %v1577
        %1594 = vst [vmem:[%s271 + $0x60] sm:$0xff] %v1578
        %1595 = vst [vmem:[%s271 + $0x68] sm:$0xff] %v1579
        %1596 = vst [vmem:[%s271 + $0x70] sm:$0xff] %v1580
        %1597 = vst [vmem:[%s271 + $0x78] sm:$0xff] %v1581
        %s1598 = sand.u32 %s141, 1
        %s1599 = scalar_lea.sflag [#allocation4], %s1598
        %s1600 = sand.u32 %s141, 1
        %s1601 = smul.addr %s1600, 128
        %s1602 = scalar_lea.vmem [#allocation8], %s1601
        // Predicated region
        $region53: #{mlp_pallas.1} parent=39 // pred_check
          %p1603 = pneg %p151
        $region54: #{mlp_pallas.1} parent=39 // pred_check_branch
          %1605 = sbr.rel (%p1603) target = $region56
        $region55: #{mlp_pallas.1} parent=39 // pred_region
          %s1606 = smul.u32 16, %s23
          %s1608 = ssub.s32 2048, 2048
          %1609 = vsyncadd %s1599, %s1608
          %s1610 = smul.addr %s1606, 128
          %s1611 = scalar_lea.hbm %s5, %s1610
          %s1612 = sshll.u32 %s1602, 4
          %s1613 = int_to_ptr.vmem [resolvable:$true] %s1612
          %1618 = dma.vmem_to_hbm [thread:$0]  %s1613, 2048, %s1611, %s1599, 128, 128, 8
        $region56: #{mlp_pallas.1} parent=39 // pred_fallthru
          _
      $region40: #{mlp_pallas.1} parent=5 // pred_fallthru
        _
      %p1619 = scmp.le.s32.totalorder 2, %s18
      // Predicated region
      $region57: #{mlp_pallas.1} parent=5 // pred_check
        %p1620 = pneg %p1619
      $region58: #{mlp_pallas.1} parent=5 // pred_check_branch
        %1622 = sbr.rel (%p1620) target = $region60
      $region59: #{mlp_pallas.1} parent=5 // pred_region
        %s1623 = ssub.s32 %s18, 2
        // Predicated region
        $region61: #{mlp_pallas.1} parent=59 // pred_check
          %p1624 = pneg %p157
        $region62: #{mlp_pallas.1} parent=59 // pred_check_branch
          %1626 = sbr.rel (%p1624) target = $region64
        $region63: #{mlp_pallas.1} parent=59 // pred_region
          %s1627 = sand.u32 %s142, 1
          %s1628 = scalar_lea.sflag [#allocation4], %s1627
          %s1629 = sand.u32 %s142, 1
          %s1630 = smul.addr %s1629, 128
          %s1631 = scalar_lea.vmem [#allocation8], %s1630
          %1632 = dma.done %s1628, 2048
        $region64: #{mlp_pallas.1} parent=59 // pred_fallthru
          _
      $region60: #{mlp_pallas.1} parent=5 // pred_fallthru
        _
    $region6: #{mlp_pallas.1} parent=1 // loop_footer
      %s22 = sadd.s32 1, %s18
    $region7: #{mlp_pallas.1} parent=1 // loop_footer_branch
      %17 = sbr.rel target = $region3
    $region8: #{mlp_pallas.1} parent=1 // loop_exit
      _
    %1633 = vsyncpa [#allocation3], 1
    %s1634 = scalar_lea.sflag [#allocation3], 1
    %1635 = vsyncpa %s1634, 1
    %1636 = vsyncpa [#allocation6], 1
    %1637 = vsyncpa [#allocation4], 1
    %s1638 = scalar_lea.sflag [#allocation4], 1
    %1639 = vsyncpa %s1638, 1

// kernel: mlp_pallas.1
$region0: #{mlp_pallas.1}
  #allocation0 [shape = 'u32[]', space=smem, size = 0x4, offset = 0x4, fixed_abs, tag = 'smem constant byte address 0x4 - core index']
  #allocation1 [shape = 'u32[144,128]{1,0:T(1,128)}', space=vmem, size = 0x12000, scoped, tag = 'internal scratch']
  %s0 = inlined_call_operand.hbm [shape: f32[256,128], index: 0, kind: input, shape index: {}]
  %s1 = inlined_call_operand.hbm [shape: bf16[128,512], index: 1, kind: input, shape index: {}]
  %s2 = inlined_call_operand.vmem [shape: f32[1,512], index: 2, kind: input, shape index: {}]
  %s3 = inlined_call_operand.hbm [shape: bf16[512,128], index: 3, kind: input, shape index: {}]
  %s4 = inlined_call_operand.vmem [shape: f32[1,128], index: 4, kind: input, shape index: {}]
  %s5 = inlined_call_operand.hbm [shape: f32[256,128], index: 5, kind: output, shape index: {}]
  %s6 = sld [smem:[#allocation0]]
  $region65: #{mlp_pallas.1} parent=0
    _
  %s8 = ssub.s32 1, %s6
  %s9 = scalar_select 0, %s8, %s6
  $region1: #{mlp_pallas.1} parent=0
    #allocation2 [shape = 'u8[131072]{0}', space=vmem, size = 0x20000, scoped, tag = 'input window, operand 0']
    #allocation3 [shape = 's32[2]{0}', space=sflag, size = 0x8, scoped, tag = 'scoped memory for mlp_pallas.1']
    #allocation4 [shape = 's32[2]{0}', space=sflag, size = 0x8, scoped, tag = 'scoped memory for mlp_pallas.1']
    #allocation5 [shape = 'u8[131072]{0}', space=vmem, size = 0x20000, scoped, tag = 'input window, operand 1, single buffered']
    #allocation6 [shape = 's32[1]{0}', space=sflag, size = 0x4, scoped, tag = 'scoped memory for mlp_pallas.1']
    #allocation7 [shape = 'u8[131072]{0}', space=vmem, size = 0x20000, scoped, tag = 'input window, operand 3, single buffered']
    #allocation8 [shape = 'u8[131072]{0}', space=vmem, size = 0x20000, scoped, tag = 'output window, operand 0']
    %10 = vsyncpa [#allocation3], 0
    %s11 = scalar_lea.sflag [#allocation3], 1
    %12 = vsyncpa %s11, 0
    %13 = vsyncpa [#allocation6], 0
    %14 = vsyncpa [#allocation4], 0
    %s15 = scalar_lea.sflag [#allocation4], 1
    %16 = vsyncpa %s15, 0
    loop: start=0, step=1, limit=4
    $region2: #{mlp_pallas.1} parent=1 // loop_pre_header
      _
    $region3: #{mlp_pallas.1} parent=1 // loop_header
      %s18 = sphi 0, %s22
      %p19 = scmp.ge.s32.totalorder %s18, 4
      %s28 = sphi 0, %s30
      %s31 = sphi 0, %s28
      %s32 = sphi 0, %s31
      %s48 = sphi 0, %s32
      %s52 = sphi 0, %s52
      %s54 = sphi 0, %s52
      %s55 = sphi 0, %s54
      %s69 = sphi 0, %s55
      %s73 = sphi 0, %s73
      %s75 = sphi 0, %s73
      %s76 = sphi 0, %s75
      %s90 = sphi 0, %s76
      %s94 = sphi 0, %s94
      %s96 = sphi 0, %s94
      %s97 = sphi 0, %s96
      %s111 = sphi 0, %s97
      %s115 = sphi 0, %s115
      %s117 = sphi 0, %s115
      %s118 = sphi 0, %s117
      %s132 = sphi 0, %s118
      %s138 = sphi 0, %s140
      %s141 = sphi 0, %s138
      %s142 = sphi 0, %s141
      %s158 = sphi 0, %s142
    $region4: #{mlp_pallas.1} parent=1 // loop_header_branch
      %21 = sbr.rel (%p19) target = $region8
    $region5: #{mlp_pallas.1} parent=1 // loop_body
      %s23 = ssub.s32 %s18, 1
      %s24 = ssub.s32 %s18, 2
      %s25 = sadd.s32 %s18, 1
      %s26 = ssub.s32 %s18, %s25
      %p27 = scmp.eq.s32.totalorder %s26, 0
      %s29 = sadd.s32 %s28, 1
      %s30 = scalar_select %p27, %s28, %s29
      %p33 = pneg %p27
      %p34 = scmp.eq.s32.totalorder %s18, 1
      %p35 = por %p33, %p34
      %p36 = scmp.ne.s32.totalorder %s28, %s31
      %p37 = scmp.eq.s32.totalorder %s18, 0
      %p38 = por %p36, %p37
      %p39 = scmp.ne.s32.totalorder %s28, %s31
      %p40 = scmp.eq.s32.totalorder %s23, 1
      %p41 = por %p39, %p40
      %p42 = scmp.ne.s32.totalorder %s31, %s32
      %p43 = scmp.eq.s32.totalorder %s23, 0
      %p44 = por %p42, %p43
      %p45 = scmp.ne.s32.totalorder %s31, %s32
      %p46 = scmp.eq.s32.totalorder %s24, 1
      %p47 = por %p45, %p46
      %p49 = scmp.ne.s32.totalorder %s32, %s48
      %p50 = scmp.eq.s32.totalorder %s24, 0
      %p51 = por %p49, %p50
      %s53 = sadd.s32 %s52, 1
      %p56 = scmp.eq.s32.totalorder %s18, 1
      %p57 = scmp.ne.s32.totalorder %s52, %s54
      %p58 = scmp.eq.s32.totalorder %s18, 0
      %p59 = por %p57, %p58
      %p60 = scmp.ne.s32.totalorder %s52, %s54
      %p61 = scmp.eq.s32.totalorder %s23, 1
      %p62 = por %p60, %p61
      %p63 = scmp.ne.s32.totalorder %s54, %s55
      %p64 = scmp.eq.s32.totalorder %s23, 0
      %p65 = por %p63, %p64
      %p66 = scmp.ne.s32.totalorder %s54, %s55
      %p67 = scmp.eq.s32.totalorder %s24, 1
      %p68 = por %p66, %p67
      %p70 = scmp.ne.s32.totalorder %s55, %s69
      %p71 = scmp.eq.s32.totalorder %s24, 0
      %p72 = por %p70, %p71
      %s74 = sadd.s32 %s73, 1
      %p77 = scmp.eq.s32.totalorder %s18, 1
      %p78 = scmp.ne.s32.totalorder %s73, %s75
      %p79 = scmp.eq.s32.totalorder %s18, 0
      %p80 = por %p78, %p79
      %p81 = scmp.ne.s32.totalorder %s73, %s75
      %p82 = scmp.eq.s32.totalorder %s23, 1
      %p83 = por %p81, %p82
      %p84 = scmp.ne.s32.totalorder %s75, %s76
      %p85 = scmp.eq.s32.totalorder %s23, 0
      %p86 = por %p84, %p85
      %p87 = scmp.ne.s32.totalorder %s75, %s76
      %p88 = scmp.eq.s32.totalorder %s24, 1
      %p89 = por %p87, %p88
      %p91 = scmp.ne.s32.totalorder %s76, %s90
      %p92 = scmp.eq.s32.totalorder %s24, 0
      %p93 = por %p91, %p92
      %s95 = sadd.s32 %s94, 1
      %p98 = scmp.eq.s32.totalorder %s18, 1
      %p99 = scmp.ne.s32.totalorder %s94, %s96
      %p100 = scmp.eq.s32.totalorder %s18, 0
      %p101 = por %p99, %p100
      %p102 = scmp.ne.s32.totalorder %s94, %s96
      %p103 = scmp.eq.s32.totalorder %s23, 1
      %p104 = por %p102, %p103
      %p105 = scmp.ne.s32.totalorder %s96, %s97
      %p106 = scmp.eq.s32.totalorder %s23, 0
      %p107 = por %p105, %p106
      %p108 = scmp.ne.s32.totalorder %s96, %s97
      %p109 = scmp.eq.s32.totalorder %s24, 1
      %p110 = por %p108, %p109
      %p112 = scmp.ne.s32.totalorder %s97, %s111
      %p113 = scmp.eq.s32.totalorder %s24, 0
      %p114 = por %p112, %p113
      %s116 = sadd.s32 %s115, 1
      %p119 = scmp.eq.s32.totalorder %s18, 1
      %p120 = scmp.ne.s32.totalorder %s115, %s117
      %p121 = scmp.eq.s32.totalorder %s18, 0
      %p122 = por %p120, %p121
      %p123 = scmp.ne.s32.totalorder %s115, %s117
      %p124 = scmp.eq.s32.totalorder %s23, 1
      %p125 = por %p123, %p124
      %p126 = scmp.ne.s32.totalorder %s117, %s118
      %p127 = scmp.eq.s32.totalorder %s23, 0
      %p128 = por %p126, %p127
      %p129 = scmp.ne.s32.totalorder %s117, %s118
      %p130 = scmp.eq.s32.totalorder %s24, 1
      %p131 = por %p129, %p130
      %p133 = scmp.ne.s32.totalorder %s118, %s132
      %p134 = scmp.eq.s32.totalorder %s24, 0
      %p135 = por %p133, %p134
      %s136 = ssub.s32 %s18, %s25
      %p137 = scmp.eq.s32.totalorder %s136, 0
      %s139 = sadd.s32 %s138, 1
      %s140 = scalar_select %p137, %s138, %s139
      %p143 = pneg %p137
      %p144 = scmp.eq.s32.totalorder %s18, 1
      %p145 = por %p143, %p144
      %p146 = scmp.ne.s32.totalorder %s138, %s141
      %p147 = scmp.eq.s32.totalorder %s18, 0
      %p148 = por %p146, %p147
      %p149 = scmp.ne.s32.totalorder %s138, %s141
      %p150 = scmp.eq.s32.totalorder %s23, 1
      %p151 = por %p149, %p150
      %p152 = scmp.ne.s32.totalorder %s141, %s142
      %p153 = scmp.eq.s32.totalorder %s23, 0
      %p154 = por %p152, %p153
      %p155 = scmp.ne.s32.totalorder %s141, %s142
      %p156 = scmp.eq.s32.totalorder %s24, 1
      %p157 = por %p155, %p156
      %p159 = scmp.ne.s32.totalorder %s142, %s158
      %p160 = scmp.eq.s32.totalorder %s24, 0
      %p161 = por %p159, %p160
      %p162 = scmp.le.s32.totalorder 1, %s18
      %p163 = scmp.lt.s32.totalorder %s18, 3
      %p164 = pnand %p162, %p163
      %p165 = pneg %p164
      // Predicated region
      $region9: #{mlp_pallas.1} parent=5 // pred_check
        _
      $region10: #{mlp_pallas.1} parent=5 // pred_check_branch
        %167 = sbr.rel (%p164) target = $region12
      $region11: #{mlp_pallas.1} parent=5 // pred_region
        %s168 = ssub.s32 %s18, 1
        // Predicated region
        $region13: #{mlp_pallas.1} parent=11 // pred_check
          %p169 = pneg %p65
        $region14: #{mlp_pallas.1} parent=11 // pred_check_branch
          %171 = sbr.rel (%p169) target = $region16
        $region15: #{mlp_pallas.1} parent=11 // pred_region
          %s173 = ssub.s32 4096, 4096
          %174 = vsyncadd [#allocation6], %s173
          %s175 = sshll.u32 [#allocation5], 4
          %s176 = int_to_ptr.vmem [resolvable:$true] %s175
          %181 = dma.hbm_to_vmem [thread:$0]  %s1, 4096, %s176, [#allocation6], 256, 256, 16
        $region16: #{mlp_pallas.1} parent=11 // pred_fallthru
          _
        // Predicated region
        $region17: #{mlp_pallas.1} parent=11 // pred_check
          %p182 = pneg %p86
        $region18: #{mlp_pallas.1} parent=11 // pred_check_branch
          %184 = sbr.rel (%p182) target = $region20
        $region19: #{mlp_pallas.1} parent=11 // pred_region
          _
        $region20: #{mlp_pallas.1} parent=11 // pred_fallthru
          _
        // Predicated region
        $region21: #{mlp_pallas.1} parent=11 // pred_check
          %p185 = pneg %p107
        $region22: #{mlp_pallas.1} parent=11 // pred_check_branch
          %187 = sbr.rel (%p185) target = $region24
        $region23: #{mlp_pallas.1} parent=11 // pred_region
          %s189 = ssub.s32 4096, 4096
          %190 = vsyncadd [#allocation6], %s189
          %s191 = sshll.u32 [#allocation7], 4
          %s192 = int_to_ptr.vmem [resolvable:$true] %s191
          %197 = dma.hbm_to_vmem [thread:$0]  %s3, 4096, %s192, [#allocation6], 64, 64, 4
        $region24: #{mlp_pallas.1} parent=11 // pred_fallthru
          _
        // Predicated region
        $region25: #{mlp_pallas.1} parent=11 // pred_check
          %p198 = pneg %p128
        $region26: #{mlp_pallas.1} parent=11 // pred_check_branch
          %200 = sbr.rel (%p198) target = $region28
        $region27: #{mlp_pallas.1} parent=11 // pred_region
          _
        $region28: #{mlp_pallas.1} parent=11 // pred_fallthru
          _
      $region12: #{mlp_pallas.1} parent=5 // pred_fallthru
        _
      %p201 = scmp.lt.s32.totalorder %s18, 2
      // Predicated region
      $region29: #{mlp_pallas.1} parent=5 // pred_check
        %p202 = pneg %p201
      $region30: #{mlp_pallas.1} parent=5 // pred_check_branch
        %204 = sbr.rel (%p202) target = $region32
      $region31: #{mlp_pallas.1} parent=5 // pred_region
        // Predicated region
        $region33: #{mlp_pallas.1} parent=31 // pred_check
          %p205 = pneg %p38
        $region34: #{mlp_pallas.1} parent=31 // pred_check_branch
          %207 = sbr.rel (%p205) target = $region36
        $region35: #{mlp_pallas.1} parent=31 // pred_region
          %s208 = sand.u32 %s28, 1
          %s209 = scalar_lea.sflag [#allocation3], %s208
          %s210 = sand.u32 %s28, 1
          %s211 = smul.addr %s210, 128
          %s212 = scalar_lea.vmem [#allocation2], %s211
          %s213 = smul.u32 16, %s18
          %s215 = ssub.s32 2048, 2048
          %216 = vsyncadd %s209, %s215
          %s217 = smul.addr %s213, 128
          %s218 = scalar_lea.hbm %s0, %s217
          %s219 = sshll.u32 %s212, 4
          %s220 = int_to_ptr.vmem [resolvable:$true] %s219
          %225 = dma.hbm_to_vmem [thread:$0]  %s218, 2048, %s220, %s209, 128, 128, 8
        $region36: #{mlp_pallas.1} parent=31 // pred_fallthru
          _
      $region32: #{mlp_pallas.1} parent=5 // pred_fallthru
        _
      %p226 = scmp.le.s32.totalorder 1, %s18
      %p227 = scmp.lt.s32.totalorder %s18, 3
      %p228 = pnand %p226, %p227
      %p229 = pneg %p228
      // Predicated region
      $region37: #{mlp_pallas.1} parent=5 // pred_check
        _
      $region38: #{mlp_pallas.1} parent=5 // pred_check_branch
        %231 = sbr.rel (%p228) target = $region40
      $region39: #{mlp_pallas.1} parent=5 // pred_region
        %s232 = ssub.s32 %s18, 1
        %s233 = sand.u32 %s31, 1
        %s234 = scalar_lea.sflag [#allocation3], %s233
        %s235 = sand.u32 %s31, 1
        %s236 = smul.addr %s235, 128
        %s237 = scalar_lea.vmem [#allocation2], %s236
        // Predicated region
        $region41: #{mlp_pallas.1} parent=39 // pred_check
          %p238 = pneg %p44
        $region42: #{mlp_pallas.1} parent=39 // pred_check_branch
          %240 = sbr.rel (%p238) target = $region44
        $region43: #{mlp_pallas.1} parent=39 // pred_region
          %241 = dma.done %s234, 2048
        $region44: #{mlp_pallas.1} parent=39 // pred_fallthru
          _
        // Predicated region
        $region45: #{mlp_pallas.1} parent=39 // pred_check
          %p242 = pneg %p65
        $region46: #{mlp_pallas.1} parent=39 // pred_check_branch
          %244 = sbr.rel (%p242) target = $region48
        $region47: #{mlp_pallas.1} parent=39 // pred_region
          %245 = dma.done [#allocation6], 4096
        $region48: #{mlp_pallas.1} parent=39 // pred_fallthru
          _
        // Predicated region
        $region49: #{mlp_pallas.1} parent=39 // pred_check
          %p246 = pneg %p107
        $region50: #{mlp_pallas.1} parent=39 // pred_check_branch
          %248 = sbr.rel (%p246) target = $region52
        $region51: #{mlp_pallas.1} parent=39 // pred_region
          %249 = dma.done [#allocation6], 4096
        $region52: #{mlp_pallas.1} parent=39 // pred_fallthru
          _
        %s250 = sand.u32 %s31, 1
        %s251 = scalar_lea.sflag [#allocation3], %s250
        %s252 = sand.u32 %s31, 1
        %s253 = smul.addr %s252, 128
        %s254 = scalar_lea.vmem [#allocation2], %s253
        %p255 = pneg %p44
        %p256 = pneg %p41
        %p257 = pneg %p65
        %p258 = pneg %p62
        %p259 = pneg %p86
        %p260 = pneg %p83
        %p261 = pneg %p107
        %p262 = pneg %p104
        %p263 = pneg %p128
        %p264 = pneg %p125
        %p265 = pneg %p154
        %p266 = pneg %p151
        %s267 = sand.u32 %s141, 1
        %s268 = scalar_lea.sflag [#allocation4], %s267
        %s269 = sand.u32 %s141, 1
        %s270 = smul.addr %s269, 128
        %s271 = scalar_lea.vmem [#allocation8], %s270
        %s272 = smul.u32 16, %s23
        %s273 = smul.u32 16, %s23
        %v275 = vld [vmem:[%s237] sm:$0xff]
        %v276 = vld [vmem:[%s237 + $0x8] sm:$0xff]
        %v277 = vld [vmem:[%s237 + $0x10] sm:$0xff]
        %v278 = vld [vmem:[%s237 + $0x18] sm:$0xff]
        %v279 = vld [vmem:[%s237 + $0x20] sm:$0xff]
        %v280 = vld [vmem:[%s237 + $0x28] sm:$0xff]
        %v281 = vld [vmem:[%s237 + $0x30] sm:$0xff]
        %v282 = vld [vmem:[%s237 + $0x38] sm:$0xff]
        %v283 = vld [vmem:[%s237 + $0x40] sm:$0xff]
        %v284 = vld [vmem:[%s237 + $0x48] sm:$0xff]
        %v285 = vld [vmem:[%s237 + $0x50] sm:$0xff]
        %v286 = vld [vmem:[%s237 + $0x58] sm:$0xff]
        %v287 = vld [vmem:[%s237 + $0x60] sm:$0xff]
        %v288 = vld [vmem:[%s237 + $0x68] sm:$0xff]
        %v289 = vld [vmem:[%s237 + $0x70] sm:$0xff]
        %v290 = vld [vmem:[%s237 + $0x78] sm:$0xff]
        %v291 = vpack.c.bf16 %v276, %v275
        %v292 = vpack.c.bf16 %v278, %v277
        %v293 = vpack.c.bf16 %v280, %v279
        %v294 = vpack.c.bf16 %v282, %v281
        %v295 = vpack.c.bf16 %v284, %v283
        %v296 = vpack.c.bf16 %v286, %v285
        %v297 = vpack.c.bf16 %v288, %v287
        %v298 = vpack.c.bf16 %v290, %v289
        %v299 = vld [vmem:[%s4] sm:$0x1]
        %v301 = vlaneseq
        %v302 = vshrl.u32 %v301, 7
        %v303 = vsub.s32 0, %v302
        %v304 = vrot.slane %v299, %v303
        %v306 = vld [vmem:[#allocation5] sm:$0xff]
        %v307 = vld [vmem:[#allocation5 + $0x10] sm:$0xff]
        %v308 = vld [vmem:[#allocation5 + $0x20] sm:$0xff]
        %v309 = vld [vmem:[#allocation5 + $0x30] sm:$0xff]
        %v310 = vld [vmem:[#allocation5 + $0x40] sm:$0xff]
        %v311 = vld [vmem:[#allocation5 + $0x50] sm:$0xff]
        %v312 = vld [vmem:[#allocation5 + $0x60] sm:$0xff]
        %v313 = vld [vmem:[#allocation5 + $0x70] sm:$0xff]
        %v314 = vld [vmem:[#allocation5 + $0x80] sm:$0xff]
        %v315 = vld [vmem:[#allocation5 + $0x90] sm:$0xff]
        %v316 = vld [vmem:[#allocation5 + $0xa0] sm:$0xff]
        %v317 = vld [vmem:[#allocation5 + $0xb0] sm:$0xff]
        %v318 = vld [vmem:[#allocation5 + $0xc0] sm:$0xff]
        %v319 = vld [vmem:[#allocation5 + $0xd0] sm:$0xff]
        %v320 = vld [vmem:[#allocation5 + $0xe0] sm:$0xff]
        %v321 = vld [vmem:[#allocation5 + $0xf0] sm:$0xff]
        %v322 = vld [vmem:[%s2] sm:$0x3]
        %v324 = vlaneseq
        %v325 = vshrl.u32 %v324, 7
        %v326 = vsub.s32 0, %v325
        %v327 = vrot.slane %v322, %v326
        %v328 = vlaneseq
        %v329 = vshrl.u32 %v328, 7
        %v330 = vsub.s32 1, %v329
        %v331 = vrot.slane %v322, %v330
        %v350 = vunpack.c.l.b16 %v306
        %v351 = vunpack.c.h.b16 %v306
        %v352 = vunpack.c.l.b16 %v307
        %v353 = vunpack.c.h.b16 %v307
        %v354 = vunpack.c.l.b16 %v308
        %v355 = vunpack.c.h.b16 %v308
        %v356 = vunpack.c.l.b16 %v309
        %v357 = vunpack.c.h.b16 %v309
        %v358 = vunpack.c.l.b16 %v310
        %v359 = vunpack.c.h.b16 %v310
        %v360 = vunpack.c.l.b16 %v311
        %v361 = vunpack.c.h.b16 %v311
        %v362 = vunpack.c.l.b16 %v312
        %v363 = vunpack.c.h.b16 %v312
        %v364 = vunpack.c.l.b16 %v313
        %v365 = vunpack.c.h.b16 %v313
        %v366 = vunpack.c.l.b16 %v314
        %v367 = vunpack.c.h.b16 %v314
        %v368 = vunpack.c.l.b16 %v315
        %v369 = vunpack.c.h.b16 %v315
        %v370 = vunpack.c.l.b16 %v316
        %v371 = vunpack.c.h.b16 %v316
        %v372 = vunpack.c.l.b16 %v317
        %v373 = vunpack.c.h.b16 %v317
        %v374 = vunpack.c.l.b16 %v318
        %v375 = vunpack.c.h.b16 %v318
        %v376 = vunpack.c.l.b16 %v319
        %v377 = vunpack.c.h.b16 %v319
        %v378 = vunpack.c.l.b16 %v320
        %v379 = vunpack.c.h.b16 %v320
        %v380 = vunpack.c.l.b16 %v321
        %v381 = vunpack.c.h.b16 %v321
        %v382 = vpack.c.b16 %v352, %v350
        %v383 = vpack.c.b16 %v353, %v351
        %v384 = vpack.c.b16 %v356, %v354
        %v385 = vpack.c.b16 %v357, %v355
        %v386 = vpack.c.b16 %v360, %v358
        %v387 = vpack.c.b16 %v361, %v359
        %v388 = vpack.c.b16 %v364, %v362
        %v389 = vpack.c.b16 %v365, %v363
        %v390 = vpack.c.b16 %v368, %v366
        %v391 = vpack.c.b16 %v369, %v367
        %v392 = vpack.c.b16 %v372, %v370
        %v393 = vpack.c.b16 %v373, %v371
        %v394 = vpack.c.b16 %v376, %v374
        %v395 = vpack.c.b16 %v377, %v375
        %v396 = vpack.c.b16 %v380, %v378
        %v397 = vpack.c.b16 %v381, %v379
        %414 = vmatprep.subr.bf16.mxu0 %v397
        %415 = vmatpush1.bf16.msra.mxu0 %v396
        %416 = vmatprep.subr.bf16.mxu0 %v395
        %417 = vmatpush1.bf16.msra.mxu0 %v394
        %418 = vmatprep.subr.bf16.mxu0 %v393
        %419 = vmatpush1.bf16.msra.mxu0 %v392
        %420 = vmatprep.subr.bf16.mxu0 %v391
        %421 = vmatpush1.bf16.msra.mxu0 %v390
        %422 = vmatprep.subr.bf16.mxu0 %v389
        %423 = vmatpush1.bf16.msra.mxu0 %v388
        %424 = vmatprep.subr.bf16.mxu0 %v387
        %425 = vmatpush1.bf16.msra.mxu0 %v386
        %426 = vmatprep.subr.bf16.mxu0 %v385
        %427 = vmatpush1.bf16.msra.mxu0 %v384
        %428 = vmatprep.subr.bf16.mxu0 %v383
        %429 = vmatpush1.bf16.msra.mxu0 %v382
        %430 = vmatprep.subr.bf16.mxu0 0
        %431 = vmatpush2.bf16.msra.mxu0 0
        %432 = vmatprep.subr.bf16.mxu0 0
        %433 = vmatpush2.bf16.msra.mxu0 0
        %434 = vmatprep.subr.bf16.mxu0 0
        %435 = vmatpush2.bf16.msra.mxu0 0
        %436 = vmatprep.subr.bf16.mxu0 0
        %437 = vmatpush2.bf16.msra.mxu0 0
        %438 = vmatprep.subr.bf16.mxu0 0
        %439 = vmatpush2.bf16.msra.mxu0 0
        %440 = vmatprep.subr.bf16.mxu0 0
        %441 = vmatpush2.bf16.msra.mxu0 0
        %442 = vmatprep.subr.bf16.mxu0 0
        %443 = vmatpush2.bf16.msra.mxu0 0
        %444 = vmatprep.subr.bf16.mxu0 0
        %445 = vmatpush2.bf16.msra.mxu0 0
        %446 = vmatprep.mubr.bf16.mxu0 0
        %447 = vmatmul.mubr.bf16.gmra.mxu0 %v291
        %v448 = vpop.f32.mrf.mxu0
        %v449 = vadd.f32 %v327, %v448
        %v450 = vpop.f32.mrf.mxu0
        %v451 = vadd.f32 %v331, %v450
        %v452 = vpop.f32.mrf.mxu0
        %v453 = vadd.f32 %v327, %v452
        %v454 = vpop.f32.mrf.mxu0
        %v455 = vadd.f32 %v331, %v454
        %456 = vmatprep.mubr.bf16.mxu0 0
        %457 = vmatmul.mubr.bf16.gmra.mxu0 %v292
        %v458 = vpop.f32.mrf.mxu0
        %v459 = vadd.f32 %v327, %v458
        %v460 = vpop.f32.mrf.mxu0
        %v461 = vadd.f32 %v331, %v460
        %v462 = vpop.f32.mrf.mxu0
        %v463 = vadd.f32 %v327, %v462
        %v464 = vpop.f32.mrf.mxu0
        %v465 = vadd.f32 %v331, %v464
        %466 = vmatprep.mubr.bf16.mxu0 0
        %467 = vmatmul.mubr.bf16.gmra.mxu0 %v293
        %v468 = vpop.f32.mrf.mxu0
        %v469 = vadd.f32 %v327, %v468
        %v470 = vpop.f32.mrf.mxu0
        %v471 = vadd.f32 %v331, %v470
        %v472 = vpop.f32.mrf.mxu0
        %v473 = vadd.f32 %v327, %v472
        %v474 = vpop.f32.mrf.mxu0
        %v475 = vadd.f32 %v331, %v474
        %476 = vmatprep.mubr.bf16.mxu0 0
        %477 = vmatmul.mubr.bf16.gmra.mxu0 %v294
        %v478 = vpop.f32.mrf.mxu0
        %v479 = vadd.f32 %v327, %v478
        %v480 = vpop.f32.mrf.mxu0
        %v481 = vadd.f32 %v331, %v480
        %v482 = vpop.f32.mrf.mxu0
        %v483 = vadd.f32 %v327, %v482
        %v484 = vpop.f32.mrf.mxu0
        %v485 = vadd.f32 %v331, %v484
        %486 = vmatprep.mubr.bf16.mxu0 0
        %487 = vmatmul.mubr.bf16.gmra.mxu0 %v295
        %v488 = vpop.f32.mrf.mxu0
        %v489 = vadd.f32 %v327, %v488
        %v490 = vpop.f32.mrf.mxu0
        %v491 = vadd.f32 %v331, %v490
        %v492 = vpop.f32.mrf.mxu0
        %v493 = vadd.f32 %v327, %v492
        %v494 = vpop.f32.mrf.mxu0
        %v495 = vadd.f32 %v331, %v494
        %496 = vmatprep.mubr.bf16.mxu0 0
        %497 = vmatmul.mubr.bf16.gmra.mxu0 %v296
        %v498 = vpop.f32.mrf.mxu0
        %v499 = vadd.f32 %v327, %v498
        %v500 = vpop.f32.mrf.mxu0
        %v501 = vadd.f32 %v331, %v500
        %v502 = vpop.f32.mrf.mxu0
        %v503 = vadd.f32 %v327, %v502
        %v504 = vpop.f32.mrf.mxu0
        %v505 = vadd.f32 %v331, %v504
        %506 = vmatprep.mubr.bf16.mxu0 0
        %507 = vmatmul.mubr.bf16.gmra.mxu0 %v297
        %v508 = vpop.f32.mrf.mxu0
        %v509 = vadd.f32 %v327, %v508
        %v510 = vpop.f32.mrf.mxu0
        %v511 = vadd.f32 %v331, %v510
        %v512 = vpop.f32.mrf.mxu0
        %v513 = vadd.f32 %v327, %v512
        %v514 = vpop.f32.mrf.mxu0
        %v515 = vadd.f32 %v331, %v514
        %516 = vmatprep.mubr.bf16.mxu0 0
        %517 = vmatmul.mubr.bf16.gmra.mxu0 %v298
        %v518 = vpop.f32.mrf.mxu0
        %v519 = vadd.f32 %v327, %v518
        %v520 = vpop.f32.mrf.mxu0
        %v521 = vadd.f32 %v331, %v520
        %v522 = vpop.f32.mrf.mxu0
        %v523 = vadd.f32 %v327, %v522
        %v524 = vpop.f32.mrf.mxu0
        %v525 = vadd.f32 %v331, %v524
        %526 = vdwg.mxu0
        %v527 = vmul.f32 %v449, 0.5
        %v528 = vmul.f32 %v451, 0.5
        %v529 = vmul.f32 %v453, 0.5
        %v530 = vmul.f32 %v455, 0.5
        %v531 = vmul.f32 %v459, 0.5
        %v532 = vmul.f32 %v461, 0.5
        %v533 = vmul.f32 %v463, 0.5
        %v534 = vmul.f32 %v465, 0.5
        %v535 = vmul.f32 %v469, 0.5
        %v536 = vmul.f32 %v471, 0.5
        %v537 = vmul.f32 %v473, 0.5
        %v538 = vmul.f32 %v475, 0.5
        %v539 = vmul.f32 %v479, 0.5
        %v540 = vmul.f32 %v481, 0.5
        %v541 = vmul.f32 %v483, 0.5
        %v542 = vmul.f32 %v485, 0.5
        %v543 = vmul.f32 %v489, 0.5
        %v544 = vmul.f32 %v491, 0.5
        %v545 = vmul.f32 %v493, 0.5
        %v546 = vmul.f32 %v495, 0.5
        %v547 = vmul.f32 %v499, 0.5
        %v548 = vmul.f32 %v501, 0.5
        %v549 = vmul.f32 %v503, 0.5
        %v550 = vmul.f32 %v505, 0.5
        %v551 = vmul.f32 %v509, 0.5
        %v552 = vmul.f32 %v511, 0.5
        %v553 = vmul.f32 %v513, 0.5
        %v554 = vmul.f32 %v515, 0.5
        %v555 = vmul.f32 %v519, 0.5
        %v556 = vmul.f32 %v521, 0.5
        %v557 = vmul.f32 %v523, 0.5
        %v558 = vmul.f32 %v525, 0.5
        %v559 = vmul.f32 %v449, 0.70710677
        %v560 = vmul.f32 %v451, 0.70710677
        %v561 = vmul.f32 %v453, 0.70710677
        %v562 = vmul.f32 %v455, 0.70710677
        %v563 = vmul.f32 %v459, 0.70710677
        %v564 = vmul.f32 %v461, 0.70710677
        %v565 = vmul.f32 %v463, 0.70710677
        %v566 = vmul.f32 %v465, 0.70710677
        %v567 = vmul.f32 %v469, 0.70710677
        %v568 = vmul.f32 %v471, 0.70710677
        %v569 = vmul.f32 %v473, 0.70710677
        %v570 = vmul.f32 %v475, 0.70710677
        %v571 = vmul.f32 %v479, 0.70710677
        %v572 = vmul.f32 %v481, 0.70710677
        %v573 = vmul.f32 %v483, 0.70710677
        %v574 = vmul.f32 %v485, 0.70710677
        %v575 = vmul.f32 %v489, 0.70710677
        %v576 = vmul.f32 %v491, 0.70710677
        %v577 = vmul.f32 %v493, 0.70710677
        %v578 = vmul.f32 %v495, 0.70710677
        %v579 = vmul.f32 %v499, 0.70710677
        %v580 = vmul.f32 %v501, 0.70710677
        %v581 = vmul.f32 %v503, 0.70710677
        %v582 = vmul.f32 %v505, 0.70710677
        %v583 = vmul.f32 %v509, 0.70710677
        %v584 = vmul.f32 %v511, 0.70710677
        %v585 = vmul.f32 %v513, 0.70710677
        %v586 = vmul.f32 %v515, 0.70710677
        %v587 = vmul.f32 %v519, 0.70710677
        %v588 = vmul.f32 %v521, 0.70710677
        %v589 = vmul.f32 %v523, 0.70710677
        %v590 = vmul.f32 %v525, 0.70710677
        %v591 = verf.f32.pop %v559
        %v592 = verf.f32.pop %v560
        %v593 = verf.f32.pop %v561
        %v594 = verf.f32.pop %v562
        %v595 = verf.f32.pop %v563
        %v596 = verf.f32.pop %v564
        %v597 = verf.f32.pop %v565
        %v598 = verf.f32.pop %v566
        %v599 = verf.f32.pop %v567
        %v600 = verf.f32.pop %v568
        %v601 = verf.f32.pop %v569
        %v602 = verf.f32.pop %v570
        %v603 = verf.f32.pop %v571
        %v604 = verf.f32.pop %v572
        %v605 = verf.f32.pop %v573
        %v606 = verf.f32.pop %v574
        %v607 = verf.f32.pop %v575
        %v608 = verf.f32.pop %v576
        %v609 = verf.f32.pop %v577
        %v610 = verf.f32.pop %v578
        %v611 = verf.f32.pop %v579
        %v612 = verf.f32.pop %v580
        %v613 = verf.f32.pop %v581
        %v614 = verf.f32.pop %v582
        %v615 = verf.f32.pop %v583
        %v616 = verf.f32.pop %v584
        %v617 = verf.f32.pop %v585
        %v618 = verf.f32.pop %v586
        %v619 = verf.f32.pop %v587
        %v620 = verf.f32.pop %v588
        %v621 = verf.f32.pop %v589
        %v622 = verf.f32.pop %v590
        %v623 = vadd.f32 %v591, 1.0
        %v624 = vadd.f32 %v592, 1.0
        %v625 = vadd.f32 %v593, 1.0
        %v626 = vadd.f32 %v594, 1.0
        %v627 = vadd.f32 %v595, 1.0
        %v628 = vadd.f32 %v596, 1.0
        %v629 = vadd.f32 %v597, 1.0
        %v630 = vadd.f32 %v598, 1.0
        %v631 = vadd.f32 %v599, 1.0
        %v632 = vadd.f32 %v600, 1.0
        %v633 = vadd.f32 %v601, 1.0
        %v634 = vadd.f32 %v602, 1.0
        %v635 = vadd.f32 %v603, 1.0
        %v636 = vadd.f32 %v604, 1.0
        %v637 = vadd.f32 %v605, 1.0
        %v638 = vadd.f32 %v606, 1.0
        %v639 = vadd.f32 %v607, 1.0
        %v640 = vadd.f32 %v608, 1.0
        %v641 = vadd.f32 %v609, 1.0
        %v642 = vadd.f32 %v610, 1.0
        %v643 = vadd.f32 %v611, 1.0
        %v644 = vadd.f32 %v612, 1.0
        %v645 = vadd.f32 %v613, 1.0
        %v646 = vadd.f32 %v614, 1.0
        %v647 = vadd.f32 %v615, 1.0
        %v648 = vadd.f32 %v616, 1.0
        %v649 = vadd.f32 %v617, 1.0
        %v650 = vadd.f32 %v618, 1.0
        %v651 = vadd.f32 %v619, 1.0
        %v652 = vadd.f32 %v620, 1.0
        %v653 = vadd.f32 %v621, 1.0
        %v654 = vadd.f32 %v622, 1.0
        %v655 = vmul.f32 %v527, %v623
        %v656 = vmul.f32 %v528, %v624
        %v657 = vmul.f32 %v529, %v625
        %v658 = vmul.f32 %v530, %v626
        %v659 = vmul.f32 %v531, %v627
        %v660 = vmul.f32 %v532, %v628
        %v661 = vmul.f32 %v533, %v629
        %v662 = vmul.f32 %v534, %v630
        %v663 = vmul.f32 %v535, %v631
        %v664 = vmul.f32 %v536, %v632
        %v665 = vmul.f32 %v537, %v633
        %v666 = vmul.f32 %v538, %v634
        %v667 = vmul.f32 %v539, %v635
        %v668 = vmul.f32 %v540, %v636
        %v669 = vmul.f32 %v541, %v637
        %v670 = vmul.f32 %v542, %v638
        %v671 = vmul.f32 %v543, %v639
        %v672 = vmul.f32 %v544, %v640
        %v673 = vmul.f32 %v545, %v641
        %v674 = vmul.f32 %v546, %v642
        %v675 = vmul.f32 %v547, %v643
        %v676 = vmul.f32 %v548, %v644
        %v677 = vmul.f32 %v549, %v645
        %v678 = vmul.f32 %v550, %v646
        %v679 = vmul.f32 %v551, %v647
        %v680 = vmul.f32 %v552, %v648
        %v681 = vmul.f32 %v553, %v649
        %v682 = vmul.f32 %v554, %v650
        %v683 = vmul.f32 %v555, %v651
        %v684 = vmul.f32 %v556, %v652
        %v685 = vmul.f32 %v557, %v653
        %v686 = vmul.f32 %v558, %v654
        %v687 = vpack.c.bf16 %v657, %v655
        %v688 = vpack.c.bf16 %v658, %v656
        %v689 = vpack.c.bf16 %v661, %v659
        %v690 = vpack.c.bf16 %v662, %v660
        %v691 = vpack.c.bf16 %v665, %v663
        %v692 = vpack.c.bf16 %v666, %v664
        %v693 = vpack.c.bf16 %v669, %v667
        %v694 = vpack.c.bf16 %v670, %v668
        %v695 = vpack.c.bf16 %v673, %v671
        %v696 = vpack.c.bf16 %v674, %v672
        %v697 = vpack.c.bf16 %v677, %v675
        %v698 = vpack.c.bf16 %v678, %v676
        %v699 = vpack.c.bf16 %v681, %v679
        %v700 = vpack.c.bf16 %v682, %v680
        %v701 = vpack.c.bf16 %v685, %v683
        %v702 = vpack.c.bf16 %v686, %v684
        %v703 = vld [vmem:[#allocation7] sm:$0xf]
        %v704 = vld [vmem:[#allocation7 + $0x4] sm:$0xf]
        %v705 = vld [vmem:[#allocation7 + $0x8] sm:$0xf]
        %v706 = vld [vmem:[#allocation7 + $0xc] sm:$0xf]
        %v707 = vld [vmem:[#allocation7 + $0x10] sm:$0xf]
        %v708 = vld [vmem:[#allocation7 + $0x14] sm:$0xf]
        %v709 = vld [vmem:[#allocation7 + $0x18] sm:$0xf]
        %v710 = vld [vmem:[#allocation7 + $0x1c] sm:$0xf]
        %v711 = vld [vmem:[#allocation7 + $0x20] sm:$0xf]
        %v712 = vld [vmem:[#allocation7 + $0x24] sm:$0xf]
        %v713 = vld [vmem:[#allocation7 + $0x28] sm:$0xf]
        %v714 = vld [vmem:[#allocation7 + $0x2c] sm:$0xf]
        %v715 = vld [vmem:[#allocation7 + $0x30] sm:$0xf]
        %v716 = vld [vmem:[#allocation7 + $0x34] sm:$0xf]
        %v717 = vld [vmem:[#allocation7 + $0x38] sm:$0xf]
        %v718 = vld [vmem:[#allocation7 + $0x3c] sm:$0xf]
        %v719 = vld [vmem:[#allocation7 + $0x40] sm:$0xf]
        %v720 = vld [vmem:[#allocation7 + $0x44] sm:$0xf]
        %v721 = vld [vmem:[#allocation7 + $0x48] sm:$0xf]
        %v722 = vld [vmem:[#allocation7 + $0x4c] sm:$0xf]
        %v723 = vld [vmem:[#allocation7 + $0x50] sm:$0xf]
        %v724 = vld [vmem:[#allocation7 + $0x54] sm:$0xf]
        %v725 = vld [vmem:[#allocation7 + $0x58] sm:$0xf]
        %v726 = vld [vmem:[#allocation7 + $0x5c] sm:$0xf]
        %v727 = vld [vmem:[#allocation7 + $0x60] sm:$0xf]
        %v728 = vld [vmem:[#allocation7 + $0x64] sm:$0xf]
        %v729 = vld [vmem:[#allocation7 + $0x68] sm:$0xf]
        %v730 = vld [vmem:[#allocation7 + $0x6c] sm:$0xf]
        %v731 = vld [vmem:[#allocation7 + $0x70] sm:$0xf]
        %v732 = vld [vmem:[#allocation7 + $0x74] sm:$0xf]
        %v733 = vld [vmem:[#allocation7 + $0x78] sm:$0xf]
        %v734 = vld [vmem:[#allocation7 + $0x7c] sm:$0xf]
        %v767 = vunpack.c.l.b16 %v703
        %v768 = vunpack.c.l.b16 %v704
        %v769 = vunpack.c.l.b16 %v705
        %v770 = vunpack.c.l.b16 %v706
        %v771 = vunpack.c.l.b16 %v707
        %v772 = vunpack.c.l.b16 %v708
        %v773 = vunpack.c.l.b16 %v709
        %v774 = vunpack.c.l.b16 %v710
        %v775 = vunpack.c.l.b16 %v711
        %v776 = vunpack.c.l.b16 %v712
        %v777 = vunpack.c.l.b16 %v713
        %v778 = vunpack.c.l.b16 %v714
        %v779 = vunpack.c.l.b16 %v715
        %v780 = vunpack.c.l.b16 %v716
        %v781 = vunpack.c.l.b16 %v717
        %v782 = vunpack.c.l.b16 %v718
        %v783 = vunpack.c.l.b16 %v719
        %v784 = vunpack.c.l.b16 %v720
        %v785 = vunpack.c.l.b16 %v721
        %v786 = vunpack.c.l.b16 %v722
        %v787 = vunpack.c.l.b16 %v723
        %v788 = vunpack.c.l.b16 %v724
        %v789 = vunpack.c.l.b16 %v725
        %v790 = vunpack.c.l.b16 %v726
        %v791 = vunpack.c.l.b16 %v727
        %v792 = vunpack.c.l.b16 %v728
        %v793 = vunpack.c.l.b16 %v729
        %v794 = vunpack.c.l.b16 %v730
        %v795 = vunpack.c.l.b16 %v731
        %v796 = vunpack.c.l.b16 %v732
        %v797 = vunpack.c.l.b16 %v733
        %v798 = vunpack.c.l.b16 %v734
        %v799 = vpack.c.b16 %v768, %v767
        %v800 = vpack.c.b16 %v770, %v769
        %v801 = vpack.c.b16 %v772, %v771
        %v802 = vpack.c.b16 %v774, %v773
        %v803 = vpack.c.b16 %v776, %v775
        %v804 = vpack.c.b16 %v778, %v777
        %v805 = vpack.c.b16 %v780, %v779
        %v806 = vpack.c.b16 %v782, %v781
        %v807 = vpack.c.b16 %v784, %v783
        %v808 = vpack.c.b16 %v786, %v785
        %v809 = vpack.c.b16 %v788, %v787
        %v810 = vpack.c.b16 %v790, %v789
        %v811 = vpack.c.b16 %v792, %v791
        %v812 = vpack.c.b16 %v794, %v793
        %v813 = vpack.c.b16 %v796, %v795
        %v814 = vpack.c.b16 %v798, %v797
        %831 = vmatprep.subr.bf16.mxu0 0
        %832 = vmatpush1.bf16.msra.mxu0 %v806
        %833 = vmatprep.subr.bf16.mxu0 0
        %834 = vmatpush1.bf16.msra.mxu0 %v805
        %835 = vmatprep.subr.bf16.mxu0 0
        %836 = vmatpush1.bf16.msra.mxu0 %v804
        %837 = vmatprep.subr.bf16.mxu0 0
        %838 = vmatpush1.bf16.msra.mxu0 %v803
        %839 = vmatprep.subr.bf16.mxu0 0
        %840 = vmatpush1.bf16.msra.mxu0 %v802
        %841 = vmatprep.subr.bf16.mxu0 0
        %842 = vmatpush1.bf16.msra.mxu0 %v801
        %843 = vmatprep.subr.bf16.mxu0 0
        %844 = vmatpush1.bf16.msra.mxu0 %v800
        %845 = vmatprep.subr.bf16.mxu0 0
        %846 = vmatpush1.bf16.msra.mxu0 %v799
        %847 = vmatprep.subr.bf16.mxu0 0
        %848 = vmatpush2.bf16.msra.mxu0 %v814
        %849 = vmatprep.subr.bf16.mxu0 0
        %850 = vmatpush2.bf16.msra.mxu0 %v813
        %851 = vmatprep.subr.bf16.mxu0 0
        %852 = vmatpush2.bf16.msra.mxu0 %v812
        %853 = vmatprep.subr.bf16.mxu0 0
        %854 = vmatpush2.bf16.msra.mxu0 %v811
        %855 = vmatprep.subr.bf16.mxu0 0
        %856 = vmatpush2.bf16.msra.mxu0 %v810
        %857 = vmatprep.subr.bf16.mxu0 0
        %858 = vmatpush2.bf16.msra.mxu0 %v809
        %859 = vmatprep.subr.bf16.mxu0 0
        %860 = vmatpush2.bf16.msra.mxu0 %v808
        %861 = vmatprep.subr.bf16.mxu0 0
        %862 = vmatpush2.bf16.msra.mxu0 %v807
        %863 = vmatprep.mubr.bf16.mxu0 %v688
        %864 = vmatmul.mubr.bf16.gmra.mxu0 %v687
        %v865 = vpop.f32.mrf.mxu0
        %v866 = vadd.f32 0.0, %v865
        %v867 = vpop.f32.mrf.mxu0
        %v868 = vpop.f32.mrf.mxu0
        %v869 = vadd.f32 0.0, %v868
        %v870 = vpop.f32.mrf.mxu0
        %871 = vmatprep.mubr.bf16.mxu0 %v690
        %872 = vmatmul.mubr.bf16.gmra.mxu0 %v689
        %v873 = vpop.f32.mrf.mxu0
        %v874 = vadd.f32 0.0, %v873
        %v875 = vpop.f32.mrf.mxu0
        %v876 = vpop.f32.mrf.mxu0
        %v877 = vadd.f32 0.0, %v876
        %v878 = vpop.f32.mrf.mxu0
        %879 = vmatprep.mubr.bf16.mxu0 %v692
        %880 = vmatmul.mubr.bf16.gmra.mxu0 %v691
        %v881 = vpop.f32.mrf.mxu0
        %v882 = vadd.f32 0.0, %v881
        %v883 = vpop.f32.mrf.mxu0
        %v884 = vpop.f32.mrf.mxu0
        %v885 = vadd.f32 0.0, %v884
        %v886 = vpop.f32.mrf.mxu0
        %887 = vmatprep.mubr.bf16.mxu0 %v694
        %888 = vmatmul.mubr.bf16.gmra.mxu0 %v693
        %v889 = vpop.f32.mrf.mxu0
        %v890 = vadd.f32 0.0, %v889
        %v891 = vpop.f32.mrf.mxu0
        %v892 = vpop.f32.mrf.mxu0
        %v893 = vadd.f32 0.0, %v892
        %v894 = vpop.f32.mrf.mxu0
        %895 = vmatprep.mubr.bf16.mxu0 %v696
        %896 = vmatmul.mubr.bf16.gmra.mxu0 %v695
        %v897 = vpop.f32.mrf.mxu0
        %v898 = vadd.f32 0.0, %v897
        %v899 = vpop.f32.mrf.mxu0
        %v900 = vpop.f32.mrf.mxu0
        %v901 = vadd.f32 0.0, %v900
        %v902 = vpop.f32.mrf.mxu0
        %903 = vmatprep.mubr.bf16.mxu0 %v698
        %904 = vmatmul.mubr.bf16.gmra.mxu0 %v697
        %v905 = vpop.f32.mrf.mxu0
        %v906 = vadd.f32 0.0, %v905
        %v907 = vpop.f32.mrf.mxu0
        %v908 = vpop.f32.mrf.mxu0
        %v909 = vadd.f32 0.0, %v908
        %v910 = vpop.f32.mrf.mxu0
        %911 = vmatprep.mubr.bf16.mxu0 %v700
        %912 = vmatmul.mubr.bf16.gmra.mxu0 %v699
        %v913 = vpop.f32.mrf.mxu0
        %v914 = vadd.f32 0.0, %v913
        %v915 = vpop.f32.mrf.mxu0
        %v916 = vpop.f32.mrf.mxu0
        %v917 = vadd.f32 0.0, %v916
        %v918 = vpop.f32.mrf.mxu0
        %919 = vmatprep.mubr.bf16.mxu0 %v702
        %920 = vmatmul.mubr.bf16.gmra.mxu0 %v701
        %v921 = vpop.f32.mrf.mxu0
        %v922 = vadd.f32 0.0, %v921
        %v923 = vpop.f32.mrf.mxu0
        %v924 = vpop.f32.mrf.mxu0
        %v925 = vadd.f32 0.0, %v924
        %v926 = vpop.f32.mrf.mxu0
        %927 = vdwg.mxu0
        %v928 = vadd.f32 %v304, %v866
        %v929 = vadd.f32 %v304, %v869
        %v930 = vadd.f32 %v304, %v874
        %v931 = vadd.f32 %v304, %v877
        %v932 = vadd.f32 %v304, %v882
        %v933 = vadd.f32 %v304, %v885
        %v934 = vadd.f32 %v304, %v890
        %v935 = vadd.f32 %v304, %v893
        %v936 = vadd.f32 %v304, %v898
        %v937 = vadd.f32 %v304, %v901
        %v938 = vadd.f32 %v304, %v906
        %v939 = vadd.f32 %v304, %v909
        %v940 = vadd.f32 %v304, %v914
        %v941 = vadd.f32 %v304, %v917
        %v942 = vadd.f32 %v304, %v922
        %v943 = vadd.f32 %v304, %v925
        %v944 = vld [vmem:[#allocation5 + $0x8] sm:$0xff]
        %v945 = vld [vmem:[#allocation5 + $0x18] sm:$0xff]
        %v946 = vld [vmem:[#allocation5 + $0x28] sm:$0xff]
        %v947 = vld [vmem:[#allocation5 + $0x38] sm:$0xff]
        %v948 = vld [vmem:[#allocation5 + $0x48] sm:$0xff]
        %v949 = vld [vmem:[#allocation5 + $0x58] sm:$0xff]
        %v950 = vld [vmem:[#allocation5 + $0x68] sm:$0xff]
        %v951 = vld [vmem:[#allocation5 + $0x78] sm:$0xff]
        %v952 = vld [vmem:[#allocation5 + $0x88] sm:$0xff]
        %v953 = vld [vmem:[#allocation5 + $0x98] sm:$0xff]
        %v954 = vld [vmem:[#allocation5 + $0xa8] sm:$0xff]
        %v955 = vld [vmem:[#allocation5 + $0xb8] sm:$0xff]
        %v956 = vld [vmem:[#allocation5 + $0xc8] sm:$0xff]
        %v957 = vld [vmem:[#allocation5 + $0xd8] sm:$0xff]
        %v958 = vld [vmem:[#allocation5 + $0xe8] sm:$0xff]
        %v959 = vld [vmem:[#allocation5 + $0xf8] sm:$0xff]
        %v960 = vld [vmem:[%s2 + $0x2] sm:$0x3]
        %v962 = vlaneseq
        %v963 = vshrl.u32 %v962, 7
        %v964 = vsub.s32 0, %v963
        %v965 = vrot.slane %v960, %v964
        %v966 = vlaneseq
        %v967 = vshrl.u32 %v966, 7
        %v968 = vsub.s32 1, %v967
        %v969 = vrot.slane %v960, %v968
        %v988 = vunpack.c.l.b16 %v944
        %v989 = vunpack.c.h.b16 %v944
        %v990 = vunpack.c.l.b16 %v945
        %v991 = vunpack.c.h.b16 %v945
        %v992 = vunpack.c.l.b16 %v946
        %v993 = vunpack.c.h.b16 %v946
        %v994 = vunpack.c.l.b16 %v947
        %v995 = vunpack.c.h.b16 %v947
        %v996 = vunpack.c.l.b16 %v948
        %v997 = vunpack.c.h.b16 %v948
        %v998 = vunpack.c.l.b16 %v949
        %v999 = vunpack.c.h.b16 %v949
        %v1000 = vunpack.c.l.b16 %v950
        %v1001 = vunpack.c.h.b16 %v950
        %v1002 = vunpack.c.l.b16 %v951
        %v1003 = vunpack.c.h.b16 %v951
        %v1004 = vunpack.c.l.b16 %v952
        %v1005 = vunpack.c.h.b16 %v952
        %v1006 = vunpack.c.l.b16 %v953
        %v1007 = vunpack.c.h.b16 %v953
        %v1008 = vunpack.c.l.b16 %v954
        %v1009 = vunpack.c.h.b16 %v954
        %v1010 = vunpack.c.l.b16 %v955
        %v1011 = vunpack.c.h.b16 %v955
        %v1012 = vunpack.c.l.b16 %v956
        %v1013 = vunpack.c.h.b16 %v956
        %v1014 = vunpack.c.l.b16 %v957
        %v1015 = vunpack.c.h.b16 %v957
        %v1016 = vunpack.c.l.b16 %v958
        %v1017 = vunpack.c.h.b16 %v958
        %v1018 = vunpack.c.l.b16 %v959
        %v1019 = vunpack.c.h.b16 %v959
        %v1020 = vpack.c.b16 %v990, %v988
        %v1021 = vpack.c.b16 %v991, %v989
        %v1022 = vpack.c.b16 %v994, %v992
        %v1023 = vpack.c.b16 %v995, %v993
        %v1024 = vpack.c.b16 %v998, %v996
        %v1025 = vpack.c.b16 %v999, %v997
        %v1026 = vpack.c.b16 %v1002, %v1000
        %v1027 = vpack.c.b16 %v1003, %v1001
        %v1028 = vpack.c.b16 %v1006, %v1004
        %v1029 = vpack.c.b16 %v1007, %v1005
        %v1030 = vpack.c.b16 %v1010, %v1008
        %v1031 = vpack.c.b16 %v1011, %v1009
        %v1032 = vpack.c.b16 %v1014, %v1012
        %v1033 = vpack.c.b16 %v1015, %v1013
        %v1034 = vpack.c.b16 %v1018, %v1016
        %v1035 = vpack.c.b16 %v1019, %v1017
        %1052 = vmatprep.subr.bf16.mxu0 %v1035
        %1053 = vmatpush1.bf16.msra.mxu0 %v1034
        %1054 = vmatprep.subr.bf16.mxu0 %v1033
        %1055 = vmatpush1.bf16.msra.mxu0 %v1032
        %1056 = vmatprep.subr.bf16.mxu0 %v1031
        %1057 = vmatpush1.bf16.msra.mxu0 %v1030
        %1058 = vmatprep.subr.bf16.mxu0 %v1029
        %1059 = vmatpush1.bf16.msra.mxu0 %v1028
        %1060 = vmatprep.subr.bf16.mxu0 %v1027
        %1061 = vmatpush1.bf16.msra.mxu0 %v1026
        %1062 = vmatprep.subr.bf16.mxu0 %v1025
        %1063 = vmatpush1.bf16.msra.mxu0 %v1024
        %1064 = vmatprep.subr.bf16.mxu0 %v1023
        %1065 = vmatpush1.bf16.msra.mxu0 %v1022
        %1066 = vmatprep.subr.bf16.mxu0 %v1021
        %1067 = vmatpush1.bf16.msra.mxu0 %v1020
        %1068 = vmatprep.subr.bf16.mxu0 0
        %1069 = vmatpush2.bf16.msra.mxu0 0
        %1070 = vmatprep.subr.bf16.mxu0 0
        %1071 = vmatpush2.bf16.msra.mxu0 0
        %1072 = vmatprep.subr.bf16.mxu0 0
        %1073 = vmatpush2.bf16.msra.mxu0 0
        %1074 = vmatprep.subr.bf16.mxu0 0
        %1075 = vmatpush2.bf16.msra.mxu0 0
        %1076 = vmatprep.subr.bf16.mxu0 0
        %1077 = vmatpush2.bf16.msra.mxu0 0
        %1078 = vmatprep.subr.bf16.mxu0 0
        %1079 = vmatpush2.bf16.msra.mxu0 0
        %1080 = vmatprep.subr.bf16.mxu0 0
        %1081 = vmatpush2.bf16.msra.mxu0 0
        %1082 = vmatprep.subr.bf16.mxu0 0
        %1083 = vmatpush2.bf16.msra.mxu0 0
        %1084 = vmatprep.mubr.bf16.mxu0 0
        %1085 = vmatmul.mubr.bf16.gmra.mxu0 %v291
        %v1086 = vpop.f32.mrf.mxu0
        %v1087 = vadd.f32 %v965, %v1086
        %v1088 = vpop.f32.mrf.mxu0
        %v1089 = vadd.f32 %v969, %v1088
        %v1090 = vpop.f32.mrf.mxu0
        %v1091 = vadd.f32 %v965, %v1090
        %v1092 = vpop.f32.mrf.mxu0
        %v1093 = vadd.f32 %v969, %v1092
        %1094 = vmatprep.mubr.bf16.mxu0 0
        %1095 = vmatmul.mubr.bf16.gmra.mxu0 %v292
        %v1096 = vpop.f32.mrf.mxu0
        %v1097 = vadd.f32 %v965, %v1096
        %v1098 = vpop.f32.mrf.mxu0
        %v1099 = vadd.f32 %v969, %v1098
        %v1100 = vpop.f32.mrf.mxu0
        %v1101 = vadd.f32 %v965, %v1100
        %v1102 = vpop.f32.mrf.mxu0
        %v1103 = vadd.f32 %v969, %v1102
        %1104 = vmatprep.mubr.bf16.mxu0 0
        %1105 = vmatmul.mubr.bf16.gmra.mxu0 %v293
        %v1106 = vpop.f32.mrf.mxu0
        %v1107 = vadd.f32 %v965, %v1106
        %v1108 = vpop.f32.mrf.mxu0
        %v1109 = vadd.f32 %v969, %v1108
        %v1110 = vpop.f32.mrf.mxu0
        %v1111 = vadd.f32 %v965, %v1110
        %v1112 = vpop.f32.mrf.mxu0
        %v1113 = vadd.f32 %v969, %v1112
        %1114 = vmatprep.mubr.bf16.mxu0 0
        %1115 = vmatmul.mubr.bf16.gmra.mxu0 %v294
        %v1116 = vpop.f32.mrf.mxu0
        %v1117 = vadd.f32 %v965, %v1116
        %v1118 = vpop.f32.mrf.mxu0
        %v1119 = vadd.f32 %v969, %v1118
        %v1120 = vpop.f32.mrf.mxu0
        %v1121 = vadd.f32 %v965, %v1120
        %v1122 = vpop.f32.mrf.mxu0
        %v1123 = vadd.f32 %v969, %v1122
        %1124 = vmatprep.mubr.bf16.mxu0 0
        %1125 = vmatmul.mubr.bf16.gmra.mxu0 %v295
        %v1126 = vpop.f32.mrf.mxu0
        %v1127 = vadd.f32 %v965, %v1126
        %v1128 = vpop.f32.mrf.mxu0
        %v1129 = vadd.f32 %v969, %v1128
        %v1130 = vpop.f32.mrf.mxu0
        %v1131 = vadd.f32 %v965, %v1130
        %v1132 = vpop.f32.mrf.mxu0
        %v1133 = vadd.f32 %v969, %v1132
        %1134 = vmatprep.mubr.bf16.mxu0 0
        %1135 = vmatmul.mubr.bf16.gmra.mxu0 %v296
        %v1136 = vpop.f32.mrf.mxu0
        %v1137 = vadd.f32 %v965, %v1136
        %v1138 = vpop.f32.mrf.mxu0
        %v1139 = vadd.f32 %v969, %v1138
        %v1140 = vpop.f32.mrf.mxu0
        %v1141 = vadd.f32 %v965, %v1140
        %v1142 = vpop.f32.mrf.mxu0
        %v1143 = vadd.f32 %v969, %v1142
        %1144 = vmatprep.mubr.bf16.mxu0 0
        %1145 = vmatmul.mubr.bf16.gmra.mxu0 %v297
        %v1146 = vpop.f32.mrf.mxu0
        %v1147 = vadd.f32 %v965, %v1146
        %v1148 = vpop.f32.mrf.mxu0
        %v1149 = vadd.f32 %v969, %v1148
        %v1150 = vpop.f32.mrf.mxu0
        %v1151 = vadd.f32 %v965, %v1150
        %v1152 = vpop.f32.mrf.mxu0
        %v1153 = vadd.f32 %v969, %v1152
        %1154 = vmatprep.mubr.bf16.mxu0 0
        %1155 = vmatmul.mubr.bf16.gmra.mxu0 %v298
        %v1156 = vpop.f32.mrf.mxu0
        %v1157 = vadd.f32 %v965, %v1156
        %v1158 = vpop.f32.mrf.mxu0
        %v1159 = vadd.f32 %v969, %v1158
        %v1160 = vpop.f32.mrf.mxu0
        %v1161 = vadd.f32 %v965, %v1160
        %v1162 = vpop.f32.mrf.mxu0
        %v1163 = vadd.f32 %v969, %v1162
        %1164 = vdwg.mxu0
        %v1165 = vmul.f32 %v1087, 0.5
        %v1166 = vmul.f32 %v1089, 0.5
        %v1167 = vmul.f32 %v1091, 0.5
        %v1168 = vmul.f32 %v1093, 0.5
        %v1169 = vmul.f32 %v1097, 0.5
        %v1170 = vmul.f32 %v1099, 0.5
        %v1171 = vmul.f32 %v1101, 0.5
        %v1172 = vmul.f32 %v1103, 0.5
        %v1173 = vmul.f32 %v1107, 0.5
        %v1174 = vmul.f32 %v1109, 0.5
        %v1175 = vmul.f32 %v1111, 0.5
        %v1176 = vmul.f32 %v1113, 0.5
        %v1177 = vmul.f32 %v1117, 0.5
        %v1178 = vmul.f32 %v1119, 0.5
        %v1179 = vmul.f32 %v1121, 0.5
        %v1180 = vmul.f32 %v1123, 0.5
        %v1181 = vmul.f32 %v1127, 0.5
        %v1182 = vmul.f32 %v1129, 0.5
        %v1183 = vmul.f32 %v1131, 0.5
        %v1184 = vmul.f32 %v1133, 0.5
        %v1185 = vmul.f32 %v1137, 0.5
        %v1186 = vmul.f32 %v1139, 0.5
        %v1187 = vmul.f32 %v1141, 0.5
        %v1188 = vmul.f32 %v1143, 0.5
        %v1189 = vmul.f32 %v1147, 0.5
        %v1190 = vmul.f32 %v1149, 0.5
        %v1191 = vmul.f32 %v1151, 0.5
        %v1192 = vmul.f32 %v1153, 0.5
        %v1193 = vmul.f32 %v1157, 0.5
        %v1194 = vmul.f32 %v1159, 0.5
        %v1195 = vmul.f32 %v1161, 0.5
        %v1196 = vmul.f32 %v1163, 0.5
        %v1197 = vmul.f32 %v1087, 0.70710677
        %v1198 = vmul.f32 %v1089, 0.70710677
        %v1199 = vmul.f32 %v1091, 0.70710677
        %v1200 = vmul.f32 %v1093, 0.70710677
        %v1201 = vmul.f32 %v1097, 0.70710677
        %v1202 = vmul.f32 %v1099, 0.70710677
        %v1203 = vmul.f32 %v1101, 0.70710677
        %v1204 = vmul.f32 %v1103, 0.70710677
        %v1205 = vmul.f32 %v1107, 0.70710677
        %v1206 = vmul.f32 %v1109, 0.70710677
        %v1207 = vmul.f32 %v1111, 0.70710677
        %v1208 = vmul.f32 %v1113, 0.70710677
        %v1209 = vmul.f32 %v1117, 0.70710677
        %v1210 = vmul.f32 %v1119, 0.70710677
        %v1211 = vmul.f32 %v1121, 0.70710677
        %v1212 = vmul.f32 %v1123, 0.70710677
        %v1213 = vmul.f32 %v1127, 0.70710677
        %v1214 = vmul.f32 %v1129, 0.70710677
        %v1215 = vmul.f32 %v1131, 0.70710677
        %v1216 = vmul.f32 %v1133, 0.70710677
        %v1217 = vmul.f32 %v1137, 0.70710677
        %v1218 = vmul.f32 %v1139, 0.70710677
        %v1219 = vmul.f32 %v1141, 0.70710677
        %v1220 = vmul.f32 %v1143, 0.70710677
        %v1221 = vmul.f32 %v1147, 0.70710677
        %v1222 = vmul.f32 %v1149, 0.70710677
        %v1223 = vmul.f32 %v1151, 0.70710677
        %v1224 = vmul.f32 %v1153, 0.70710677
        %v1225 = vmul.f32 %v1157, 0.70710677
        %v1226 = vmul.f32 %v1159, 0.70710677
        %v1227 = vmul.f32 %v1161, 0.70710677
        %v1228 = vmul.f32 %v1163, 0.70710677
        %v1229 = verf.f32.pop %v1197
        %v1230 = verf.f32.pop %v1198
        %v1231 = verf.f32.pop %v1199
        %v1232 = verf.f32.pop %v1200
        %v1233 = verf.f32.pop %v1201
        %v1234 = verf.f32.pop %v1202
        %v1235 = verf.f32.pop %v1203
        %v1236 = verf.f32.pop %v1204
        %v1237 = verf.f32.pop %v1205
        %v1238 = verf.f32.pop %v1206
        %v1239 = verf.f32.pop %v1207
        %v1240 = verf.f32.pop %v1208
        %v1241 = verf.f32.pop %v1209
        %v1242 = verf.f32.pop %v1210
        %v1243 = verf.f32.pop %v1211
        %v1244 = verf.f32.pop %v1212
        %v1245 = verf.f32.pop %v1213
        %v1246 = verf.f32.pop %v1214
        %v1247 = verf.f32.pop %v1215
        %v1248 = verf.f32.pop %v1216
        %v1249 = verf.f32.pop %v1217
        %v1250 = verf.f32.pop %v1218
        %v1251 = verf.f32.pop %v1219
        %v1252 = verf.f32.pop %v1220
        %v1253 = verf.f32.pop %v1221
        %v1254 = verf.f32.pop %v1222
        %v1255 = verf.f32.pop %v1223
        %v1256 = verf.f32.pop %v1224
        %v1257 = verf.f32.pop %v1225
        %v1258 = verf.f32.pop %v1226
        %v1259 = verf.f32.pop %v1227
        %v1260 = verf.f32.pop %v1228
        %v1261 = vadd.f32 %v1229, 1.0
        %v1262 = vadd.f32 %v1230, 1.0
        %v1263 = vadd.f32 %v1231, 1.0
        %v1264 = vadd.f32 %v1232, 1.0
        %v1265 = vadd.f32 %v1233, 1.0
        %v1266 = vadd.f32 %v1234, 1.0
        %v1267 = vadd.f32 %v1235, 1.0
        %v1268 = vadd.f32 %v1236, 1.0
        %v1269 = vadd.f32 %v1237, 1.0
        %v1270 = vadd.f32 %v1238, 1.0
        %v1271 = vadd.f32 %v1239, 1.0
        %v1272 = vadd.f32 %v1240, 1.0
        %v1273 = vadd.f32 %v1241, 1.0
        %v1274 = vadd.f32 %v1242, 1.0
        %v1275 = vadd.f32 %v1243, 1.0
        %v1276 = vadd.f32 %v1244, 1.0
        %v1277 = vadd.f32 %v1245, 1.0
        %v1278 = vadd.f32 %v1246, 1.0
        %v1279 = vadd.f32 %v1247, 1.0
        %v1280 = vadd.f32 %v1248, 1.0
        %v1281 = vadd.f32 %v1249, 1.0
        %v1282 = vadd.f32 %v1250, 1.0
        %v1283 = vadd.f32 %v1251, 1.0
        %v1284 = vadd.f32 %v1252, 1.0
        %v1285 = vadd.f32 %v1253, 1.0
        %v1286 = vadd.f32 %v1254, 1.0
        %v1287 = vadd.f32 %v1255, 1.0
        %v1288 = vadd.f32 %v1256, 1.0
        %v1289 = vadd.f32 %v1257, 1.0
        %v1290 = vadd.f32 %v1258, 1.0
        %v1291 = vadd.f32 %v1259, 1.0
        %v1292 = vadd.f32 %v1260, 1.0
        %v1293 = vmul.f32 %v1165, %v1261
        %v1294 = vmul.f32 %v1166, %v1262
        %v1295 = vmul.f32 %v1167, %v1263
        %v1296 = vmul.f32 %v1168, %v1264
        %v1297 = vmul.f32 %v1169, %v1265
        %v1298 = vmul.f32 %v1170, %v1266
        %v1299 = vmul.f32 %v1171, %v1267
        %v1300 = vmul.f32 %v1172, %v1268
        %v1301 = vmul.f32 %v1173, %v1269
        %v1302 = vmul.f32 %v1174, %v1270
        %v1303 = vmul.f32 %v1175, %v1271
        %v1304 = vmul.f32 %v1176, %v1272
        %v1305 = vmul.f32 %v1177, %v1273
        %v1306 = vmul.f32 %v1178, %v1274
        %v1307 = vmul.f32 %v1179, %v1275
        %v1308 = vmul.f32 %v1180, %v1276
        %v1309 = vmul.f32 %v1181, %v1277
        %v1310 = vmul.f32 %v1182, %v1278
        %v1311 = vmul.f32 %v1183, %v1279
        %v1312 = vmul.f32 %v1184, %v1280
        %v1313 = vmul.f32 %v1185, %v1281
        %v1314 = vmul.f32 %v1186, %v1282
        %v1315 = vmul.f32 %v1187, %v1283
        %v1316 = vmul.f32 %v1188, %v1284
        %v1317 = vmul.f32 %v1189, %v1285
        %v1318 = vmul.f32 %v1190, %v1286
        %v1319 = vmul.f32 %v1191, %v1287
        %v1320 = vmul.f32 %v1192, %v1288
        %v1321 = vmul.f32 %v1193, %v1289
        %v1322 = vmul.f32 %v1194, %v1290
        %v1323 = vmul.f32 %v1195, %v1291
        %v1324 = vmul.f32 %v1196, %v1292
        %v1325 = vpack.c.bf16 %v1295, %v1293
        %v1326 = vpack.c.bf16 %v1296, %v1294
        %v1327 = vpack.c.bf16 %v1299, %v1297
        %v1328 = vpack.c.bf16 %v1300, %v1298
        %v1329 = vpack.c.bf16 %v1303, %v1301
        %v1330 = vpack.c.bf16 %v1304, %v1302
        %v1331 = vpack.c.bf16 %v1307, %v1305
        %v1332 = vpack.c.bf16 %v1308, %v1306
        %v1333 = vpack.c.bf16 %v1311, %v1309
        %v1334 = vpack.c.bf16 %v1312, %v1310
        %v1335 = vpack.c.bf16 %v1315, %v1313
        %v1336 = vpack.c.bf16 %v1316, %v1314
        %v1337 = vpack.c.bf16 %v1319, %v1317
        %v1338 = vpack.c.bf16 %v1320, %v1318
        %v1339 = vpack.c.bf16 %v1323, %v1321
        %v1340 = vpack.c.bf16 %v1324, %v1322
        %v1341 = vld [vmem:[#allocation7 + $0x80] sm:$0xf]
        %v1342 = vld [vmem:[#allocation7 + $0x84] sm:$0xf]
        %v1343 = vld [vmem:[#allocation7 + $0x88] sm:$0xf]
        %v1344 = vld [vmem:[#allocation7 + $0x8c] sm:$0xf]
        %v1345 = vld [vmem:[#allocation7 + $0x90] sm:$0xf]
        %v1346 = vld [vmem:[#allocation7 + $0x94] sm:$0xf]
        %v1347 = vld [vmem:[#allocation7 + $0x98] sm:$0xf]
        %v1348 = vld [vmem:[#allocation7 + $0x9c] sm:$0xf]
        %v1349 = vld [vmem:[#allocation7 + $0xa0] sm:$0xf]
        %v1350 = vld [vmem:[#allocation7 + $0xa4] sm:$0xf]
        %v1351 = vld [vmem:[#allocation7 + $0xa8] sm:$0xf]
        %v1352 = vld [vmem:[#allocation7 + $0xac] sm:$0xf]
        %v1353 = vld [vmem:[#allocation7 + $0xb0] sm:$0xf]
        %v1354 = vld [vmem:[#allocation7 + $0xb4] sm:$0xf]
        %v1355 = vld [vmem:[#allocation7 + $0xb8] sm:$0xf]
        %v1356 = vld [vmem:[#allocation7 + $0xbc] sm:$0xf]
        %v1357 = vld [vmem:[#allocation7 + $0xc0] sm:$0xf]
        %v1358 = vld [vmem:[#allocation7 + $0xc4] sm:$0xf]
        %v1359 = vld [vmem:[#allocation7 + $0xc8] sm:$0xf]
        %v1360 = vld [vmem:[#allocation7 + $0xcc] sm:$0xf]
        %v1361 = vld [vmem:[#allocation7 + $0xd0] sm:$0xf]
        %v1362 = vld [vmem:[#allocation7 + $0xd4] sm:$0xf]
        %v1363 = vld [vmem:[#allocation7 + $0xd8] sm:$0xf]
        %v1364 = vld [vmem:[#allocation7 + $0xdc] sm:$0xf]
        %v1365 = vld [vmem:[#allocation7 + $0xe0] sm:$0xf]
        %v1366 = vld [vmem:[#allocation7 + $0xe4] sm:$0xf]
        %v1367 = vld [vmem:[#allocation7 + $0xe8] sm:$0xf]
        %v1368 = vld [vmem:[#allocation7 + $0xec] sm:$0xf]
        %v1369 = vld [vmem:[#allocation7 + $0xf0] sm:$0xf]
        %v1370 = vld [vmem:[#allocation7 + $0xf4] sm:$0xf]
        %v1371 = vld [vmem:[#allocation7 + $0xf8] sm:$0xf]
        %v1372 = vld [vmem:[#allocation7 + $0xfc] sm:$0xf]
        %v1405 = vunpack.c.l.b16 %v1341
        %v1406 = vunpack.c.l.b16 %v1342
        %v1407 = vunpack.c.l.b16 %v1343
        %v1408 = vunpack.c.l.b16 %v1344
        %v1409 = vunpack.c.l.b16 %v1345
        %v1410 = vunpack.c.l.b16 %v1346
        %v1411 = vunpack.c.l.b16 %v1347
        %v1412 = vunpack.c.l.b16 %v1348
        %v1413 = vunpack.c.l.b16 %v1349
        %v1414 = vunpack.c.l.b16 %v1350
        %v1415 = vunpack.c.l.b16 %v1351
        %v1416 = vunpack.c.l.b16 %v1352
        %v1417 = vunpack.c.l.b16 %v1353
        %v1418 = vunpack.c.l.b16 %v1354
        %v1419 = vunpack.c.l.b16 %v1355
        %v1420 = vunpack.c.l.b16 %v1356
        %v1421 = vunpack.c.l.b16 %v1357
        %v1422 = vunpack.c.l.b16 %v1358
        %v1423 = vunpack.c.l.b16 %v1359
        %v1424 = vunpack.c.l.b16 %v1360
        %v1425 = vunpack.c.l.b16 %v1361
        %v1426 = vunpack.c.l.b16 %v1362
        %v1427 = vunpack.c.l.b16 %v1363
        %v1428 = vunpack.c.l.b16 %v1364
        %v1429 = vunpack.c.l.b16 %v1365
        %v1430 = vunpack.c.l.b16 %v1366
        %v1431 = vunpack.c.l.b16 %v1367
        %v1432 = vunpack.c.l.b16 %v1368
        %v1433 = vunpack.c.l.b16 %v1369
        %v1434 = vunpack.c.l.b16 %v1370
        %v1435 = vunpack.c.l.b16 %v1371
        %v1436 = vunpack.c.l.b16 %v1372
        %v1437 = vpack.c.b16 %v1406, %v1405
        %v1438 = vpack.c.b16 %v1408, %v1407
        %v1439 = vpack.c.b16 %v1410, %v1409
        %v1440 = vpack.c.b16 %v1412, %v1411
        %v1441 = vpack.c.b16 %v1414, %v1413
        %v1442 = vpack.c.b16 %v1416, %v1415
        %v1443 = vpack.c.b16 %v1418, %v1417
        %v1444 = vpack.c.b16 %v1420, %v1419
        %v1445 = vpack.c.b16 %v1422, %v1421
        %v1446 = vpack.c.b16 %v1424, %v1423
        %v1447 = vpack.c.b16 %v1426, %v1425
        %v1448 = vpack.c.b16 %v1428, %v1427
        %v1449 = vpack.c.b16 %v1430, %v1429
        %v1450 = vpack.c.b16 %v1432, %v1431
        %v1451 = vpack.c.b16 %v1434, %v1433
        %v1452 = vpack.c.b16 %v1436, %v1435
        %1469 = vmatprep.subr.bf16.mxu0 0
        %1470 = vmatpush1.bf16.msra.mxu0 %v1444
        %1471 = vmatprep.subr.bf16.mxu0 0
        %1472 = vmatpush1.bf16.msra.mxu0 %v1443
        %1473 = vmatprep.subr.bf16.mxu0 0
        %1474 = vmatpush1.bf16.msra.mxu0 %v1442
        %1475 = vmatprep.subr.bf16.mxu0 0
        %1476 = vmatpush1.bf16.msra.mxu0 %v1441
        %1477 = vmatprep.subr.bf16.mxu0 0
        %1478 = vmatpush1.bf16.msra.mxu0 %v1440
        %1479 = vmatprep.subr.bf16.mxu0 0
        %1480 = vmatpush1.bf16.msra.mxu0 %v1439
        %1481 = vmatprep.subr.bf16.mxu0 0
        %1482 = vmatpush1.bf16.msra.mxu0 %v1438
        %1483 = vmatprep.subr.bf16.mxu0 0
        %1484 = vmatpush1.bf16.msra.mxu0 %v1437
        %1485 = vmatprep.subr.bf16.mxu0 0
        %1486 = vmatpush2.bf16.msra.mxu0 %v1452
        %1487 = vmatprep.subr.bf16.mxu0 0
        %1488 = vmatpush2.bf16.msra.mxu0 %v1451
        %1489 = vmatprep.subr.bf16.mxu0 0
        %1490 = vmatpush2.bf16.msra.mxu0 %v1450
        %1491 = vmatprep.subr.bf16.mxu0 0
        %1492 = vmatpush2.bf16.msra.mxu0 %v1449
        %1493 = vmatprep.subr.bf16.mxu0 0
        %1494 = vmatpush2.bf16.msra.mxu0 %v1448
        %1495 = vmatprep.subr.bf16.mxu0 0
        %1496 = vmatpush2.bf16.msra.mxu0 %v1447
        %1497 = vmatprep.subr.bf16.mxu0 0
        %1498 = vmatpush2.bf16.msra.mxu0 %v1446
        %1499 = vmatprep.subr.bf16.mxu0 0
        %1500 = vmatpush2.bf16.msra.mxu0 %v1445
        %1501 = vmatprep.mubr.bf16.mxu0 %v1326
        %1502 = vmatmul.mubr.bf16.gmra.mxu0 %v1325
        %v1503 = vpop.f32.mrf.mxu0
        %v1504 = vadd.f32 0.0, %v1503
        %v1505 = vpop.f32.mrf.mxu0
        %v1506 = vpop.f32.mrf.mxu0
        %v1507 = vadd.f32 0.0, %v1506
        %v1508 = vpop.f32.mrf.mxu0
        %1509 = vmatprep.mubr.bf16.mxu0 %v1328
        %1510 = vmatmul.mubr.bf16.gmra.mxu0 %v1327
        %v1511 = vpop.f32.mrf.mxu0
        %v1512 = vadd.f32 0.0, %v1511
        %v1513 = vpop.f32.mrf.mxu0
        %v1514 = vpop.f32.mrf.mxu0
        %v1515 = vadd.f32 0.0, %v1514
        %v1516 = vpop.f32.mrf.mxu0
        %1517 = vmatprep.mubr.bf16.mxu0 %v1330
        %1518 = vmatmul.mubr.bf16.gmra.mxu0 %v1329
        %v1519 = vpop.f32.mrf.mxu0
        %v1520 = vadd.f32 0.0, %v1519
        %v1521 = vpop.f32.mrf.mxu0
        %v1522 = vpop.f32.mrf.mxu0
        %v1523 = vadd.f32 0.0, %v1522
        %v1524 = vpop.f32.mrf.mxu0
        %1525 = vmatprep.mubr.bf16.mxu0 %v1332
        %1526 = vmatmul.mubr.bf16.gmra.mxu0 %v1331
        %v1527 = vpop.f32.mrf.mxu0
        %v1528 = vadd.f32 0.0, %v1527
        %v1529 = vpop.f32.mrf.mxu0
        %v1530 = vpop.f32.mrf.mxu0
        %v1531 = vadd.f32 0.0, %v1530
        %v1532 = vpop.f32.mrf.mxu0
        %1533 = vmatprep.mubr.bf16.mxu0 %v1334
        %1534 = vmatmul.mubr.bf16.gmra.mxu0 %v1333
        %v1535 = vpop.f32.mrf.mxu0
        %v1536 = vadd.f32 0.0, %v1535
        %v1537 = vpop.f32.mrf.mxu0
        %v1538 = vpop.f32.mrf.mxu0
        %v1539 = vadd.f32 0.0, %v1538
        %v1540 = vpop.f32.mrf.mxu0
        %1541 = vmatprep.mubr.bf16.mxu0 %v1336
        %1542 = vmatmul.mubr.bf16.gmra.mxu0 %v1335
        %v1543 = vpop.f32.mrf.mxu0
        %v1544 = vadd.f32 0.0, %v1543
        %v1545 = vpop.f32.mrf.mxu0
        %v1546 = vpop.f32.mrf.mxu0
        %v1547 = vadd.f32 0.0, %v1546
        %v1548 = vpop.f32.mrf.mxu0
        %1549 = vmatprep.mubr.bf16.mxu0 %v1338
        %1550 = vmatmul.mubr.bf16.gmra.mxu0 %v1337
        %v1551 = vpop.f32.mrf.mxu0
        %v1552 = vadd.f32 0.0, %v1551
        %v1553 = vpop.f32.mrf.mxu0
        %v1554 = vpop.f32.mrf.mxu0
        %v1555 = vadd.f32 0.0, %v1554
        %v1556 = vpop.f32.mrf.mxu0
        %1557 = vmatprep.mubr.bf16.mxu0 %v1340
        %1558 = vmatmul.mubr.bf16.gmra.mxu0 %v1339
        %v1559 = vpop.f32.mrf.mxu0
        %v1560 = vadd.f32 0.0, %v1559
        %v1561 = vpop.f32.mrf.mxu0
        %v1562 = vpop.f32.mrf.mxu0
        %v1563 = vadd.f32 0.0, %v1562
        %v1564 = vpop.f32.mrf.mxu0
        %1565 = vdwg.mxu0
        %v1566 = vadd.f32 %v928, %v1504
        %v1567 = vadd.f32 %v929, %v1507
        %v1568 = vadd.f32 %v930, %v1512
        %v1569 = vadd.f32 %v931, %v1515
        %v1570 = vadd.f32 %v932, %v1520
        %v1571 = vadd.f32 %v933, %v1523
        %v1572 = vadd.f32 %v934, %v1528
        %v1573 = vadd.f32 %v935, %v1531
        %v1574 = vadd.f32 %v936, %v1536
        %v1575 = vadd.f32 %v937, %v1539
        %v1576 = vadd.f32 %v938, %v1544
        %v1577 = vadd.f32 %v939, %v1547
        %v1578 = vadd.f32 %v940, %v1552
        %v1579 = vadd.f32 %v941, %v1555
        %v1580 = vadd.f32 %v942, %v1560
        %v1581 = vadd.f32 %v943, %v1563
        %1582 = vst [vmem:[%s271] sm:$0xff] %v1566
        %1583 = vst [vmem:[%s271 + $0x8] sm:$0xff] %v1567
        %1584 = vst [vmem:[%s271 + $0x10] sm:$0xff] %v1568
        %1585 = vst [vmem:[%s271 + $0x18] sm:$0xff] %v1569
        %1586 = vst [vmem:[%s271 + $0x20] sm:$0xff] %v1570
        %1587 = vst [vmem:[%s271 + $0x28] sm:$0xff] %v1571
        %1588 = vst [vmem:[%s271 + $0x30] sm:$0xff] %v1572
        %1589 = vst [vmem:[%s271 + $0x38] sm:$0xff] %v1573
        %1590 = vst [vmem:[%s271 + $0x40] sm:$0xff] %v1574
        %1591 = vst [vmem:[%s271 + $0x48] sm:$0xff] %v1575
        %1592 = vst [vmem:[%s271 + $0x50] sm:$0xff] %v1576
        %1593 = vst [vmem:[%s271 + $0x58] sm:$0xff] %v1577
        %1594 = vst [vmem:[%s271 + $0x60] sm:$0xff] %v1578
        %1595 = vst [vmem:[%s271 + $0x68] sm:$0xff] %v1579
        %1596 = vst [vmem:[%s271 + $0x70] sm:$0xff] %v1580
        %1597 = vst [vmem:[%s271 + $0x78] sm:$0xff] %v1581
        %s1598 = sand.u32 %s141, 1
        %s1599 = scalar_lea.sflag [#allocation4], %s1598
        %s1600 = sand.u32 %s141, 1
        %s1601 = smul.addr %s1600, 128
        %s1602 = scalar_lea.vmem [#allocation8], %s1601
        // Predicated region
        $region53: #{mlp_pallas.1} parent=39 // pred_check
          %p1603 = pneg %p151
        $region54: #{mlp_pallas.1} parent=39 // pred_check_branch
          %1605 = sbr.rel (%p1603) target = $region56
        $region55: #{mlp_pallas.1} parent=39 // pred_region
          %s1606 = smul.u32 16, %s23
          %s1608 = ssub.s32 2048, 2048
          %1609 = vsyncadd %s1599, %s1608
          %s1610 = smul.addr %s1606, 128
          %s1611 = scalar_lea.hbm %s5, %s1610
          %s1612 = sshll.u32 %s1602, 4
          %s1613 = int_to_ptr.vmem [resolvable:$true] %s1612
          %1618 = dma.vmem_to_hbm [thread:$0]  %s1613, 2048, %s1611, %s1599, 128, 128, 8
        $region56: #{mlp_pallas.1} parent=39 // pred_fallthru
          _
      $region40: #{mlp_pallas.1} parent=5 // pred_fallthru
        _
      %p1619 = scmp.le.s32.totalorder 2, %s18
      // Predicated region
      $region57: #{mlp_pallas.1} parent=5 // pred_check
        %p1620 = pneg %p1619
      $region58: #{mlp_pallas.1} parent=5 // pred_check_branch
        %1622 = sbr.rel (%p1620) target = $region60
      $region59: #{mlp_pallas.1} parent=5 // pred_region
        %s1623 = ssub.s32 %s18, 2
        // Predicated region
        $region61: #{mlp_pallas.1} parent=59 // pred_check
          %p1624 = pneg %p157
        $region62: #{mlp_pallas.1} parent=59 // pred_check_branch
          %1626 = sbr.rel (%p1624) target = $region64
        $region63: #{mlp_pallas.1} parent=59 // pred_region
          %s1627 = sand.u32 %s142, 1
          %s1628 = scalar_lea.sflag [#allocation4], %s1627
          %s1629 = sand.u32 %s142, 1
          %s1630 = smul.addr %s1629, 128
          %s1631 = scalar_lea.vmem [#allocation8], %s1630
          %1632 = dma.done %s1628, 2048
        $region64: #{mlp_pallas.1} parent=59 // pred_fallthru
          _
      $region60: #{mlp_pallas.1} parent=5 // pred_fallthru
        _
    $region6: #{mlp_pallas.1} parent=1 // loop_footer
      %s22 = sadd.s32 1, %s18
    $region7: #{mlp_pallas.1} parent=1 // loop_footer_branch
      %17 = sbr.rel target = $region3
    $region8: #{mlp_pallas.1} parent=1 // loop_exit
      _
    %1633 = vsyncpa [#allocation3], 1
    %s1634 = scalar_lea.sflag [#allocation3], 1
    %1635 = vsyncpa %s1634, 1
    %1636 = vsyncpa [#allocation6], 1
    %1637 = vsyncpa [#allocation4], 1
    %s1638 = scalar_lea.sflag [#allocation4], 1
    %1639 = vsyncpa %s1638, 1

</llo_original>
